<compile_context>
chip_gen: v7x
topology: tpu7x:2x2x1
jax: 0.10.0
libtpu: 0.0.40
codegen_flags: <defaults>
</compile_context>

<pallas_src>
import functools
import numpy as np
import jax
import jax.numpy as jnp
from jax.experimental import pallas as pl
from jax.experimental.pallas import tpu as pltpu


MXU_DTYPE = jnp.float32   # set to jnp.bfloat16 on v6e/v7x


def fused_encoder_kernel(x_ref, mask_ref, wqkv_ref, bqkv_ref, wo_ref, bo_ref,
                         w1_ref, b1_ref, w2_ref, b2_ref,
                         g1_ref, beta1_ref, g2_ref, beta2_ref,
                         o_ref, *, nhead, nlayers):
    """Runs all `nlayers` encoder layers for one batch element (one grid step)."""
    x = x_ref[0].astype(jnp.float32)                    # (S, E)
    S, E = x.shape
    H = nhead
    dh = E // H
    scale = 1.0 / float(np.sqrt(dh))

    # Hoist all weight / mask loads out of the layer loop (weights shared across layers).
    mask = mask_ref[...]                                # (S, S) additive f32 mask
    wqkv = wqkv_ref[...]                                # (3E, E)  rows = output features
    bqkv = bqkv_ref[...].astype(jnp.float32)            # (3E, 1)
    wo, bo = wo_ref[...], bo_ref[...]                   # (E, E), (1, E)
    w1, b1 = w1_ref[...], b1_ref[...]                   # (E, F), (1, F)
    w2, b2 = w2_ref[...], b2_ref[...]                   # (F, E), (1, E)
    g1, beta1 = g1_ref[...], beta1_ref[...]
    g2, beta2 = g2_ref[...], beta2_ref[...]
    mxu = wqkv.dtype                                    # matmul operand dtype (f32 / bf16)

    def layer_norm(y, g, b):                            # vector math stays f32 (v5e-safe)
        mu = jnp.mean(y, axis=-1, keepdims=True)
        var = jnp.mean((y - mu) ** 2, axis=-1, keepdims=True)
        return (y - mu) * jax.lax.rsqrt(var + 1e-5) * g + b

    # All encoder layers share identical weights, so a static unrolled loop keeps the
    # activation resident in vregs/VMEM between layers (no HBM traffic).
    for _ in range(nlayers):
        # ---- multi-head self-attention (fused QKV, heads as sublane row-blocks) ----
        xt = x.T.astype(mxu)                                                    # (E, S)
        qkv_t = jnp.dot(wqkv, xt, preferred_element_type=jnp.float32) + bqkv    # (3E, S)
        head_outs = []
        for h in range(H):            # 8-aligned sublane slices: no lane relayouts
            q_t = qkv_t[h * dh:(h + 1) * dh, :] * scale                         # (dh, S)
            k_t = qkv_t[(H + h) * dh:(H + h + 1) * dh, :]                       # (dh, S)
            v_t = qkv_t[(2 * H + h) * dh:(2 * H + h + 1) * dh, :]               # (dh, S)
            s = jnp.dot(q_t.T.astype(mxu), k_t.astype(mxu),
                        preferred_element_type=jnp.float32) + mask              # (S, S)
            s = s - jnp.max(s, axis=-1, keepdims=True)
            p = jnp.exp(s)
            p = p * pl.reciprocal(jnp.sum(p, axis=-1, keepdims=True), approx=True)
            # o_t[d, i] = sum_j v_t[d, j] * p[i, j]
            head_outs.append(jnp.dot(v_t.astype(mxu), p.T.astype(mxu),
                                     preferred_element_type=jnp.float32))       # (dh, S)
        attn_t = jnp.concatenate(head_outs, axis=0)                             # (E, S)
        attn = jnp.dot(attn_t.T.astype(mxu), wo,
                       preferred_element_type=jnp.float32) + bo                 # (S, E)

        # ---- residual + LayerNorm 1 ----
        y = layer_norm(x + attn, g1, beta1)

        # ---- feed-forward ----
        h1 = jnp.dot(y.astype(mxu), w1, preferred_element_type=jnp.float32) + b1
        h1 = jnp.maximum(h1, 0.0)                                               # ReLU
        h2 = jnp.dot(h1.astype(mxu), w2, preferred_element_type=jnp.float32) + b2

        # ---- residual + LayerNorm 2 ----
        x = layer_norm(y + h2, g2, beta2)

    o_ref[0] = x.astype(o_ref.dtype)


def prepare_fused_params(p, mxu_dtype=MXU_DTYPE):
    """Pack per-projection params into the fused / transposed kernel layout (done once)."""
    wqkv = jnp.concatenate([p["wq"].T, p["wk"].T, p["wv"].T], axis=0)   # (3E, E), rows=outputs
    bqkv = jnp.concatenate([p["bq"], p["bk"], p["bv"]], axis=1).T        # (3E, 1)
    return {
        "wqkv": wqkv.astype(mxu_dtype), "bqkv": bqkv,
        "wo": p["wo"].astype(mxu_dtype), "bo": p["bo"],
        "w1": p["w1"].astype(mxu_dtype), "b1": p["b1"],
        "w2": p["w2"].astype(mxu_dtype), "b2": p["b2"],
        "g1": p["g1"], "beta1": p["beta1"], "g2": p["g2"], "beta2": p["beta2"],
    }


def transformer_encoder_pallas(x, n_mask, fp, nhead, nlayers):
    # x: (B, S, E) float32
    B, S, E = x.shape
    F = fp["w1"].shape[1]

    def const(shape):                      # same block every grid step -> DMA not re-issued
        nd = len(shape)
        return pl.BlockSpec(shape, lambda b, _nd=nd: (0,) * _nd)

    kernel = functools.partial(fused_encoder_kernel, nhead=nhead, nlayers=nlayers)
    return pl.pallas_call(
        kernel,
        out_shape=jax.ShapeDtypeStruct((B, S, E), x.dtype),
        grid=(B,),                                          # batch-parallel (2 TCs on v7x)
        in_specs=[
            pl.BlockSpec((1, S, E), lambda b: (b, 0, 0)),   # x: one batch element per step
            const((S, S)),                                  # additive attention mask
            const((3 * E, E)), const((3 * E, 1)),           # fused QKV weight / bias
            const((E, E)), const((1, E)),                   # out-proj
            const((E, F)), const((1, F)),                   # linear1
            const((F, E)), const((1, E)),                   # linear2
            const((1, E)), const((1, E)),                   # LayerNorm1 gamma / beta
            const((1, E)), const((1, E)),                   # LayerNorm2 gamma / beta
        ],
        out_specs=pl.BlockSpec((1, S, E), lambda b: (b, 0, 0)),
        compiler_params=pltpu.CompilerParams(dimension_semantics=("parallel",)),
    )(x, n_mask, fp["wqkv"], fp["bqkv"], fp["wo"], fp["bo"],
      fp["w1"], fp["b1"], fp["w2"], fp["b2"],
      fp["g1"], fp["beta1"], fp["g2"], fp["beta2"])


def build_additive_mask(mask):
    # n_mask = mask + eye; fill(==0 -> -1e20); fill(==1 -> 0)   (order matters)
    # Quirk kept from the PyTorch reference: entries equal to 2.0 (mask==1 on the diagonal)
    # remain a +2.0 additive bias; assumes a strictly 0/1 mask.
    S = mask.shape[0]
    n_mask = mask.astype(jnp.float32) + jnp.eye(S, dtype=jnp.float32)
    n_mask = jnp.where(n_mask == 0.0, jnp.float32(-1e20), n_mask)
    n_mask = jnp.where(n_mask == 1.0, jnp.float32(0.0), n_mask)
    return n_mask


def transformer_model_forward(src, mask, fused_params, nhead, nlayers):
    """src: (S, B, E) seq-first (PyTorch MultiheadAttention default layout)."""
    n_mask = build_additive_mask(mask)
    x = jnp.transpose(src, (1, 0, 2))            # (S,B,E) -> (B,S,E); 2 KiB, see layout note
    y = transformer_encoder_pallas(x, n_mask, fused_params, nhead, nlayers)
    return jnp.transpose(y, (1, 0, 2))           # -> (S, B, E)


# ---------------- pure-JAX reference (for a sanity check) ----------------
def _layer_ref(x, n_mask, p, nhead):
    B, S, E = x.shape
    dh = E // nhead
    scale = 1.0 / float(np.sqrt(dh))
    q = x @ p["wq"] + p["bq"]
    k = x @ p["wk"] + p["bk"]
    v = x @ p["wv"] + p["bv"]
    q = q.reshape(B, S, nhead, dh).transpose(0, 2, 1, 3) * scale
    k = k.reshape(B, S, nhead, dh).transpose(0, 2, 1, 3)
    v = v.reshape(B, S, nhead, dh).transpose(0, 2, 1, 3)
    s = jnp.einsum("bhqd,bhkd->bhqk", q, k) + n_mask[None, None]
    p_attn = jax.nn.softmax(s, axis=-1)
    o = jnp.einsum("bhqk,bhkd->bhqd", p_attn, v).transpose(0, 2, 1, 3).reshape(B, S, E)
    o = o @ p["wo"] + p["bo"]
    y = x + o
    mu = y.mean(-1, keepdims=True)
    var = ((y - mu) ** 2).mean(-1, keepdims=True)
    y = (y - mu) * jax.lax.rsqrt(var + 1e-5) * p["g1"] + p["beta1"]
    h = jnp.maximum(y @ p["w1"] + p["b1"], 0.0) @ p["w2"] + p["b2"]
    z = y + h
    mu2 = z.mean(-1, keepdims=True)
    var2 = ((z - mu2) ** 2).mean(-1, keepdims=True)
    return (z - mu2) * jax.lax.rsqrt(var2 + 1e-5) * p["g2"] + p["beta2"]


def transformer_model_ref(src, mask, params, nhead, nlayers):
    n_mask = build_additive_mask(mask)
    x = jnp.transpose(src, (1, 0, 2))
    for _ in range(nlayers):
        x = _layer_ref(x, n_mask, params, nhead)
    return jnp.transpose(x, (1, 0, 2))


def init_params(key, E, nhid):
    ks = jax.random.split(key, 8)
    s = 0.1
    return {
        # projection weights stored pre-transposed so q = x @ W
        "wq": jax.random.normal(ks[0], (E, E), jnp.float32) * s,
        "wk": jax.random.normal(ks[1], (E, E), jnp.float32) * s,
        "wv": jax.random.normal(ks[2], (E, E), jnp.float32) * s,
        "bq": jnp.zeros((1, E), jnp.float32),
        "bk": jnp.zeros((1, E), jnp.float32),
        "bv": jnp.zeros((1, E), jnp.float32),
        "wo": jax.random.normal(ks[3], (E, E), jnp.float32) * s,
        "bo": jax.random.normal(ks[4], (1, E), jnp.float32) * s,
        "w1": jax.random.normal(ks[5], (E, nhid), jnp.float32) * s,
        "b1": jax.random.normal(ks[6], (1, nhid), jnp.float32) * s,
        "w2": jax.random.normal(ks[7], (nhid, E), jnp.float32) * s,
        "b2": jnp.zeros((1, E), jnp.float32),
        "g1": jnp.ones((1, E), jnp.float32),
        "beta1": jnp.zeros((1, E), jnp.float32),
        "g2": jnp.ones((1, E), jnp.float32),
        "beta2": jnp.zeros((1, E), jnp.float32),
    }


if __name__ == "__main__":
    # Small shapes: ninp=32, nhead=4, nhid=64, nlayers=2, seq=8, batch=2
    S, B, E, H, NHID, NLAYERS = 8, 2, 32, 4, 64, 2
    key = jax.random.PRNGKey(0)
    k_src, k_mask, k_par = jax.random.split(key, 3)

    src = jax.random.normal(k_src, (S, B, E), jnp.float32)               # (S, B, E)
    mask = (jax.random.uniform(k_mask, (S, S)) > 0.5).astype(jnp.float32)
    mask = mask * (1.0 - jnp.eye(S, dtype=jnp.float32))                   # 0/1 adjacency, zero diag

    params = init_params(k_par, E, NHID)
    fused = prepare_fused_params(params)                                  # one-time packing

    fwd = jax.jit(functools.partial(transformer_model_forward, nhead=H, nlayers=NLAYERS))
    out = jax.block_until_ready(fwd(src, mask, fused))

    ref = jax.block_until_ready(transformer_model_ref(src, mask, params, H, NLAYERS))
    np.testing.assert_allclose(np.asarray(out), np.asarray(ref), rtol=2e-2, atol=2e-2)

    print("KERNEL_OK")
</pallas_src>

<mosaic_0001>
module attributes {stable_mosaic.version = 11 : i64} {
  func.func @fused_encoder_kernel(%arg0: i32, %arg1: memref<1x8x32xf32, #tpu.memory_space<vmem>>, %arg2: memref<8x8xf32, #tpu.memory_space<vmem>>, %arg3: memref<96x32xf32, #tpu.memory_space<vmem>>, %arg4: memref<96x1xf32, #tpu.memory_space<vmem>>, %arg5: memref<32x32xf32, #tpu.memory_space<vmem>>, %arg6: memref<1x32xf32, #tpu.memory_space<vmem>>, %arg7: memref<32x64xf32, #tpu.memory_space<vmem>>, %arg8: memref<1x64xf32, #tpu.memory_space<vmem>>, %arg9: memref<64x32xf32, #tpu.memory_space<vmem>>, %arg10: memref<1x32xf32, #tpu.memory_space<vmem>>, %arg11: memref<1x32xf32, #tpu.memory_space<vmem>>, %arg12: memref<1x32xf32, #tpu.memory_space<vmem>>, %arg13: memref<1x32xf32, #tpu.memory_space<vmem>>, %arg14: memref<1x32xf32, #tpu.memory_space<vmem>>, %arg15: memref<1x8x32xf32, #tpu.memory_space<vmem>>) attributes {dimension_semantics = [#tpu.dimension_semantics<parallel>], iteration_bounds = array<i64: 2>, scalar_prefetch = 0 : i64, scratch_operands = 0 : i64, tpu.core_type = #tpu.core_type<tc>, window_params = [{transform_indices = @transform_0, window_bounds = array<i64: 1, 8, 32>}, {pipeline_mode = #tpu.pipeline_mode<synchronous>, transform_indices = @transform_1, window_bounds = array<i64: 8, 8>}, {pipeline_mode = #tpu.pipeline_mode<synchronous>, transform_indices = @transform_2, window_bounds = array<i64: 96, 32>}, {pipeline_mode = #tpu.pipeline_mode<synchronous>, transform_indices = @transform_3, window_bounds = array<i64: 96, 1>}, {pipeline_mode = #tpu.pipeline_mode<synchronous>, transform_indices = @transform_4, window_bounds = array<i64: 32, 32>}, {pipeline_mode = #tpu.pipeline_mode<synchronous>, transform_indices = @transform_5, window_bounds = array<i64: 1, 32>}, {pipeline_mode = #tpu.pipeline_mode<synchronous>, transform_indices = @transform_6, window_bounds = array<i64: 32, 64>}, {pipeline_mode = #tpu.pipeline_mode<synchronous>, transform_indices = @transform_7, window_bounds = array<i64: 1, 64>}, {pipeline_mode = #tpu.pipeline_mode<synchronous>, transform_indices = @transform_8, window_bounds = array<i64: 64, 32>}, {pipeline_mode = #tpu.pipeline_mode<synchronous>, transform_indices = @transform_9, window_bounds = array<i64: 1, 32>}, {pipeline_mode = #tpu.pipeline_mode<synchronous>, transform_indices = @transform_10, window_bounds = array<i64: 1, 32>}, {pipeline_mode = #tpu.pipeline_mode<synchronous>, transform_indices = @transform_11, window_bounds = array<i64: 1, 32>}, {pipeline_mode = #tpu.pipeline_mode<synchronous>, transform_indices = @transform_12, window_bounds = array<i64: 1, 32>}, {pipeline_mode = #tpu.pipeline_mode<synchronous>, transform_indices = @transform_13, window_bounds = array<i64: 1, 32>}, {transform_indices = @transform_14, window_bounds = array<i64: 1, 8, 32>}]} {
    %c0 = arith.constant 0 : index
    %c0_0 = arith.constant 0 : index
    %c0_1 = arith.constant 0 : index
    %0 = vector.load %arg1[%c0, %c0_0, %c0_1] : memref<1x8x32xf32, #tpu.memory_space<vmem>>, vector<1x8x32xf32>
    %1 = vector.shape_cast %0 : vector<1x8x32xf32> to vector<8x32xf32>
    %c0_2 = arith.constant 0 : index
    %c0_3 = arith.constant 0 : index
    %2 = vector.load %arg2[%c0_2, %c0_3] : memref<8x8xf32, #tpu.memory_space<vmem>>, vector<8x8xf32>
    %c0_4 = arith.constant 0 : index
    %c0_5 = arith.constant 0 : index
    %3 = vector.load %arg3[%c0_4, %c0_5] : memref<96x32xf32, #tpu.memory_space<vmem>>, vector<96x32xf32>
    %c0_6 = arith.constant 0 : index
    %c0_7 = arith.constant 0 : index
    %4 = vector.load %arg4[%c0_6, %c0_7] : memref<96x1xf32, #tpu.memory_space<vmem>>, vector<96x1xf32>
    %c0_8 = arith.constant 0 : index
    %c0_9 = arith.constant 0 : index
    %5 = vector.load %arg5[%c0_8, %c0_9] : memref<32x32xf32, #tpu.memory_space<vmem>>, vector<32x32xf32>
    %c0_10 = arith.constant 0 : index
    %c0_11 = arith.constant 0 : index
    %6 = vector.load %arg6[%c0_10, %c0_11] : memref<1x32xf32, #tpu.memory_space<vmem>>, vector<1x32xf32>
    %c0_12 = arith.constant 0 : index
    %c0_13 = arith.constant 0 : index
    %7 = vector.load %arg7[%c0_12, %c0_13] : memref<32x64xf32, #tpu.memory_space<vmem>>, vector<32x64xf32>
    %c0_14 = arith.constant 0 : index
    %c0_15 = arith.constant 0 : index
    %8 = vector.load %arg8[%c0_14, %c0_15] : memref<1x64xf32, #tpu.memory_space<vmem>>, vector<1x64xf32>
    %c0_16 = arith.constant 0 : index
    %c0_17 = arith.constant 0 : index
    %9 = vector.load %arg9[%c0_16, %c0_17] : memref<64x32xf32, #tpu.memory_space<vmem>>, vector<64x32xf32>
    %c0_18 = arith.constant 0 : index
    %c0_19 = arith.constant 0 : index
    %10 = vector.load %arg10[%c0_18, %c0_19] : memref<1x32xf32, #tpu.memory_space<vmem>>, vector<1x32xf32>
    %c0_20 = arith.constant 0 : index
    %c0_21 = arith.constant 0 : index
    %11 = vector.load %arg11[%c0_20, %c0_21] : memref<1x32xf32, #tpu.memory_space<vmem>>, vector<1x32xf32>
    %c0_22 = arith.constant 0 : index
    %c0_23 = arith.constant 0 : index
    %12 = vector.load %arg12[%c0_22, %c0_23] : memref<1x32xf32, #tpu.memory_space<vmem>>, vector<1x32xf32>
    %c0_24 = arith.constant 0 : index
    %c0_25 = arith.constant 0 : index
    %13 = vector.load %arg13[%c0_24, %c0_25] : memref<1x32xf32, #tpu.memory_space<vmem>>, vector<1x32xf32>
    %c0_26 = arith.constant 0 : index
    %c0_27 = arith.constant 0 : index
    %14 = vector.load %arg14[%c0_26, %c0_27] : memref<1x32xf32, #tpu.memory_space<vmem>>, vector<1x32xf32>
    %15 = tpu.transpose %1, [1, 0] : vector<8x32xf32> -> vector<32x8xf32>
    %cst = arith.constant dense<0.000000e+00> : vector<96x8xf32>
    %16 = tpu.matmul %3, %15, %cst {dimension_numbers = #tpu.dot_dimension_numbers<[1], [0], [0], [1], [0, 0, 1, 1], [], []>} : vector<96x32xf32>, vector<32x8xf32>, vector<96x8xf32> -> vector<96x8xf32>
    %17 = vector.broadcast %4 : vector<96x1xf32> to vector<96x8xf32>
    %18 = arith.addf %16, %17 : vector<96x8xf32>
    %19 = vector.extract_strided_slice %18 {offsets = [0, 0], sizes = [8, 8], strides = [1, 1]} : vector<96x8xf32> to vector<8x8xf32>
    %cst_28 = arith.constant 0.353553385 : f32
    %20 = vector.broadcast %cst_28 : f32 to vector<8x8xf32>
    %21 = arith.mulf %19, %20 : vector<8x8xf32>
    %22 = vector.extract_strided_slice %18 {offsets = [32, 0], sizes = [8, 8], strides = [1, 1]} : vector<96x8xf32> to vector<8x8xf32>
    %23 = vector.extract_strided_slice %18 {offsets = [64, 0], sizes = [8, 8], strides = [1, 1]} : vector<96x8xf32> to vector<8x8xf32>
    %24 = tpu.transpose %21, [1, 0] : vector<8x8xf32> -> vector<8x8xf32>
    %cst_29 = arith.constant dense<0.000000e+00> : vector<8x8xf32>
    %25 = tpu.matmul %24, %22, %cst_29 {dimension_numbers = #tpu.dot_dimension_numbers<[1], [0], [0], [1], [0, 0, 1, 1], [], []>} : vector<8x8xf32>, vector<8x8xf32>, vector<8x8xf32> -> vector<8x8xf32>
    %26 = arith.addf %25, %2 : vector<8x8xf32>
    %cst_30 = arith.constant dense<0xFF800000> : vector<8xf32>
    %27 = vector.multi_reduction <maximumf>, %26, %cst_30 [1] : vector<8x8xf32> to vector<8xf32>
    %28 = vector.shape_cast %27 : vector<8xf32> to vector<8x1xf32>
    %29 = vector.broadcast %28 : vector<8x1xf32> to vector<8x8xf32>
    %30 = arith.subf %26, %29 : vector<8x8xf32>
    %31 = math.exp %30 : vector<8x8xf32>
    %cst_31 = arith.constant dense<0.000000e+00> : vector<8xf32>
    %32 = vector.multi_reduction <add>, %31, %cst_31 [1] : vector<8x8xf32> to vector<8xf32>
    %33 = vector.shape_cast %32 : vector<8xf32> to vector<8x1xf32>
    %34 = tpu.reciprocal %33 {approx = true} : vector<8x1xf32> -> vector<8x1xf32>
    %35 = vector.broadcast %34 : vector<8x1xf32> to vector<8x8xf32>
    %36 = arith.mulf %31, %35 : vector<8x8xf32>
    %37 = tpu.transpose %36, [1, 0] : vector<8x8xf32> -> vector<8x8xf32>
    %cst_32 = arith.constant dense<0.000000e+00> : vector<8x8xf32>
    %38 = tpu.matmul %23, %37, %cst_32 {dimension_numbers = #tpu.dot_dimension_numbers<[1], [0], [0], [1], [0, 0, 1, 1], [], []>} : vector<8x8xf32>, vector<8x8xf32>, vector<8x8xf32> -> vector<8x8xf32>
    %39 = vector.extract_strided_slice %18 {offsets = [8, 0], sizes = [8, 8], strides = [1, 1]} : vector<96x8xf32> to vector<8x8xf32>
    %cst_33 = arith.constant 0.353553385 : f32
    %40 = vector.broadcast %cst_33 : f32 to vector<8x8xf32>
    %41 = arith.mulf %39, %40 : vector<8x8xf32>
    %42 = vector.extract_strided_slice %18 {offsets = [40, 0], sizes = [8, 8], strides = [1, 1]} : vector<96x8xf32> to vector<8x8xf32>
    %43 = vector.extract_strided_slice %18 {offsets = [72, 0], sizes = [8, 8], strides = [1, 1]} : vector<96x8xf32> to vector<8x8xf32>
    %44 = tpu.transpose %41, [1, 0] : vector<8x8xf32> -> vector<8x8xf32>
    %cst_34 = arith.constant dense<0.000000e+00> : vector<8x8xf32>
    %45 = tpu.matmul %44, %42, %cst_34 {dimension_numbers = #tpu.dot_dimension_numbers<[1], [0], [0], [1], [0, 0, 1, 1], [], []>} : vector<8x8xf32>, vector<8x8xf32>, vector<8x8xf32> -> vector<8x8xf32>
    %46 = arith.addf %45, %2 : vector<8x8xf32>
    %cst_35 = arith.constant dense<0xFF800000> : vector<8xf32>
    %47 = vector.multi_reduction <maximumf>, %46, %cst_35 [1] : vector<8x8xf32> to vector<8xf32>
    %48 = vector.shape_cast %47 : vector<8xf32> to vector<8x1xf32>
    %49 = vector.broadcast %48 : vector<8x1xf32> to vector<8x8xf32>
    %50 = arith.subf %46, %49 : vector<8x8xf32>
    %51 = math.exp %50 : vector<8x8xf32>
    %cst_36 = arith.constant dense<0.000000e+00> : vector<8xf32>
    %52 = vector.multi_reduction <add>, %51, %cst_36 [1] : vector<8x8xf32> to vector<8xf32>
    %53 = vector.shape_cast %52 : vector<8xf32> to vector<8x1xf32>
    %54 = tpu.reciprocal %53 {approx = true} : vector<8x1xf32> -> vector<8x1xf32>
    %55 = vector.broadcast %54 : vector<8x1xf32> to vector<8x8xf32>
    %56 = arith.mulf %51, %55 : vector<8x8xf32>
    %57 = tpu.transpose %56, [1, 0] : vector<8x8xf32> -> vector<8x8xf32>
    %cst_37 = arith.constant dense<0.000000e+00> : vector<8x8xf32>
    %58 = tpu.matmul %43, %57, %cst_37 {dimension_numbers = #tpu.dot_dimension_numbers<[1], [0], [0], [1], [0, 0, 1, 1], [], []>} : vector<8x8xf32>, vector<8x8xf32>, vector<8x8xf32> -> vector<8x8xf32>
    %59 = vector.extract_strided_slice %18 {offsets = [16, 0], sizes = [8, 8], strides = [1, 1]} : vector<96x8xf32> to vector<8x8xf32>
    %cst_38 = arith.constant 0.353553385 : f32
    %60 = vector.broadcast %cst_38 : f32 to vector<8x8xf32>
    %61 = arith.mulf %59, %60 : vector<8x8xf32>
    %62 = vector.extract_strided_slice %18 {offsets = [48, 0], sizes = [8, 8], strides = [1, 1]} : vector<96x8xf32> to vector<8x8xf32>
    %63 = vector.extract_strided_slice %18 {offsets = [80, 0], sizes = [8, 8], strides = [1, 1]} : vector<96x8xf32> to vector<8x8xf32>
    %64 = tpu.transpose %61, [1, 0] : vector<8x8xf32> -> vector<8x8xf32>
    %cst_39 = arith.constant dense<0.000000e+00> : vector<8x8xf32>
    %65 = tpu.matmul %64, %62, %cst_39 {dimension_numbers = #tpu.dot_dimension_numbers<[1], [0], [0], [1], [0, 0, 1, 1], [], []>} : vector<8x8xf32>, vector<8x8xf32>, vector<8x8xf32> -> vector<8x8xf32>
    %66 = arith.addf %65, %2 : vector<8x8xf32>
    %cst_40 = arith.constant dense<0xFF800000> : vector<8xf32>
    %67 = vector.multi_reduction <maximumf>, %66, %cst_40 [1] : vector<8x8xf32> to vector<8xf32>
    %68 = vector.shape_cast %67 : vector<8xf32> to vector<8x1xf32>
    %69 = vector.broadcast %68 : vector<8x1xf32> to vector<8x8xf32>
    %70 = arith.subf %66, %69 : vector<8x8xf32>
    %71 = math.exp %70 : vector<8x8xf32>
    %cst_41 = arith.constant dense<0.000000e+00> : vector<8xf32>
    %72 = vector.multi_reduction <add>, %71, %cst_41 [1] : vector<8x8xf32> to vector<8xf32>
    %73 = vector.shape_cast %72 : vector<8xf32> to vector<8x1xf32>
    %74 = tpu.reciprocal %73 {approx = true} : vector<8x1xf32> -> vector<8x1xf32>
    %75 = vector.broadcast %74 : vector<8x1xf32> to vector<8x8xf32>
    %76 = arith.mulf %71, %75 : vector<8x8xf32>
    %77 = tpu.transpose %76, [1, 0] : vector<8x8xf32> -> vector<8x8xf32>
    %cst_42 = arith.constant dense<0.000000e+00> : vector<8x8xf32>
    %78 = tpu.matmul %63, %77, %cst_42 {dimension_numbers = #tpu.dot_dimension_numbers<[1], [0], [0], [1], [0, 0, 1, 1], [], []>} : vector<8x8xf32>, vector<8x8xf32>, vector<8x8xf32> -> vector<8x8xf32>
    %79 = vector.extract_strided_slice %18 {offsets = [24, 0], sizes = [8, 8], strides = [1, 1]} : vector<96x8xf32> to vector<8x8xf32>
    %cst_43 = arith.constant 0.353553385 : f32
    %80 = vector.broadcast %cst_43 : f32 to vector<8x8xf32>
    %81 = arith.mulf %79, %80 : vector<8x8xf32>
    %82 = vector.extract_strided_slice %18 {offsets = [56, 0], sizes = [8, 8], strides = [1, 1]} : vector<96x8xf32> to vector<8x8xf32>
    %83 = vector.extract_strided_slice %18 {offsets = [88, 0], sizes = [8, 8], strides = [1, 1]} : vector<96x8xf32> to vector<8x8xf32>
    %84 = tpu.transpose %81, [1, 0] : vector<8x8xf32> -> vector<8x8xf32>
    %cst_44 = arith.constant dense<0.000000e+00> : vector<8x8xf32>
    %85 = tpu.matmul %84, %82, %cst_44 {dimension_numbers = #tpu.dot_dimension_numbers<[1], [0], [0], [1], [0, 0, 1, 1], [], []>} : vector<8x8xf32>, vector<8x8xf32>, vector<8x8xf32> -> vector<8x8xf32>
    %86 = arith.addf %85, %2 : vector<8x8xf32>
    %cst_45 = arith.constant dense<0xFF800000> : vector<8xf32>
    %87 = vector.multi_reduction <maximumf>, %86, %cst_45 [1] : vector<8x8xf32> to vector<8xf32>
    %88 = vector.shape_cast %87 : vector<8xf32> to vector<8x1xf32>
    %89 = vector.broadcast %88 : vector<8x1xf32> to vector<8x8xf32>
    %90 = arith.subf %86, %89 : vector<8x8xf32>
    %91 = math.exp %90 : vector<8x8xf32>
    %cst_46 = arith.constant dense<0.000000e+00> : vector<8xf32>
    %92 = vector.multi_reduction <add>, %91, %cst_46 [1] : vector<8x8xf32> to vector<8xf32>
    %93 = vector.shape_cast %92 : vector<8xf32> to vector<8x1xf32>
    %94 = tpu.reciprocal %93 {approx = true} : vector<8x1xf32> -> vector<8x1xf32>
    %95 = vector.broadcast %94 : vector<8x1xf32> to vector<8x8xf32>
    %96 = arith.mulf %91, %95 : vector<8x8xf32>
    %97 = tpu.transpose %96, [1, 0] : vector<8x8xf32> -> vector<8x8xf32>
    %cst_47 = arith.constant dense<0.000000e+00> : vector<8x8xf32>
    %98 = tpu.matmul %83, %97, %cst_47 {dimension_numbers = #tpu.dot_dimension_numbers<[1], [0], [0], [1], [0, 0, 1, 1], [], []>} : vector<8x8xf32>, vector<8x8xf32>, vector<8x8xf32> -> vector<8x8xf32>
    %99 = tpu.concatenate %38, %58, %78, %98 in 0 : vector<8x8xf32>, vector<8x8xf32>, vector<8x8xf32>, vector<8x8xf32> -> vector<32x8xf32>
    %100 = tpu.transpose %99, [1, 0] : vector<32x8xf32> -> vector<8x32xf32>
    %cst_48 = arith.constant dense<0.000000e+00> : vector<8x32xf32>
    %101 = tpu.matmul %100, %5, %cst_48 {dimension_numbers = #tpu.dot_dimension_numbers<[1], [0], [0], [1], [0, 0, 1, 1], [], []>} : vector<8x32xf32>, vector<32x32xf32>, vector<8x32xf32> -> vector<8x32xf32>
    %102 = vector.broadcast %6 : vector<1x32xf32> to vector<8x32xf32>
    %103 = arith.addf %101, %102 : vector<8x32xf32>
    %104 = arith.addf %1, %103 : vector<8x32xf32>
    %cst_49 = arith.constant dense<0.000000e+00> : vector<8xf32>
    %105 = vector.multi_reduction <add>, %104, %cst_49 [1] : vector<8x32xf32> to vector<8xf32>
    %106 = vector.shape_cast %105 : vector<8xf32> to vector<8x1xf32>
    %cst_50 = arith.constant 3.200000e+01 : f32
    %107 = vector.broadcast %cst_50 : f32 to vector<8x1xf32>
    %108 = arith.divf %106, %107 : vector<8x1xf32>
    %109 = vector.broadcast %108 : vector<8x1xf32> to vector<8x32xf32>
    %110 = arith.subf %104, %109 : vector<8x32xf32>
    %111 = arith.mulf %110, %110 : vector<8x32xf32>
    %cst_51 = arith.constant dense<0.000000e+00> : vector<8xf32>
    %112 = vector.multi_reduction <add>, %111, %cst_51 [1] : vector<8x32xf32> to vector<8xf32>
    %113 = vector.shape_cast %112 : vector<8xf32> to vector<8x1xf32>
    %cst_52 = arith.constant 3.200000e+01 : f32
    %114 = vector.broadcast %cst_52 : f32 to vector<8x1xf32>
    %115 = arith.divf %113, %114 : vector<8x1xf32>
    %116 = vector.broadcast %108 : vector<8x1xf32> to vector<8x32xf32>
    %117 = arith.subf %104, %116 : vector<8x32xf32>
    %cst_53 = arith.constant 9.99999974E-6 : f32
    %118 = vector.broadcast %cst_53 : f32 to vector<8x1xf32>
    %119 = arith.addf %115, %118 : vector<8x1xf32>
    %120 = math.rsqrt %119 : vector<8x1xf32>
    %121 = vector.broadcast %120 : vector<8x1xf32> to vector<8x32xf32>
    %122 = arith.mulf %117, %121 : vector<8x32xf32>
    %123 = vector.broadcast %11 : vector<1x32xf32> to vector<8x32xf32>
    %124 = arith.mulf %122, %123 : vector<8x32xf32>
    %125 = vector.broadcast %12 : vector<1x32xf32> to vector<8x32xf32>
    %126 = arith.addf %124, %125 : vector<8x32xf32>
    %cst_54 = arith.constant dense<0.000000e+00> : vector<8x64xf32>
    %127 = tpu.matmul %126, %7, %cst_54 {dimension_numbers = #tpu.dot_dimension_numbers<[1], [0], [0], [1], [0, 0, 1, 1], [], []>} : vector<8x32xf32>, vector<32x64xf32>, vector<8x64xf32> -> vector<8x64xf32>
    %128 = vector.broadcast %8 : vector<1x64xf32> to vector<8x64xf32>
    %129 = arith.addf %127, %128 : vector<8x64xf32>
    %cst_55 = arith.constant 0.000000e+00 : f32
    %130 = vector.broadcast %cst_55 : f32 to vector<8x64xf32>
    %131 = arith.maximumf %129, %130 : vector<8x64xf32>
    %cst_56 = arith.constant dense<0.000000e+00> : vector<8x32xf32>
    %132 = tpu.matmul %131, %9, %cst_56 {dimension_numbers = #tpu.dot_dimension_numbers<[1], [0], [0], [1], [0, 0, 1, 1], [], []>} : vector<8x64xf32>, vector<64x32xf32>, vector<8x32xf32> -> vector<8x32xf32>
    %133 = vector.broadcast %10 : vector<1x32xf32> to vector<8x32xf32>
    %134 = arith.addf %132, %133 : vector<8x32xf32>
    %135 = arith.addf %126, %134 : vector<8x32xf32>
    %cst_57 = arith.constant dense<0.000000e+00> : vector<8xf32>
    %136 = vector.multi_reduction <add>, %135, %cst_57 [1] : vector<8x32xf32> to vector<8xf32>
    %137 = vector.shape_cast %136 : vector<8xf32> to vector<8x1xf32>
    %cst_58 = arith.constant 3.200000e+01 : f32
    %138 = vector.broadcast %cst_58 : f32 to vector<8x1xf32>
    %139 = arith.divf %137, %138 : vector<8x1xf32>
    %140 = vector.broadcast %139 : vector<8x1xf32> to vector<8x32xf32>
    %141 = arith.subf %135, %140 : vector<8x32xf32>
    %142 = arith.mulf %141, %141 : vector<8x32xf32>
    %cst_59 = arith.constant dense<0.000000e+00> : vector<8xf32>
    %143 = vector.multi_reduction <add>, %142, %cst_59 [1] : vector<8x32xf32> to vector<8xf32>
    %144 = vector.shape_cast %143 : vector<8xf32> to vector<8x1xf32>
    %cst_60 = arith.constant 3.200000e+01 : f32
    %145 = vector.broadcast %cst_60 : f32 to vector<8x1xf32>
    %146 = arith.divf %144, %145 : vector<8x1xf32>
    %147 = vector.broadcast %139 : vector<8x1xf32> to vector<8x32xf32>
    %148 = arith.subf %135, %147 : vector<8x32xf32>
    %cst_61 = arith.constant 9.99999974E-6 : f32
    %149 = vector.broadcast %cst_61 : f32 to vector<8x1xf32>
    %150 = arith.addf %146, %149 : vector<8x1xf32>
    %151 = math.rsqrt %150 : vector<8x1xf32>
    %152 = vector.broadcast %151 : vector<8x1xf32> to vector<8x32xf32>
    %153 = arith.mulf %148, %152 : vector<8x32xf32>
    %154 = vector.broadcast %13 : vector<1x32xf32> to vector<8x32xf32>
    %155 = arith.mulf %153, %154 : vector<8x32xf32>
    %156 = vector.broadcast %14 : vector<1x32xf32> to vector<8x32xf32>
    %157 = arith.addf %155, %156 : vector<8x32xf32>
    %158 = tpu.transpose %157, [1, 0] : vector<8x32xf32> -> vector<32x8xf32>
    %cst_62 = arith.constant dense<0.000000e+00> : vector<96x8xf32>
    %159 = tpu.matmul %3, %158, %cst_62 {dimension_numbers = #tpu.dot_dimension_numbers<[1], [0], [0], [1], [0, 0, 1, 1], [], []>} : vector<96x32xf32>, vector<32x8xf32>, vector<96x8xf32> -> vector<96x8xf32>
    %160 = vector.broadcast %4 : vector<96x1xf32> to vector<96x8xf32>
    %161 = arith.addf %159, %160 : vector<96x8xf32>
    %162 = vector.extract_strided_slice %161 {offsets = [0, 0], sizes = [8, 8], strides = [1, 1]} : vector<96x8xf32> to vector<8x8xf32>
    %cst_63 = arith.constant 0.353553385 : f32
    %163 = vector.broadcast %cst_63 : f32 to vector<8x8xf32>
    %164 = arith.mulf %162, %163 : vector<8x8xf32>
    %165 = vector.extract_strided_slice %161 {offsets = [32, 0], sizes = [8, 8], strides = [1, 1]} : vector<96x8xf32> to vector<8x8xf32>
    %166 = vector.extract_strided_slice %161 {offsets = [64, 0], sizes = [8, 8], strides = [1, 1]} : vector<96x8xf32> to vector<8x8xf32>
    %167 = tpu.transpose %164, [1, 0] : vector<8x8xf32> -> vector<8x8xf32>
    %cst_64 = arith.constant dense<0.000000e+00> : vector<8x8xf32>
    %168 = tpu.matmul %167, %165, %cst_64 {dimension_numbers = #tpu.dot_dimension_numbers<[1], [0], [0], [1], [0, 0, 1, 1], [], []>} : vector<8x8xf32>, vector<8x8xf32>, vector<8x8xf32> -> vector<8x8xf32>
    %169 = arith.addf %168, %2 : vector<8x8xf32>
    %cst_65 = arith.constant dense<0xFF800000> : vector<8xf32>
    %170 = vector.multi_reduction <maximumf>, %169, %cst_65 [1] : vector<8x8xf32> to vector<8xf32>
    %171 = vector.shape_cast %170 : vector<8xf32> to vector<8x1xf32>
    %172 = vector.broadcast %171 : vector<8x1xf32> to vector<8x8xf32>
    %173 = arith.subf %169, %172 : vector<8x8xf32>
    %174 = math.exp %173 : vector<8x8xf32>
    %cst_66 = arith.constant dense<0.000000e+00> : vector<8xf32>
    %175 = vector.multi_reduction <add>, %174, %cst_66 [1] : vector<8x8xf32> to vector<8xf32>
    %176 = vector.shape_cast %175 : vector<8xf32> to vector<8x1xf32>
    %177 = tpu.reciprocal %176 {approx = true} : vector<8x1xf32> -> vector<8x1xf32>
    %178 = vector.broadcast %177 : vector<8x1xf32> to vector<8x8xf32>
    %179 = arith.mulf %174, %178 : vector<8x8xf32>
    %180 = tpu.transpose %179, [1, 0] : vector<8x8xf32> -> vector<8x8xf32>
    %cst_67 = arith.constant dense<0.000000e+00> : vector<8x8xf32>
    %181 = tpu.matmul %166, %180, %cst_67 {dimension_numbers = #tpu.dot_dimension_numbers<[1], [0], [0], [1], [0, 0, 1, 1], [], []>} : vector<8x8xf32>, vector<8x8xf32>, vector<8x8xf32> -> vector<8x8xf32>
    %182 = vector.extract_strided_slice %161 {offsets = [8, 0], sizes = [8, 8], strides = [1, 1]} : vector<96x8xf32> to vector<8x8xf32>
    %cst_68 = arith.constant 0.353553385 : f32
    %183 = vector.broadcast %cst_68 : f32 to vector<8x8xf32>
    %184 = arith.mulf %182, %183 : vector<8x8xf32>
    %185 = vector.extract_strided_slice %161 {offsets = [40, 0], sizes = [8, 8], strides = [1, 1]} : vector<96x8xf32> to vector<8x8xf32>
    %186 = vector.extract_strided_slice %161 {offsets = [72, 0], sizes = [8, 8], strides = [1, 1]} : vector<96x8xf32> to vector<8x8xf32>
    %187 = tpu.transpose %184, [1, 0] : vector<8x8xf32> -> vector<8x8xf32>
    %cst_69 = arith.constant dense<0.000000e+00> : vector<8x8xf32>
    %188 = tpu.matmul %187, %185, %cst_69 {dimension_numbers = #tpu.dot_dimension_numbers<[1], [0], [0], [1], [0, 0, 1, 1], [], []>} : vector<8x8xf32>, vector<8x8xf32>, vector<8x8xf32> -> vector<8x8xf32>
    %189 = arith.addf %188, %2 : vector<8x8xf32>
    %cst_70 = arith.constant dense<0xFF800000> : vector<8xf32>
    %190 = vector.multi_reduction <maximumf>, %189, %cst_70 [1] : vector<8x8xf32> to vector<8xf32>
    %191 = vector.shape_cast %190 : vector<8xf32> to vector<8x1xf32>
    %192 = vector.broadcast %191 : vector<8x1xf32> to vector<8x8xf32>
    %193 = arith.subf %189, %192 : vector<8x8xf32>
    %194 = math.exp %193 : vector<8x8xf32>
    %cst_71 = arith.constant dense<0.000000e+00> : vector<8xf32>
    %195 = vector.multi_reduction <add>, %194, %cst_71 [1] : vector<8x8xf32> to vector<8xf32>
    %196 = vector.shape_cast %195 : vector<8xf32> to vector<8x1xf32>
    %197 = tpu.reciprocal %196 {approx = true} : vector<8x1xf32> -> vector<8x1xf32>
    %198 = vector.broadcast %197 : vector<8x1xf32> to vector<8x8xf32>
    %199 = arith.mulf %194, %198 : vector<8x8xf32>
    %200 = tpu.transpose %199, [1, 0] : vector<8x8xf32> -> vector<8x8xf32>
    %cst_72 = arith.constant dense<0.000000e+00> : vector<8x8xf32>
    %201 = tpu.matmul %186, %200, %cst_72 {dimension_numbers = #tpu.dot_dimension_numbers<[1], [0], [0], [1], [0, 0, 1, 1], [], []>} : vector<8x8xf32>, vector<8x8xf32>, vector<8x8xf32> -> vector<8x8xf32>
    %202 = vector.extract_strided_slice %161 {offsets = [16, 0], sizes = [8, 8], strides = [1, 1]} : vector<96x8xf32> to vector<8x8xf32>
    %cst_73 = arith.constant 0.353553385 : f32
    %203 = vector.broadcast %cst_73 : f32 to vector<8x8xf32>
    %204 = arith.mulf %202, %203 : vector<8x8xf32>
    %205 = vector.extract_strided_slice %161 {offsets = [48, 0], sizes = [8, 8], strides = [1, 1]} : vector<96x8xf32> to vector<8x8xf32>
    %206 = vector.extract_strided_slice %161 {offsets = [80, 0], sizes = [8, 8], strides = [1, 1]} : vector<96x8xf32> to vector<8x8xf32>
    %207 = tpu.transpose %204, [1, 0] : vector<8x8xf32> -> vector<8x8xf32>
    %cst_74 = arith.constant dense<0.000000e+00> : vector<8x8xf32>
    %208 = tpu.matmul %207, %205, %cst_74 {dimension_numbers = #tpu.dot_dimension_numbers<[1], [0], [0], [1], [0, 0, 1, 1], [], []>} : vector<8x8xf32>, vector<8x8xf32>, vector<8x8xf32> -> vector<8x8xf32>
    %209 = arith.addf %208, %2 : vector<8x8xf32>
    %cst_75 = arith.constant dense<0xFF800000> : vector<8xf32>
    %210 = vector.multi_reduction <maximumf>, %209, %cst_75 [1] : vector<8x8xf32> to vector<8xf32>
    %211 = vector.shape_cast %210 : vector<8xf32> to vector<8x1xf32>
    %212 = vector.broadcast %211 : vector<8x1xf32> to vector<8x8xf32>
    %213 = arith.subf %209, %212 : vector<8x8xf32>
    %214 = math.exp %213 : vector<8x8xf32>
    %cst_76 = arith.constant dense<0.000000e+00> : vector<8xf32>
    %215 = vector.multi_reduction <add>, %214, %cst_76 [1] : vector<8x8xf32> to vector<8xf32>
    %216 = vector.shape_cast %215 : vector<8xf32> to vector<8x1xf32>
    %217 = tpu.reciprocal %216 {approx = true} : vector<8x1xf32> -> vector<8x1xf32>
    %218 = vector.broadcast %217 : vector<8x1xf32> to vector<8x8xf32>
    %219 = arith.mulf %214, %218 : vector<8x8xf32>
    %220 = tpu.transpose %219, [1, 0] : vector<8x8xf32> -> vector<8x8xf32>
    %cst_77 = arith.constant dense<0.000000e+00> : vector<8x8xf32>
    %221 = tpu.matmul %206, %220, %cst_77 {dimension_numbers = #tpu.dot_dimension_numbers<[1], [0], [0], [1], [0, 0, 1, 1], [], []>} : vector<8x8xf32>, vector<8x8xf32>, vector<8x8xf32> -> vector<8x8xf32>
    %222 = vector.extract_strided_slice %161 {offsets = [24, 0], sizes = [8, 8], strides = [1, 1]} : vector<96x8xf32> to vector<8x8xf32>
    %cst_78 = arith.constant 0.353553385 : f32
    %223 = vector.broadcast %cst_78 : f32 to vector<8x8xf32>
    %224 = arith.mulf %222, %223 : vector<8x8xf32>
    %225 = vector.extract_strided_slice %161 {offsets = [56, 0], sizes = [8, 8], strides = [1, 1]} : vector<96x8xf32> to vector<8x8xf32>
    %226 = vector.extract_strided_slice %161 {offsets = [88, 0], sizes = [8, 8], strides = [1, 1]} : vector<96x8xf32> to vector<8x8xf32>
    %227 = tpu.transpose %224, [1, 0] : vector<8x8xf32> -> vector<8x8xf32>
    %cst_79 = arith.constant dense<0.000000e+00> : vector<8x8xf32>
    %228 = tpu.matmul %227, %225, %cst_79 {dimension_numbers = #tpu.dot_dimension_numbers<[1], [0], [0], [1], [0, 0, 1, 1], [], []>} : vector<8x8xf32>, vector<8x8xf32>, vector<8x8xf32> -> vector<8x8xf32>
    %229 = arith.addf %228, %2 : vector<8x8xf32>
    %cst_80 = arith.constant dense<0xFF800000> : vector<8xf32>
    %230 = vector.multi_reduction <maximumf>, %229, %cst_80 [1] : vector<8x8xf32> to vector<8xf32>
    %231 = vector.shape_cast %230 : vector<8xf32> to vector<8x1xf32>
    %232 = vector.broadcast %231 : vector<8x1xf32> to vector<8x8xf32>
    %233 = arith.subf %229, %232 : vector<8x8xf32>
    %234 = math.exp %233 : vector<8x8xf32>
    %cst_81 = arith.constant dense<0.000000e+00> : vector<8xf32>
    %235 = vector.multi_reduction <add>, %234, %cst_81 [1] : vector<8x8xf32> to vector<8xf32>
    %236 = vector.shape_cast %235 : vector<8xf32> to vector<8x1xf32>
    %237 = tpu.reciprocal %236 {approx = true} : vector<8x1xf32> -> vector<8x1xf32>
    %238 = vector.broadcast %237 : vector<8x1xf32> to vector<8x8xf32>
    %239 = arith.mulf %234, %238 : vector<8x8xf32>
    %240 = tpu.transpose %239, [1, 0] : vector<8x8xf32> -> vector<8x8xf32>
    %cst_82 = arith.constant dense<0.000000e+00> : vector<8x8xf32>
    %241 = tpu.matmul %226, %240, %cst_82 {dimension_numbers = #tpu.dot_dimension_numbers<[1], [0], [0], [1], [0, 0, 1, 1], [], []>} : vector<8x8xf32>, vector<8x8xf32>, vector<8x8xf32> -> vector<8x8xf32>
    %242 = tpu.concatenate %181, %201, %221, %241 in 0 : vector<8x8xf32>, vector<8x8xf32>, vector<8x8xf32>, vector<8x8xf32> -> vector<32x8xf32>
    %243 = tpu.transpose %242, [1, 0] : vector<32x8xf32> -> vector<8x32xf32>
    %cst_83 = arith.constant dense<0.000000e+00> : vector<8x32xf32>
    %244 = tpu.matmul %243, %5, %cst_83 {dimension_numbers = #tpu.dot_dimension_numbers<[1], [0], [0], [1], [0, 0, 1, 1], [], []>} : vector<8x32xf32>, vector<32x32xf32>, vector<8x32xf32> -> vector<8x32xf32>
    %245 = vector.broadcast %6 : vector<1x32xf32> to vector<8x32xf32>
    %246 = arith.addf %244, %245 : vector<8x32xf32>
    %247 = arith.addf %157, %246 : vector<8x32xf32>
    %cst_84 = arith.constant dense<0.000000e+00> : vector<8xf32>
    %248 = vector.multi_reduction <add>, %247, %cst_84 [1] : vector<8x32xf32> to vector<8xf32>
    %249 = vector.shape_cast %248 : vector<8xf32> to vector<8x1xf32>
    %cst_85 = arith.constant 3.200000e+01 : f32
    %250 = vector.broadcast %cst_85 : f32 to vector<8x1xf32>
    %251 = arith.divf %249, %250 : vector<8x1xf32>
    %252 = vector.broadcast %251 : vector<8x1xf32> to vector<8x32xf32>
    %253 = arith.subf %247, %252 : vector<8x32xf32>
    %254 = arith.mulf %253, %253 : vector<8x32xf32>
    %cst_86 = arith.constant dense<0.000000e+00> : vector<8xf32>
    %255 = vector.multi_reduction <add>, %254, %cst_86 [1] : vector<8x32xf32> to vector<8xf32>
    %256 = vector.shape_cast %255 : vector<8xf32> to vector<8x1xf32>
    %cst_87 = arith.constant 3.200000e+01 : f32
    %257 = vector.broadcast %cst_87 : f32 to vector<8x1xf32>
    %258 = arith.divf %256, %257 : vector<8x1xf32>
    %259 = vector.broadcast %251 : vector<8x1xf32> to vector<8x32xf32>
    %260 = arith.subf %247, %259 : vector<8x32xf32>
    %cst_88 = arith.constant 9.99999974E-6 : f32
    %261 = vector.broadcast %cst_88 : f32 to vector<8x1xf32>
    %262 = arith.addf %258, %261 : vector<8x1xf32>
    %263 = math.rsqrt %262 : vector<8x1xf32>
    %264 = vector.broadcast %263 : vector<8x1xf32> to vector<8x32xf32>
    %265 = arith.mulf %260, %264 : vector<8x32xf32>
    %266 = vector.broadcast %11 : vector<1x32xf32> to vector<8x32xf32>
    %267 = arith.mulf %265, %266 : vector<8x32xf32>
    %268 = vector.broadcast %12 : vector<1x32xf32> to vector<8x32xf32>
    %269 = arith.addf %267, %268 : vector<8x32xf32>
    %cst_89 = arith.constant dense<0.000000e+00> : vector<8x64xf32>
    %270 = tpu.matmul %269, %7, %cst_89 {dimension_numbers = #tpu.dot_dimension_numbers<[1], [0], [0], [1], [0, 0, 1, 1], [], []>} : vector<8x32xf32>, vector<32x64xf32>, vector<8x64xf32> -> vector<8x64xf32>
    %271 = vector.broadcast %8 : vector<1x64xf32> to vector<8x64xf32>
    %272 = arith.addf %270, %271 : vector<8x64xf32>
    %cst_90 = arith.constant 0.000000e+00 : f32
    %273 = vector.broadcast %cst_90 : f32 to vector<8x64xf32>
    %274 = arith.maximumf %272, %273 : vector<8x64xf32>
    %cst_91 = arith.constant dense<0.000000e+00> : vector<8x32xf32>
    %275 = tpu.matmul %274, %9, %cst_91 {dimension_numbers = #tpu.dot_dimension_numbers<[1], [0], [0], [1], [0, 0, 1, 1], [], []>} : vector<8x64xf32>, vector<64x32xf32>, vector<8x32xf32> -> vector<8x32xf32>
    %276 = vector.broadcast %10 : vector<1x32xf32> to vector<8x32xf32>
    %277 = arith.addf %275, %276 : vector<8x32xf32>
    %278 = arith.addf %269, %277 : vector<8x32xf32>
    %cst_92 = arith.constant dense<0.000000e+00> : vector<8xf32>
    %279 = vector.multi_reduction <add>, %278, %cst_92 [1] : vector<8x32xf32> to vector<8xf32>
    %280 = vector.shape_cast %279 : vector<8xf32> to vector<8x1xf32>
    %cst_93 = arith.constant 3.200000e+01 : f32
    %281 = vector.broadcast %cst_93 : f32 to vector<8x1xf32>
    %282 = arith.divf %280, %281 : vector<8x1xf32>
    %283 = vector.broadcast %282 : vector<8x1xf32> to vector<8x32xf32>
    %284 = arith.subf %278, %283 : vector<8x32xf32>
    %285 = arith.mulf %284, %284 : vector<8x32xf32>
    %cst_94 = arith.constant dense<0.000000e+00> : vector<8xf32>
    %286 = vector.multi_reduction <add>, %285, %cst_94 [1] : vector<8x32xf32> to vector<8xf32>
    %287 = vector.shape_cast %286 : vector<8xf32> to vector<8x1xf32>
    %cst_95 = arith.constant 3.200000e+01 : f32
    %288 = vector.broadcast %cst_95 : f32 to vector<8x1xf32>
    %289 = arith.divf %287, %288 : vector<8x1xf32>
    %290 = vector.broadcast %282 : vector<8x1xf32> to vector<8x32xf32>
    %291 = arith.subf %278, %290 : vector<8x32xf32>
    %cst_96 = arith.constant 9.99999974E-6 : f32
    %292 = vector.broadcast %cst_96 : f32 to vector<8x1xf32>
    %293 = arith.addf %289, %292 : vector<8x1xf32>
    %294 = math.rsqrt %293 : vector<8x1xf32>
    %295 = vector.broadcast %294 : vector<8x1xf32> to vector<8x32xf32>
    %296 = arith.mulf %291, %295 : vector<8x32xf32>
    %297 = vector.broadcast %13 : vector<1x32xf32> to vector<8x32xf32>
    %298 = arith.mulf %296, %297 : vector<8x32xf32>
    %299 = vector.broadcast %14 : vector<1x32xf32> to vector<8x32xf32>
    %300 = arith.addf %298, %299 : vector<8x32xf32>
    %c0_97 = arith.constant 0 : index
    %c0_98 = arith.constant 0 : index
    %c0_99 = arith.constant 0 : index
    %301 = vector.load %arg15[%c0_97, %c0_98, %c0_99] : memref<1x8x32xf32, #tpu.memory_space<vmem>>, vector<1x8x32xf32>
    %302 = vector.shape_cast %301 : vector<1x8x32xf32> to vector<8x32xf32>
    %303 = vector.shape_cast %300 : vector<8x32xf32> to vector<1x8x32xf32>
    tpu.vector_store %arg15[%c0_97, %c0_98, %c0_99], %303 {strides = array<i32>} : memref<1x8x32xf32, #tpu.memory_space<vmem>>, vector<1x8x32xf32>,
    return
  }
  func.func @transform_0(%arg0: i32) -> (i32, i32, i32) {
    %c0_i32 = arith.constant 0 : i32
    %c0_i32_0 = arith.constant 0 : i32
    %c0_i32_1 = arith.constant 0 : i32
    return %arg0, %c0_i32, %c0_i32_0 : i32, i32, i32
  }
  func.func @transform_1(%arg0: i32) -> (i32, i32) {
    %c0_i32 = arith.constant 0 : i32
    %c0_i32_0 = arith.constant 0 : i32
    %c0_i32_1 = arith.constant 0 : i32
    return %c0_i32, %c0_i32_0 : i32, i32
  }
  func.func @transform_2(%arg0: i32) -> (i32, i32) {
    %c0_i32 = arith.constant 0 : i32
    %c0_i32_0 = arith.constant 0 : i32
    %c0_i32_1 = arith.constant 0 : i32
    return %c0_i32, %c0_i32_0 : i32, i32
  }
  func.func @transform_3(%arg0: i32) -> (i32, i32) {
    %c0_i32 = arith.constant 0 : i32
    %c0_i32_0 = arith.constant 0 : i32
    %c0_i32_1 = arith.constant 0 : i32
    return %c0_i32, %c0_i32_0 : i32, i32
  }
  func.func @transform_4(%arg0: i32) -> (i32, i32) {
    %c0_i32 = arith.constant 0 : i32
    %c0_i32_0 = arith.constant 0 : i32
    %c0_i32_1 = arith.constant 0 : i32
    return %c0_i32, %c0_i32_0 : i32, i32
  }
  func.func @transform_5(%arg0: i32) -> (i32, i32) {
    %c0_i32 = arith.constant 0 : i32
    %c0_i32_0 = arith.constant 0 : i32
    %c0_i32_1 = arith.constant 0 : i32
    return %c0_i32, %c0_i32_0 : i32, i32
  }
  func.func @transform_6(%arg0: i32) -> (i32, i32) {
    %c0_i32 = arith.constant 0 : i32
    %c0_i32_0 = arith.constant 0 : i32
    %c0_i32_1 = arith.constant 0 : i32
    return %c0_i32, %c0_i32_0 : i32, i32
  }
  func.func @transform_7(%arg0: i32) -> (i32, i32) {
    %c0_i32 = arith.constant 0 : i32
    %c0_i32_0 = arith.constant 0 : i32
    %c0_i32_1 = arith.constant 0 : i32
    return %c0_i32, %c0_i32_0 : i32, i32
  }
  func.func @transform_8(%arg0: i32) -> (i32, i32) {
    %c0_i32 = arith.constant 0 : i32
    %c0_i32_0 = arith.constant 0 : i32
    %c0_i32_1 = arith.constant 0 : i32
    return %c0_i32, %c0_i32_0 : i32, i32
  }
  func.func @transform_9(%arg0: i32) -> (i32, i32) {
    %c0_i32 = arith.constant 0 : i32
    %c0_i32_0 = arith.constant 0 : i32
    %c0_i32_1 = arith.constant 0 : i32
    return %c0_i32, %c0_i32_0 : i32, i32
  }
  func.func @transform_10(%arg0: i32) -> (i32, i32) {
    %c0_i32 = arith.constant 0 : i32
    %c0_i32_0 = arith.constant 0 : i32
    %c0_i32_1 = arith.constant 0 : i32
    return %c0_i32, %c0_i32_0 : i32, i32
  }
  func.func @transform_11(%arg0: i32) -> (i32, i32) {
    %c0_i32 = arith.constant 0 : i32
    %c0_i32_0 = arith.constant 0 : i32
    %c0_i32_1 = arith.constant 0 : i32
    return %c0_i32, %c0_i32_0 : i32, i32
  }
  func.func @transform_12(%arg0: i32) -> (i32, i32) {
    %c0_i32 = arith.constant 0 : i32
    %c0_i32_0 = arith.constant 0 : i32
    %c0_i32_1 = arith.constant 0 : i32
    return %c0_i32, %c0_i32_0 : i32, i32
  }
  func.func @transform_13(%arg0: i32) -> (i32, i32) {
    %c0_i32 = arith.constant 0 : i32
    %c0_i32_0 = arith.constant 0 : i32
    %c0_i32_1 = arith.constant 0 : i32
    return %c0_i32, %c0_i32_0 : i32, i32
  }
  func.func @transform_14(%arg0: i32) -> (i32, i32, i32) {
    %c0_i32 = arith.constant 0 : i32
    %c0_i32_0 = arith.constant 0 : i32
    %c0_i32_1 = arith.constant 0 : i32
    return %arg0, %c0_i32, %c0_i32_0 : i32, i32, i32
  }
}

</mosaic_0001>

<llo_original>
// kernel: transformer_model_forward.1
$region0: #{transformer_model_forward.1}
  #allocation0 [shape = 'u32[]', space=smem, size = 0x4, offset = 0x4, fixed_abs, tag = 'smem constant byte address 0x4 - core index']
  #allocation1 [shape = 'u32[144,128]{1,0:T(1,128)}', space=vmem, size = 0x12000, scoped, tag = 'internal scratch']
  %s0 = inlined_call_operand.vmem [shape: f32[2,8,32], index: 0, kind: input, shape index: {}]
  %s1 = inlined_call_operand.vmem [shape: f32[8,8], index: 1, kind: input, shape index: {}]
  %s2 = inlined_call_operand.vmem [shape: f32[96,32], index: 2, kind: input, shape index: {}]
  %s3 = inlined_call_operand.vmem [shape: f32[96,1], index: 3, kind: input, shape index: {}]
  %s4 = inlined_call_operand.vmem [shape: f32[32,32], index: 4, kind: input, shape index: {}]
  %s5 = inlined_call_operand.vmem [shape: f32[1,32], index: 5, kind: input, shape index: {}]
  %s6 = inlined_call_operand.vmem [shape: f32[32,64], index: 6, kind: input, shape index: {}]
  %s7 = inlined_call_operand.vmem [shape: f32[1,64], index: 7, kind: input, shape index: {}]
  %s8 = inlined_call_operand.vmem [shape: f32[64,32], index: 8, kind: input, shape index: {}]
  %s9 = inlined_call_operand.vmem [shape: f32[1,32], index: 9, kind: input, shape index: {}]
  %s10 = inlined_call_operand.vmem [shape: f32[1,32], index: 10, kind: input, shape index: {}]
  %s11 = inlined_call_operand.vmem [shape: f32[1,32], index: 11, kind: input, shape index: {}]
  %s12 = inlined_call_operand.vmem [shape: f32[1,32], index: 12, kind: input, shape index: {}]
  %s13 = inlined_call_operand.vmem [shape: f32[1,32], index: 13, kind: input, shape index: {}]
  %s14 = inlined_call_operand.vmem [shape: f32[2,8,32], index: 14, kind: output, shape index: {}]
  %s15 = sld [smem:[#allocation0]]
  $region89: #{transformer_model_forward.1} parent=0
    _
  %s17 = ssub.s32 1, %s15
  %s18 = scalar_select 0, %s17, %s15
  loop: start=0, step=1, limit=4
  $region2: #{transformer_model_forward.1} parent=0 // loop_pre_header
    _
  $region3: #{transformer_model_forward.1} parent=0 // loop_header
    %s20 = sphi 0, %s24
    %p21 = scmp.ge.s32.totalorder %s20, 4
    %s30 = sphi 0, %s32
    %s33 = sphi 0, %s30
    %s34 = sphi 0, %s33
    %s50 = sphi 0, %s34
    %s54 = sphi 0, %s54
    %s56 = sphi 0, %s54
    %s57 = sphi 0, %s56
    %s71 = sphi 0, %s57
    %s75 = sphi 0, %s75
    %s77 = sphi 0, %s75
    %s78 = sphi 0, %s77
    %s92 = sphi 0, %s78
    %s96 = sphi 0, %s96
    %s98 = sphi 0, %s96
    %s99 = sphi 0, %s98
    %s113 = sphi 0, %s99
    %s117 = sphi 0, %s117
    %s119 = sphi 0, %s117
    %s120 = sphi 0, %s119
    %s134 = sphi 0, %s120
    %s138 = sphi 0, %s138
    %s140 = sphi 0, %s138
    %s141 = sphi 0, %s140
    %s155 = sphi 0, %s141
    %s159 = sphi 0, %s159
    %s161 = sphi 0, %s159
    %s162 = sphi 0, %s161
    %s176 = sphi 0, %s162
    %s180 = sphi 0, %s180
    %s182 = sphi 0, %s180
    %s183 = sphi 0, %s182
    %s197 = sphi 0, %s183
    %s201 = sphi 0, %s201
    %s203 = sphi 0, %s201
    %s204 = sphi 0, %s203
    %s218 = sphi 0, %s204
    %s222 = sphi 0, %s222
    %s224 = sphi 0, %s222
    %s225 = sphi 0, %s224
    %s239 = sphi 0, %s225
    %s243 = sphi 0, %s243
    %s245 = sphi 0, %s243
    %s246 = sphi 0, %s245
    %s260 = sphi 0, %s246
    %s264 = sphi 0, %s264
    %s266 = sphi 0, %s264
    %s267 = sphi 0, %s266
    %s281 = sphi 0, %s267
    %s285 = sphi 0, %s285
    %s287 = sphi 0, %s285
    %s288 = sphi 0, %s287
    %s302 = sphi 0, %s288
    %s306 = sphi 0, %s306
    %s308 = sphi 0, %s306
    %s309 = sphi 0, %s308
    %s323 = sphi 0, %s309
    %s329 = sphi 0, %s331
    %s332 = sphi 0, %s329
    %s333 = sphi 0, %s332
    %s349 = sphi 0, %s333
  $region4: #{transformer_model_forward.1} parent=0 // loop_header_branch
    %23 = sbr.rel (%p21) target = $region8
  $region5: #{transformer_model_forward.1} parent=0 // loop_body
    %s25 = ssub.s32 %s20, 1
    %s26 = ssub.s32 %s20, 2
    %s27 = sadd.s32 %s20, 1
    %s28 = ssub.s32 %s20, %s27
    %p29 = scmp.eq.s32.totalorder %s28, 0
    %s31 = sadd.s32 %s30, 1
    %s32 = scalar_select %p29, %s30, %s31
    %p35 = pneg %p29
    %p36 = scmp.eq.s32.totalorder %s20, 1
    %p37 = por %p35, %p36
    %p38 = scmp.ne.s32.totalorder %s30, %s33
    %p39 = scmp.eq.s32.totalorder %s20, 0
    %p40 = por %p38, %p39
    %p41 = scmp.ne.s32.totalorder %s30, %s33
    %p42 = scmp.eq.s32.totalorder %s25, 1
    %p43 = por %p41, %p42
    %p44 = scmp.ne.s32.totalorder %s33, %s34
    %p45 = scmp.eq.s32.totalorder %s25, 0
    %p46 = por %p44, %p45
    %p47 = scmp.ne.s32.totalorder %s33, %s34
    %p48 = scmp.eq.s32.totalorder %s26, 1
    %p49 = por %p47, %p48
    %p51 = scmp.ne.s32.totalorder %s34, %s50
    %p52 = scmp.eq.s32.totalorder %s26, 0
    %p53 = por %p51, %p52
    %s55 = sadd.s32 %s54, 1
    %p58 = scmp.eq.s32.totalorder %s20, 1
    %p59 = scmp.ne.s32.totalorder %s54, %s56
    %p60 = scmp.eq.s32.totalorder %s20, 0
    %p61 = por %p59, %p60
    %p62 = scmp.ne.s32.totalorder %s54, %s56
    %p63 = scmp.eq.s32.totalorder %s25, 1
    %p64 = por %p62, %p63
    %p65 = scmp.ne.s32.totalorder %s56, %s57
    %p66 = scmp.eq.s32.totalorder %s25, 0
    %p67 = por %p65, %p66
    %p68 = scmp.ne.s32.totalorder %s56, %s57
    %p69 = scmp.eq.s32.totalorder %s26, 1
    %p70 = por %p68, %p69
    %p72 = scmp.ne.s32.totalorder %s57, %s71
    %p73 = scmp.eq.s32.totalorder %s26, 0
    %p74 = por %p72, %p73
    %s76 = sadd.s32 %s75, 1
    %p79 = scmp.eq.s32.totalorder %s20, 1
    %p80 = scmp.ne.s32.totalorder %s75, %s77
    %p81 = scmp.eq.s32.totalorder %s20, 0
    %p82 = por %p80, %p81
    %p83 = scmp.ne.s32.totalorder %s75, %s77
    %p84 = scmp.eq.s32.totalorder %s25, 1
    %p85 = por %p83, %p84
    %p86 = scmp.ne.s32.totalorder %s77, %s78
    %p87 = scmp.eq.s32.totalorder %s25, 0
    %p88 = por %p86, %p87
    %p89 = scmp.ne.s32.totalorder %s77, %s78
    %p90 = scmp.eq.s32.totalorder %s26, 1
    %p91 = por %p89, %p90
    %p93 = scmp.ne.s32.totalorder %s78, %s92
    %p94 = scmp.eq.s32.totalorder %s26, 0
    %p95 = por %p93, %p94
    %s97 = sadd.s32 %s96, 1
    %p100 = scmp.eq.s32.totalorder %s20, 1
    %p101 = scmp.ne.s32.totalorder %s96, %s98
    %p102 = scmp.eq.s32.totalorder %s20, 0
    %p103 = por %p101, %p102
    %p104 = scmp.ne.s32.totalorder %s96, %s98
    %p105 = scmp.eq.s32.totalorder %s25, 1
    %p106 = por %p104, %p105
    %p107 = scmp.ne.s32.totalorder %s98, %s99
    %p108 = scmp.eq.s32.totalorder %s25, 0
    %p109 = por %p107, %p108
    %p110 = scmp.ne.s32.totalorder %s98, %s99
    %p111 = scmp.eq.s32.totalorder %s26, 1
    %p112 = por %p110, %p111
    %p114 = scmp.ne.s32.totalorder %s99, %s113
    %p115 = scmp.eq.s32.totalorder %s26, 0
    %p116 = por %p114, %p115
    %s118 = sadd.s32 %s117, 1
    %p121 = scmp.eq.s32.totalorder %s20, 1
    %p122 = scmp.ne.s32.totalorder %s117, %s119
    %p123 = scmp.eq.s32.totalorder %s20, 0
    %p124 = por %p122, %p123
    %p125 = scmp.ne.s32.totalorder %s117, %s119
    %p126 = scmp.eq.s32.totalorder %s25, 1
    %p127 = por %p125, %p126
    %p128 = scmp.ne.s32.totalorder %s119, %s120
    %p129 = scmp.eq.s32.totalorder %s25, 0
    %p130 = por %p128, %p129
    %p131 = scmp.ne.s32.totalorder %s119, %s120
    %p132 = scmp.eq.s32.totalorder %s26, 1
    %p133 = por %p131, %p132
    %p135 = scmp.ne.s32.totalorder %s120, %s134
    %p136 = scmp.eq.s32.totalorder %s26, 0
    %p137 = por %p135, %p136
    %s139 = sadd.s32 %s138, 1
    %p142 = scmp.eq.s32.totalorder %s20, 1
    %p143 = scmp.ne.s32.totalorder %s138, %s140
    %p144 = scmp.eq.s32.totalorder %s20, 0
    %p145 = por %p143, %p144
    %p146 = scmp.ne.s32.totalorder %s138, %s140
    %p147 = scmp.eq.s32.totalorder %s25, 1
    %p148 = por %p146, %p147
    %p149 = scmp.ne.s32.totalorder %s140, %s141
    %p150 = scmp.eq.s32.totalorder %s25, 0
    %p151 = por %p149, %p150
    %p152 = scmp.ne.s32.totalorder %s140, %s141
    %p153 = scmp.eq.s32.totalorder %s26, 1
    %p154 = por %p152, %p153
    %p156 = scmp.ne.s32.totalorder %s141, %s155
    %p157 = scmp.eq.s32.totalorder %s26, 0
    %p158 = por %p156, %p157
    %s160 = sadd.s32 %s159, 1
    %p163 = scmp.eq.s32.totalorder %s20, 1
    %p164 = scmp.ne.s32.totalorder %s159, %s161
    %p165 = scmp.eq.s32.totalorder %s20, 0
    %p166 = por %p164, %p165
    %p167 = scmp.ne.s32.totalorder %s159, %s161
    %p168 = scmp.eq.s32.totalorder %s25, 1
    %p169 = por %p167, %p168
    %p170 = scmp.ne.s32.totalorder %s161, %s162
    %p171 = scmp.eq.s32.totalorder %s25, 0
    %p172 = por %p170, %p171
    %p173 = scmp.ne.s32.totalorder %s161, %s162
    %p174 = scmp.eq.s32.totalorder %s26, 1
    %p175 = por %p173, %p174
    %p177 = scmp.ne.s32.totalorder %s162, %s176
    %p178 = scmp.eq.s32.totalorder %s26, 0
    %p179 = por %p177, %p178
    %s181 = sadd.s32 %s180, 1
    %p184 = scmp.eq.s32.totalorder %s20, 1
    %p185 = scmp.ne.s32.totalorder %s180, %s182
    %p186 = scmp.eq.s32.totalorder %s20, 0
    %p187 = por %p185, %p186
    %p188 = scmp.ne.s32.totalorder %s180, %s182
    %p189 = scmp.eq.s32.totalorder %s25, 1
    %p190 = por %p188, %p189
    %p191 = scmp.ne.s32.totalorder %s182, %s183
    %p192 = scmp.eq.s32.totalorder %s25, 0
    %p193 = por %p191, %p192
    %p194 = scmp.ne.s32.totalorder %s182, %s183
    %p195 = scmp.eq.s32.totalorder %s26, 1
    %p196 = por %p194, %p195
    %p198 = scmp.ne.s32.totalorder %s183, %s197
    %p199 = scmp.eq.s32.totalorder %s26, 0
    %p200 = por %p198, %p199
    %s202 = sadd.s32 %s201, 1
    %p205 = scmp.eq.s32.totalorder %s20, 1
    %p206 = scmp.ne.s32.totalorder %s201, %s203
    %p207 = scmp.eq.s32.totalorder %s20, 0
    %p208 = por %p206, %p207
    %p209 = scmp.ne.s32.totalorder %s201, %s203
    %p210 = scmp.eq.s32.totalorder %s25, 1
    %p211 = por %p209, %p210
    %p212 = scmp.ne.s32.totalorder %s203, %s204
    %p213 = scmp.eq.s32.totalorder %s25, 0
    %p214 = por %p212, %p213
    %p215 = scmp.ne.s32.totalorder %s203, %s204
    %p216 = scmp.eq.s32.totalorder %s26, 1
    %p217 = por %p215, %p216
    %p219 = scmp.ne.s32.totalorder %s204, %s218
    %p220 = scmp.eq.s32.totalorder %s26, 0
    %p221 = por %p219, %p220
    %s223 = sadd.s32 %s222, 1
    %p226 = scmp.eq.s32.totalorder %s20, 1
    %p227 = scmp.ne.s32.totalorder %s222, %s224
    %p228 = scmp.eq.s32.totalorder %s20, 0
    %p229 = por %p227, %p228
    %p230 = scmp.ne.s32.totalorder %s222, %s224
    %p231 = scmp.eq.s32.totalorder %s25, 1
    %p232 = por %p230, %p231
    %p233 = scmp.ne.s32.totalorder %s224, %s225
    %p234 = scmp.eq.s32.totalorder %s25, 0
    %p235 = por %p233, %p234
    %p236 = scmp.ne.s32.totalorder %s224, %s225
    %p237 = scmp.eq.s32.totalorder %s26, 1
    %p238 = por %p236, %p237
    %p240 = scmp.ne.s32.totalorder %s225, %s239
    %p241 = scmp.eq.s32.totalorder %s26, 0
    %p242 = por %p240, %p241
    %s244 = sadd.s32 %s243, 1
    %p247 = scmp.eq.s32.totalorder %s20, 1
    %p248 = scmp.ne.s32.totalorder %s243, %s245
    %p249 = scmp.eq.s32.totalorder %s20, 0
    %p250 = por %p248, %p249
    %p251 = scmp.ne.s32.totalorder %s243, %s245
    %p252 = scmp.eq.s32.totalorder %s25, 1
    %p253 = por %p251, %p252
    %p254 = scmp.ne.s32.totalorder %s245, %s246
    %p255 = scmp.eq.s32.totalorder %s25, 0
    %p256 = por %p254, %p255
    %p257 = scmp.ne.s32.totalorder %s245, %s246
    %p258 = scmp.eq.s32.totalorder %s26, 1
    %p259 = por %p257, %p258
    %p261 = scmp.ne.s32.totalorder %s246, %s260
    %p262 = scmp.eq.s32.totalorder %s26, 0
    %p263 = por %p261, %p262
    %s265 = sadd.s32 %s264, 1
    %p268 = scmp.eq.s32.totalorder %s20, 1
    %p269 = scmp.ne.s32.totalorder %s264, %s266
    %p270 = scmp.eq.s32.totalorder %s20, 0
    %p271 = por %p269, %p270
    %p272 = scmp.ne.s32.totalorder %s264, %s266
    %p273 = scmp.eq.s32.totalorder %s25, 1
    %p274 = por %p272, %p273
    %p275 = scmp.ne.s32.totalorder %s266, %s267
    %p276 = scmp.eq.s32.totalorder %s25, 0
    %p277 = por %p275, %p276
    %p278 = scmp.ne.s32.totalorder %s266, %s267
    %p279 = scmp.eq.s32.totalorder %s26, 1
    %p280 = por %p278, %p279
    %p282 = scmp.ne.s32.totalorder %s267, %s281
    %p283 = scmp.eq.s32.totalorder %s26, 0
    %p284 = por %p282, %p283
    %s286 = sadd.s32 %s285, 1
    %p289 = scmp.eq.s32.totalorder %s20, 1
    %p290 = scmp.ne.s32.totalorder %s285, %s287
    %p291 = scmp.eq.s32.totalorder %s20, 0
    %p292 = por %p290, %p291
    %p293 = scmp.ne.s32.totalorder %s285, %s287
    %p294 = scmp.eq.s32.totalorder %s25, 1
    %p295 = por %p293, %p294
    %p296 = scmp.ne.s32.totalorder %s287, %s288
    %p297 = scmp.eq.s32.totalorder %s25, 0
    %p298 = por %p296, %p297
    %p299 = scmp.ne.s32.totalorder %s287, %s288
    %p300 = scmp.eq.s32.totalorder %s26, 1
    %p301 = por %p299, %p300
    %p303 = scmp.ne.s32.totalorder %s288, %s302
    %p304 = scmp.eq.s32.totalorder %s26, 0
    %p305 = por %p303, %p304
    %s307 = sadd.s32 %s306, 1
    %p310 = scmp.eq.s32.totalorder %s20, 1
    %p311 = scmp.ne.s32.totalorder %s306, %s308
    %p312 = scmp.eq.s32.totalorder %s20, 0
    %p313 = por %p311, %p312
    %p314 = scmp.ne.s32.totalorder %s306, %s308
    %p315 = scmp.eq.s32.totalorder %s25, 1
    %p316 = por %p314, %p315
    %p317 = scmp.ne.s32.totalorder %s308, %s309
    %p318 = scmp.eq.s32.totalorder %s25, 0
    %p319 = por %p317, %p318
    %p320 = scmp.ne.s32.totalorder %s308, %s309
    %p321 = scmp.eq.s32.totalorder %s26, 1
    %p322 = por %p320, %p321
    %p324 = scmp.ne.s32.totalorder %s309, %s323
    %p325 = scmp.eq.s32.totalorder %s26, 0
    %p326 = por %p324, %p325
    %s327 = ssub.s32 %s20, %s27
    %p328 = scmp.eq.s32.totalorder %s327, 0
    %s330 = sadd.s32 %s329, 1
    %s331 = scalar_select %p328, %s329, %s330
    %p334 = pneg %p328
    %p335 = scmp.eq.s32.totalorder %s20, 1
    %p336 = por %p334, %p335
    %p337 = scmp.ne.s32.totalorder %s329, %s332
    %p338 = scmp.eq.s32.totalorder %s20, 0
    %p339 = por %p337, %p338
    %p340 = scmp.ne.s32.totalorder %s329, %s332
    %p341 = scmp.eq.s32.totalorder %s25, 1
    %p342 = por %p340, %p341
    %p343 = scmp.ne.s32.totalorder %s332, %s333
    %p344 = scmp.eq.s32.totalorder %s25, 0
    %p345 = por %p343, %p344
    %p346 = scmp.ne.s32.totalorder %s332, %s333
    %p347 = scmp.eq.s32.totalorder %s26, 1
    %p348 = por %p346, %p347
    %p350 = scmp.ne.s32.totalorder %s333, %s349
    %p351 = scmp.eq.s32.totalorder %s26, 0
    %p352 = por %p350, %p351
    %p353 = scmp.le.s32.totalorder 1, %s20
    %p354 = scmp.lt.s32.totalorder %s20, 3
    %p355 = pnand %p353, %p354
    %p356 = pneg %p355
    // Predicated region
    $region9: #{transformer_model_forward.1} parent=5 // pred_check
      _
    $region10: #{transformer_model_forward.1} parent=5 // pred_check_branch
      %358 = sbr.rel (%p355) target = $region12
    $region11: #{transformer_model_forward.1} parent=5 // pred_region
      %s359 = ssub.s32 %s20, 1
      // Predicated region
      $region13: #{transformer_model_forward.1} parent=11 // pred_check
        %p360 = pneg %p67
      $region14: #{transformer_model_forward.1} parent=11 // pred_check_branch
        %362 = sbr.rel (%p360) target = $region16
      $region15: #{transformer_model_forward.1} parent=11 // pred_region
        _
      $region16: #{transformer_model_forward.1} parent=11 // pred_fallthru
        _
      // Predicated region
      $region17: #{transformer_model_forward.1} parent=11 // pred_check
        %p363 = pneg %p88
      $region18: #{transformer_model_forward.1} parent=11 // pred_check_branch
        %365 = sbr.rel (%p363) target = $region20
      $region19: #{transformer_model_forward.1} parent=11 // pred_region
        _
      $region20: #{transformer_model_forward.1} parent=11 // pred_fallthru
        _
      // Predicated region
      $region21: #{transformer_model_forward.1} parent=11 // pred_check
        %p366 = pneg %p109
      $region22: #{transformer_model_forward.1} parent=11 // pred_check_branch
        %368 = sbr.rel (%p366) target = $region24
      $region23: #{transformer_model_forward.1} parent=11 // pred_region
        _
      $region24: #{transformer_model_forward.1} parent=11 // pred_fallthru
        _
      // Predicated region
      $region25: #{transformer_model_forward.1} parent=11 // pred_check
        %p369 = pneg %p130
      $region26: #{transformer_model_forward.1} parent=11 // pred_check_branch
        %371 = sbr.rel (%p369) target = $region28
      $region27: #{transformer_model_forward.1} parent=11 // pred_region
        _
      $region28: #{transformer_model_forward.1} parent=11 // pred_fallthru
        _
      // Predicated region
      $region29: #{transformer_model_forward.1} parent=11 // pred_check
        %p372 = pneg %p151
      $region30: #{transformer_model_forward.1} parent=11 // pred_check_branch
        %374 = sbr.rel (%p372) target = $region32
      $region31: #{transformer_model_forward.1} parent=11 // pred_region
        _
      $region32: #{transformer_model_forward.1} parent=11 // pred_fallthru
        _
      // Predicated region
      $region33: #{transformer_model_forward.1} parent=11 // pred_check
        %p375 = pneg %p172
      $region34: #{transformer_model_forward.1} parent=11 // pred_check_branch
        %377 = sbr.rel (%p375) target = $region36
      $region35: #{transformer_model_forward.1} parent=11 // pred_region
        _
      $region36: #{transformer_model_forward.1} parent=11 // pred_fallthru
        _
      // Predicated region
      $region37: #{transformer_model_forward.1} parent=11 // pred_check
        %p378 = pneg %p193
      $region38: #{transformer_model_forward.1} parent=11 // pred_check_branch
        %380 = sbr.rel (%p378) target = $region40
      $region39: #{transformer_model_forward.1} parent=11 // pred_region
        _
      $region40: #{transformer_model_forward.1} parent=11 // pred_fallthru
        _
      // Predicated region
      $region41: #{transformer_model_forward.1} parent=11 // pred_check
        %p381 = pneg %p214
      $region42: #{transformer_model_forward.1} parent=11 // pred_check_branch
        %383 = sbr.rel (%p381) target = $region44
      $region43: #{transformer_model_forward.1} parent=11 // pred_region
        _
      $region44: #{transformer_model_forward.1} parent=11 // pred_fallthru
        _
      // Predicated region
      $region45: #{transformer_model_forward.1} parent=11 // pred_check
        %p384 = pneg %p235
      $region46: #{transformer_model_forward.1} parent=11 // pred_check_branch
        %386 = sbr.rel (%p384) target = $region48
      $region47: #{transformer_model_forward.1} parent=11 // pred_region
        _
      $region48: #{transformer_model_forward.1} parent=11 // pred_fallthru
        _
      // Predicated region
      $region49: #{transformer_model_forward.1} parent=11 // pred_check
        %p387 = pneg %p256
      $region50: #{transformer_model_forward.1} parent=11 // pred_check_branch
        %389 = sbr.rel (%p387) target = $region52
      $region51: #{transformer_model_forward.1} parent=11 // pred_region
        _
      $region52: #{transformer_model_forward.1} parent=11 // pred_fallthru
        _
      // Predicated region
      $region53: #{transformer_model_forward.1} parent=11 // pred_check
        %p390 = pneg %p277
      $region54: #{transformer_model_forward.1} parent=11 // pred_check_branch
        %392 = sbr.rel (%p390) target = $region56
      $region55: #{transformer_model_forward.1} parent=11 // pred_region
        _
      $region56: #{transformer_model_forward.1} parent=11 // pred_fallthru
        _
      // Predicated region
      $region57: #{transformer_model_forward.1} parent=11 // pred_check
        %p393 = pneg %p298
      $region58: #{transformer_model_forward.1} parent=11 // pred_check_branch
        %395 = sbr.rel (%p393) target = $region60
      $region59: #{transformer_model_forward.1} parent=11 // pred_region
        _
      $region60: #{transformer_model_forward.1} parent=11 // pred_fallthru
        _
      // Predicated region
      $region61: #{transformer_model_forward.1} parent=11 // pred_check
        %p396 = pneg %p319
      $region62: #{transformer_model_forward.1} parent=11 // pred_check_branch
        %398 = sbr.rel (%p396) target = $region64
      $region63: #{transformer_model_forward.1} parent=11 // pred_region
        _
      $region64: #{transformer_model_forward.1} parent=11 // pred_fallthru
        _
    $region12: #{transformer_model_forward.1} parent=5 // pred_fallthru
      _
    %p399 = scmp.lt.s32.totalorder %s20, 2
    // Predicated region
    $region65: #{transformer_model_forward.1} parent=5 // pred_check
      %p400 = pneg %p399
    $region66: #{transformer_model_forward.1} parent=5 // pred_check_branch
      %402 = sbr.rel (%p400) target = $region68
    $region67: #{transformer_model_forward.1} parent=5 // pred_region
      // Predicated region
      $region69: #{transformer_model_forward.1} parent=67 // pred_check
        %p403 = pneg %p40
      $region70: #{transformer_model_forward.1} parent=67 // pred_check_branch
        %405 = sbr.rel (%p403) target = $region72
      $region71: #{transformer_model_forward.1} parent=67 // pred_region
        %p406 = scmp.lt.s32.totalorder %s20, 1
        %s407 = scalar_select %p406, %s20, 1
        %s408 = smul.addr %s407, 8
        %s409 = scalar_lea.vmem %s0, %s408
      $region72: #{transformer_model_forward.1} parent=67 // pred_fallthru
        _
    $region68: #{transformer_model_forward.1} parent=5 // pred_fallthru
      _
    %p410 = scmp.le.s32.totalorder 1, %s20
    %p411 = scmp.lt.s32.totalorder %s20, 3
    %p412 = pnand %p410, %p411
    %p413 = pneg %p412
    // Predicated region
    $region73: #{transformer_model_forward.1} parent=5 // pred_check
      _
    $region74: #{transformer_model_forward.1} parent=5 // pred_check_branch
      %415 = sbr.rel (%p412) target = $region76
    $region75: #{transformer_model_forward.1} parent=5 // pred_region
      %s416 = ssub.s32 %s20, 1
      %p417 = scmp.lt.s32.totalorder %s25, 1
      %s418 = scalar_select %p417, %s25, 1
      %s419 = smul.addr %s418, 8
      %s420 = scalar_lea.vmem %s0, %s419
      %p421 = pneg %p46
      %p422 = pneg %p43
      %p423 = pneg %p67
      %p424 = pneg %p64
      %p425 = pneg %p88
      %p426 = pneg %p85
      %p427 = pneg %p109
      %p428 = pneg %p106
      %p429 = pneg %p130
      %p430 = pneg %p127
      %p431 = pneg %p151
      %p432 = pneg %p148
      %p433 = pneg %p172
      %p434 = pneg %p169
      %p435 = pneg %p193
      %p436 = pneg %p190
      %p437 = pneg %p214
      %p438 = pneg %p211
      %p439 = pneg %p235
      %p440 = pneg %p232
      %p441 = pneg %p256
      %p442 = pneg %p253
      %p443 = pneg %p277
      %p444 = pneg %p274
      %p445 = pneg %p298
      %p446 = pneg %p295
      %p447 = pneg %p319
      %p448 = pneg %p316
      %p449 = pneg %p345
      %p450 = pneg %p342
      %p451 = scmp.lt.s32.totalorder %s25, 1
      %s452 = scalar_select %p451, %s25, 1
      %s453 = smul.addr %s452, 8
      %s454 = scalar_lea.vmem %s14, %s453
      %p455 = scmp.lt.s32.totalorder %s25, 1
      %s456 = scalar_select %p455, %s25, 1
      %s457 = smul.addr %s456, 8
      %s458 = scalar_lea.vmem %s0, %s457
      %p459 = scmp.lt.s32.totalorder %s25, 1
      %s460 = scalar_select %p459, %s25, 1
      %s461 = smul.addr %s460, 8
      %s462 = scalar_lea.vmem %s14, %s461
      %v463 = vld [vmem:[%s458] sm:$0xff]
      %v464 = vld [vmem:[%s1] sm:$0xff]
      %v465 = vld [vmem:[%s2] sm:$0xff]
      %v466 = vld [vmem:[%s2 + $0x8] sm:$0xff]
      %v467 = vld [vmem:[%s2 + $0x10] sm:$0xff]
      %v468 = vld [vmem:[%s2 + $0x18] sm:$0xff]
      %v469 = vld [vmem:[%s2 + $0x20] sm:$0xff]
      %v470 = vld [vmem:[%s2 + $0x28] sm:$0xff]
      %v471 = vld [vmem:[%s2 + $0x30] sm:$0xff]
      %v472 = vld [vmem:[%s2 + $0x38] sm:$0xff]
      %v473 = vld [vmem:[%s2 + $0x40] sm:$0xff]
      %v474 = vld [vmem:[%s2 + $0x48] sm:$0xff]
      %v475 = vld [vmem:[%s2 + $0x50] sm:$0xff]
      %v476 = vld [vmem:[%s2 + $0x58] sm:$0xff]
      %v477 = vld [vmem:[%s3] sm:$0xff]
      %v478 = vld [vmem:[%s3 + $0x8] sm:$0xff]
      %v479 = vld [vmem:[%s3 + $0x10] sm:$0xff]
      %v480 = vld [vmem:[%s3 + $0x18] sm:$0xff]
      %v481 = vld [vmem:[%s3 + $0x20] sm:$0xff]
      %v482 = vld [vmem:[%s3 + $0x28] sm:$0xff]
      %v483 = vld [vmem:[%s3 + $0x30] sm:$0xff]
      %v484 = vld [vmem:[%s3 + $0x38] sm:$0xff]
      %v485 = vld [vmem:[%s3 + $0x40] sm:$0xff]
      %v486 = vld [vmem:[%s3 + $0x48] sm:$0xff]
      %v487 = vld [vmem:[%s3 + $0x50] sm:$0xff]
      %v488 = vld [vmem:[%s3 + $0x58] sm:$0xff]
      %v489 = vld [vmem:[%s4] sm:$0xff]
      %v490 = vld [vmem:[%s4 + $0x8] sm:$0xff]
      %v491 = vld [vmem:[%s4 + $0x10] sm:$0xff]
      %v492 = vld [vmem:[%s4 + $0x18] sm:$0xff]
      %v493 = vld [vmem:[%s5] sm:$0x1]
      %v494 = vld [vmem:[%s6] sm:$0xff]
      %v495 = vld [vmem:[%s6 + $0x8] sm:$0xff]
      %v496 = vld [vmem:[%s6 + $0x10] sm:$0xff]
      %v497 = vld [vmem:[%s6 + $0x18] sm:$0xff]
      %v498 = vld [vmem:[%s7] sm:$0x1]
      %v499 = vld [vmem:[%s8] sm:$0xff]
      %v500 = vld [vmem:[%s8 + $0x8] sm:$0xff]
      %v501 = vld [vmem:[%s8 + $0x10] sm:$0xff]
      %v502 = vld [vmem:[%s8 + $0x18] sm:$0xff]
      %v503 = vld [vmem:[%s8 + $0x20] sm:$0xff]
      %v504 = vld [vmem:[%s8 + $0x28] sm:$0xff]
      %v505 = vld [vmem:[%s8 + $0x30] sm:$0xff]
      %v506 = vld [vmem:[%s8 + $0x38] sm:$0xff]
      %v507 = vld [vmem:[%s9] sm:$0x1]
      %v508 = vld [vmem:[%s10] sm:$0x1]
      %v509 = vld [vmem:[%s11] sm:$0x1]
      %v510 = vld [vmem:[%s12] sm:$0x1]
      %v511 = vld [vmem:[%s13] sm:$0x1]
      %513 = vset.pattern.permute.xlu0 0
      %514 = vperm.xlu0 %513, %v477
      %v515 = vpop.permute.xlu0 %514
      %518 = vset.pattern.permute.xlu0 0
      %519 = vperm.xlu0 %518, %v478
      %v520 = vpop.permute.xlu0 %519
      %523 = vset.pattern.permute.xlu0 0
      %524 = vperm.xlu0 %523, %v479
      %v525 = vpop.permute.xlu0 %524
      %528 = vset.pattern.permute.xlu0 0
      %529 = vperm.xlu0 %528, %v480
      %v530 = vpop.permute.xlu0 %529
      %533 = vset.pattern.permute.xlu0 0
      %534 = vperm.xlu0 %533, %v481
      %v535 = vpop.permute.xlu0 %534
      %538 = vset.pattern.permute.xlu0 0
      %539 = vperm.xlu0 %538, %v482
      %v540 = vpop.permute.xlu0 %539
      %543 = vset.pattern.permute.xlu0 0
      %544 = vperm.xlu0 %543, %v483
      %v545 = vpop.permute.xlu0 %544
      %548 = vset.pattern.permute.xlu0 0
      %549 = vperm.xlu0 %548, %v484
      %v550 = vpop.permute.xlu0 %549
      %553 = vset.pattern.permute.xlu0 0
      %554 = vperm.xlu0 %553, %v485
      %v555 = vpop.permute.xlu0 %554
      %558 = vset.pattern.permute.xlu0 0
      %559 = vperm.xlu0 %558, %v486
      %v560 = vpop.permute.xlu0 %559
      %563 = vset.pattern.permute.xlu0 0
      %564 = vperm.xlu0 %563, %v487
      %v565 = vpop.permute.xlu0 %564
      %568 = vset.pattern.permute.xlu0 0
      %569 = vperm.xlu0 %568, %v488
      %v570 = vpop.permute.xlu0 %569
      %vm572 = vcmask 261120
      %v574 = vsel %vm572, %v465, 0
      %v577 = vsel %vm572, %v466, 0
      %v580 = vsel %vm572, %v467, 0
      %v583 = vsel %vm572, %v468, 0
      %v586 = vsel %vm572, %v469, 0
      %v589 = vsel %vm572, %v470, 0
      %v592 = vsel %vm572, %v471, 0
      %v595 = vsel %vm572, %v472, 0
      %v598 = vsel %vm572, %v473, 0
      %v601 = vsel %vm572, %v474, 0
      %v604 = vsel %vm572, %v475, 0
      %v607 = vsel %vm572, %v476, 0
      %v610 = vsel %vm572, %v463, 0
      %612 = vmatprep.subr.mxu0 0.0
      %613 = vmatpush1.xpose.msra.mxu0 %v610
      %614 = vmatprep.subr.mxu0 0.0
      %615 = vmatpush1.xpose.msra.mxu0 0.0
      %616 = vmatprep.subr.mxu0 0.0
      %617 = vmatpush1.xpose.msra.mxu0 0.0
      %618 = vmatprep.subr.mxu0 0.0
      %619 = vmatpush1.xpose.msra.mxu0 0.0
      %620 = vmatprep.subr.mxu0 0.0
      %621 = vmatpush1.xpose.msra.mxu0 0.0
      %622 = vmatprep.subr.mxu0 0.0
      %623 = vmatpush1.xpose.msra.mxu0 0.0
      %624 = vmatprep.subr.mxu0 0.0
      %625 = vmatpush1.xpose.msra.mxu0 0.0
      %626 = vmatprep.subr.mxu0 0.0
      %627 = vmatpush1.xpose.msra.mxu0 0.0
      %628 = vmatprep.subr.mxu0 0.0
      %629 = vmatpush1.xpose.msra.mxu0 0.0
      %630 = vmatprep.subr.mxu0 0.0
      %631 = vmatpush1.xpose.msra.mxu0 0.0
      %632 = vmatprep.subr.mxu0 0.0
      %633 = vmatpush1.xpose.msra.mxu0 0.0
      %634 = vmatprep.subr.mxu0 0.0
      %635 = vmatpush1.xpose.msra.mxu0 0.0
      %636 = vmatprep.subr.mxu0 0.0
      %637 = vmatpush1.xpose.msra.mxu0 0.0
      %638 = vmatprep.subr.mxu0 0.0
      %639 = vmatpush1.xpose.msra.mxu0 0.0
      %640 = vmatprep.subr.mxu0 0.0
      %641 = vmatpush1.xpose.msra.mxu0 0.0
      %642 = vmatprep.subr.mxu0 0.0
      %643 = vmatpush1.xpose.msra.mxu0 0.0
      %644 = vmatprep.subr.mxu0 0.0
      %645 = vmatpush1.xpose.msra.mxu0 0.0
      %646 = vmatprep.subr.mxu0 0.0
      %647 = vmatpush1.xpose.msra.mxu0 0.0
      %648 = vmatprep.subr.mxu0 0.0
      %649 = vmatpush1.xpose.msra.mxu0 0.0
      %650 = vmatprep.subr.mxu0 0.0
      %651 = vmatpush1.xpose.msra.mxu0 0.0
      %652 = vmatprep.subr.mxu0 0.0
      %653 = vmatpush1.xpose.msra.mxu0 0.0
      %654 = vmatprep.subr.mxu0 0.0
      %655 = vmatpush1.xpose.msra.mxu0 0.0
      %656 = vmatprep.subr.mxu0 0.0
      %657 = vmatpush1.xpose.msra.mxu0 0.0
      %658 = vmatprep.subr.mxu0 0.0
      %659 = vmatpush1.xpose.msra.mxu0 0.0
      %660 = vmatprep.subr.mxu0 0.0
      %661 = vmatpush1.xpose.msra.mxu0 0.0
      %662 = vmatprep.subr.mxu0 0.0
      %663 = vmatpush1.xpose.msra.mxu0 0.0
      %664 = vmatprep.subr.mxu0 0.0
      %665 = vmatpush1.xpose.msra.mxu0 0.0
      %666 = vmatprep.subr.mxu0 0.0
      %667 = vmatpush1.xpose.msra.mxu0 0.0
      %668 = vmatprep.subr.mxu0 0.0
      %669 = vmatpush1.xpose.msra.mxu0 0.0
      %670 = vmatprep.subr.mxu0 0.0
      %671 = vmatpush1.xpose.msra.mxu0 0.0
      %672 = vmatprep.subr.mxu0 0.0
      %673 = vmatpush1.xpose.msra.mxu0 0.0
      %674 = vmatprep.subr.mxu0 0.0
      %675 = vmatpush1.xpose.msra.mxu0 0.0
      %676 = vmatprep.mubr.f32.mxu0 0.0
      %677 = vmatmul.mubr.f32.gmra.mrb[0].mxu0 %v574
      %v678 = vpop.f32.mrb[0].mxu0
      %v679 = vadd.f32 %v515, %v678
      %v680 = vpop.f32.mrb[0].mxu0
      %681 = vmatprep.mubr.f32.mxu0 0.0
      %682 = vmatmul.mubr.f32.gmra.mrb[0].mxu0 %v577
      %v683 = vpop.f32.mrb[0].mxu0
      %v684 = vadd.f32 %v520, %v683
      %v685 = vpop.f32.mrb[0].mxu0
      %686 = vmatprep.mubr.f32.mxu0 0.0
      %687 = vmatmul.mubr.f32.gmra.mrb[0].mxu0 %v580
      %v688 = vpop.f32.mrb[0].mxu0
      %v689 = vadd.f32 %v525, %v688
      %v690 = vpop.f32.mrb[0].mxu0
      %691 = vmatprep.mubr.f32.mxu0 0.0
      %692 = vmatmul.mubr.f32.gmra.mrb[0].mxu0 %v583
      %v693 = vpop.f32.mrb[0].mxu0
      %v694 = vadd.f32 %v530, %v693
      %v695 = vpop.f32.mrb[0].mxu0
      %696 = vmatprep.mubr.f32.mxu0 0.0
      %697 = vmatmul.mubr.f32.gmra.mrb[0].mxu0 %v586
      %v698 = vpop.f32.mrb[0].mxu0
      %v699 = vadd.f32 %v535, %v698
      %v700 = vpop.f32.mrb[0].mxu0
      %701 = vmatprep.mubr.f32.mxu0 0.0
      %702 = vmatmul.mubr.f32.gmra.mrb[0].mxu0 %v589
      %v703 = vpop.f32.mrb[0].mxu0
      %v704 = vadd.f32 %v540, %v703
      %v705 = vpop.f32.mrb[0].mxu0
      %706 = vmatprep.mubr.f32.mxu0 0.0
      %707 = vmatmul.mubr.f32.gmra.mrb[0].mxu0 %v592
      %v708 = vpop.f32.mrb[0].mxu0
      %v709 = vadd.f32 %v545, %v708
      %v710 = vpop.f32.mrb[0].mxu0
      %711 = vmatprep.mubr.f32.mxu0 0.0
      %712 = vmatmul.mubr.f32.gmra.mrb[0].mxu0 %v595
      %v713 = vpop.f32.mrb[0].mxu0
      %v714 = vadd.f32 %v550, %v713
      %v715 = vpop.f32.mrb[0].mxu0
      %716 = vmatprep.mubr.f32.mxu0 0.0
      %717 = vmatmul.mubr.f32.gmra.mrb[0].mxu0 %v598
      %v718 = vpop.f32.mrb[0].mxu0
      %v719 = vadd.f32 %v555, %v718
      %v720 = vpop.f32.mrb[0].mxu0
      %721 = vmatprep.mubr.f32.mxu0 0.0
      %722 = vmatmul.mubr.f32.gmra.mrb[0].mxu0 %v601
      %v723 = vpop.f32.mrb[0].mxu0
      %v724 = vadd.f32 %v560, %v723
      %v725 = vpop.f32.mrb[0].mxu0
      %726 = vmatprep.mubr.f32.mxu0 0.0
      %727 = vmatmul.mubr.f32.gmra.mrb[0].mxu0 %v604
      %v728 = vpop.f32.mrb[0].mxu0
      %v729 = vadd.f32 %v565, %v728
      %v730 = vpop.f32.mrb[0].mxu0
      %731 = vmatprep.mubr.f32.mxu0 0.0
      %732 = vmatmul.mubr.f32.gmra.mrb[0].mxu0 %v607
      %v733 = vpop.f32.mrb[0].mxu0
      %v734 = vadd.f32 %v570, %v733
      %v735 = vpop.f32.mrb[0].mxu0
      %736 = vdwg.mxu0
      %v737 = vmul.f32 %v679, 0.35355338
      %738 = vxpose.xlu0.b32.start [1/16] %v737, 128
      %739 = vxpose.xlu0.b32.cont [2/16] 0.0, 128
      %740 = vxpose.xlu0.b32.cont [3/16] 0.0, 128
      %741 = vxpose.xlu0.b32.cont [4/16] 0.0, 128
      %742 = vxpose.xlu0.b32.cont [5/16] 0.0, 128
      %743 = vxpose.xlu0.b32.cont [6/16] 0.0, 128
      %744 = vxpose.xlu0.b32.cont [7/16] 0.0, 128
      %745 = vxpose.xlu0.b32.cont [8/16] 0.0, 128
      %746 = vxpose.xlu0.b32.cont [9/16] 0.0, 128
      %747 = vxpose.xlu0.b32.cont [10/16] 0.0, 128
      %748 = vxpose.xlu0.b32.cont [11/16] 0.0, 128
      %749 = vxpose.xlu0.b32.cont [12/16] 0.0, 128
      %750 = vxpose.xlu0.b32.cont [13/16] 0.0, 128
      %751 = vxpose.xlu0.b32.cont [14/16] 0.0, 128
      %752 = vxpose.xlu0.b32.cont [15/16] 0.0, 128
      %753 = vxpose.xlu0.b32.end [16/16] 0.0, 128
      %v754 = vpop.trf.xlu0
      %v755 = vpop.trf.xlu0
      %v756 = vpop.trf.xlu0
      %v757 = vpop.trf.xlu0
      %v758 = vpop.trf.xlu0
      %v759 = vpop.trf.xlu0
      %v760 = vpop.trf.xlu0
      %v761 = vpop.trf.xlu0
      %v762 = vpop.trf.xlu0
      %v763 = vpop.trf.xlu0
      %v764 = vpop.trf.xlu0
      %v765 = vpop.trf.xlu0
      %v766 = vpop.trf.xlu0
      %v767 = vpop.trf.xlu0
      %v768 = vpop.trf.xlu0
      %v769 = vpop.trf.xlu0
      %vm770 = vcmask 64512
      %v772 = vsel %vm770, %v754, 0
      %774 = vmatprep.subr.mxu0 0.0
      %775 = vmatpush1.msra.mxu0 %v699
      %776 = vmatprep.subr.mxu0 0.0
      %777 = vmatpush1.msra.mxu0 0.0
      %778 = vmatprep.subr.mxu0 0.0
      %779 = vmatpush1.msra.mxu0 0.0
      %780 = vmatprep.subr.mxu0 0.0
      %781 = vmatpush1.msra.mxu0 0.0
      %782 = vmatprep.subr.mxu0 0.0
      %783 = vmatpush1.msra.mxu0 0.0
      %784 = vmatprep.subr.mxu0 0.0
      %785 = vmatpush1.msra.mxu0 0.0
      %786 = vmatprep.subr.mxu0 0.0
      %787 = vmatpush1.msra.mxu0 0.0
      %788 = vmatprep.subr.mxu0 0.0
      %789 = vmatpush1.msra.mxu0 0.0
      %790 = vmatprep.subr.mxu0 0.0
      %791 = vmatpush1.msra.mxu0 0.0
      %792 = vmatprep.subr.mxu0 0.0
      %793 = vmatpush1.msra.mxu0 0.0
      %794 = vmatprep.subr.mxu0 0.0
      %795 = vmatpush1.msra.mxu0 0.0
      %796 = vmatprep.subr.mxu0 0.0
      %797 = vmatpush1.msra.mxu0 0.0
      %798 = vmatprep.subr.mxu0 0.0
      %799 = vmatpush1.msra.mxu0 0.0
      %800 = vmatprep.subr.mxu0 0.0
      %801 = vmatpush1.msra.mxu0 0.0
      %802 = vmatprep.subr.mxu0 0.0
      %803 = vmatpush1.msra.mxu0 0.0
      %804 = vmatprep.subr.mxu0 0.0
      %805 = vmatpush1.msra.mxu0 0.0
      %806 = vmatprep.subr.mxu0 0.0
      %807 = vmatpush1.msra.mxu0 0.0
      %808 = vmatprep.subr.mxu0 0.0
      %809 = vmatpush1.msra.mxu0 0.0
      %810 = vmatprep.subr.mxu0 0.0
      %811 = vmatpush1.msra.mxu0 0.0
      %812 = vmatprep.subr.mxu0 0.0
      %813 = vmatpush1.msra.mxu0 0.0
      %814 = vmatprep.subr.mxu0 0.0
      %815 = vmatpush1.msra.mxu0 0.0
      %816 = vmatprep.subr.mxu0 0.0
      %817 = vmatpush1.msra.mxu0 0.0
      %818 = vmatprep.subr.mxu0 0.0
      %819 = vmatpush1.msra.mxu0 0.0
      %820 = vmatprep.subr.mxu0 0.0
      %821 = vmatpush1.msra.mxu0 0.0
      %822 = vmatprep.subr.mxu0 0.0
      %823 = vmatpush1.msra.mxu0 0.0
      %824 = vmatprep.subr.mxu0 0.0
      %825 = vmatpush1.msra.mxu0 0.0
      %826 = vmatprep.subr.mxu0 0.0
      %827 = vmatpush1.msra.mxu0 0.0
      %828 = vmatprep.subr.mxu0 0.0
      %829 = vmatpush1.msra.mxu0 0.0
      %830 = vmatprep.subr.mxu0 0.0
      %831 = vmatpush1.msra.mxu0 0.0
      %832 = vmatprep.subr.mxu0 0.0
      %833 = vmatpush1.msra.mxu0 0.0
      %834 = vmatprep.subr.mxu0 0.0
      %835 = vmatpush1.msra.mxu0 0.0
      %836 = vmatprep.subr.mxu0 0.0
      %837 = vmatpush1.msra.mxu0 0.0
      %838 = vmatprep.mubr.f32.mxu0 0.0
      %839 = vmatmul.mubr.f32.gmra.mrb[0].mxu0 %v772
      %v840 = vpop.f32.mrb[0].mxu0
      %v841 = vadd.f32 %v464, %v840
      %v842 = vpop.f32.mrb[0].mxu0
      %843 = vdwg.mxu0
      %v844 = vsel %vm770, %v841, -inf
      %845 = vmax.xlane.f32.xlu0 %v844
      %v846 = vpop.xlane.xlu0 %845
      %v847 = vsub.f32 %v841, %v846
      %v848 = vmul.f32 %v847, 1.442695
      %v849 = vpow.pop %v848
      %v850 = vsel %vm770, %v849, 0.0
      %851 = vadd.xlane.f32.xlu0 %v850
      %v852 = vpop.xlane.xlu0 %851
      %v853 = vrcp.pop %v852
      %v854 = vmul.f32 %v849, %v853
      %v856 = vsel %vm770, %v719, 0
      %v859 = vsel %vm770, %v854, 0
      %861 = vmatprep.subr.mxu0 0.0
      %862 = vmatpush1.xpose.msra.mxu0 %v859
      %863 = vmatprep.subr.mxu0 0.0
      %864 = vmatpush1.xpose.msra.mxu0 0.0
      %865 = vmatprep.subr.mxu0 0.0
      %866 = vmatpush1.xpose.msra.mxu0 0.0
      %867 = vmatprep.subr.mxu0 0.0
      %868 = vmatpush1.xpose.msra.mxu0 0.0
      %869 = vmatprep.subr.mxu0 0.0
      %870 = vmatpush1.xpose.msra.mxu0 0.0
      %871 = vmatprep.subr.mxu0 0.0
      %872 = vmatpush1.xpose.msra.mxu0 0.0
      %873 = vmatprep.subr.mxu0 0.0
      %874 = vmatpush1.xpose.msra.mxu0 0.0
      %875 = vmatprep.subr.mxu0 0.0
      %876 = vmatpush1.xpose.msra.mxu0 0.0
      %877 = vmatprep.subr.mxu0 0.0
      %878 = vmatpush1.xpose.msra.mxu0 0.0
      %879 = vmatprep.subr.mxu0 0.0
      %880 = vmatpush1.xpose.msra.mxu0 0.0
      %881 = vmatprep.subr.mxu0 0.0
      %882 = vmatpush1.xpose.msra.mxu0 0.0
      %883 = vmatprep.subr.mxu0 0.0
      %884 = vmatpush1.xpose.msra.mxu0 0.0
      %885 = vmatprep.subr.mxu0 0.0
      %886 = vmatpush1.xpose.msra.mxu0 0.0
      %887 = vmatprep.subr.mxu0 0.0
      %888 = vmatpush1.xpose.msra.mxu0 0.0
      %889 = vmatprep.subr.mxu0 0.0
      %890 = vmatpush1.xpose.msra.mxu0 0.0
      %891 = vmatprep.subr.mxu0 0.0
      %892 = vmatpush1.xpose.msra.mxu0 0.0
      %893 = vmatprep.subr.mxu0 0.0
      %894 = vmatpush1.xpose.msra.mxu0 0.0
      %895 = vmatprep.subr.mxu0 0.0
      %896 = vmatpush1.xpose.msra.mxu0 0.0
      %897 = vmatprep.subr.mxu0 0.0
      %898 = vmatpush1.xpose.msra.mxu0 0.0
      %899 = vmatprep.subr.mxu0 0.0
      %900 = vmatpush1.xpose.msra.mxu0 0.0
      %901 = vmatprep.subr.mxu0 0.0
      %902 = vmatpush1.xpose.msra.mxu0 0.0
      %903 = vmatprep.subr.mxu0 0.0
      %904 = vmatpush1.xpose.msra.mxu0 0.0
      %905 = vmatprep.subr.mxu0 0.0
      %906 = vmatpush1.xpose.msra.mxu0 0.0
      %907 = vmatprep.subr.mxu0 0.0
      %908 = vmatpush1.xpose.msra.mxu0 0.0
      %909 = vmatprep.subr.mxu0 0.0
      %910 = vmatpush1.xpose.msra.mxu0 0.0
      %911 = vmatprep.subr.mxu0 0.0
      %912 = vmatpush1.xpose.msra.mxu0 0.0
      %913 = vmatprep.subr.mxu0 0.0
      %914 = vmatpush1.xpose.msra.mxu0 0.0
      %915 = vmatprep.subr.mxu0 0.0
      %916 = vmatpush1.xpose.msra.mxu0 0.0
      %917 = vmatprep.subr.mxu0 0.0
      %918 = vmatpush1.xpose.msra.mxu0 0.0
      %919 = vmatprep.subr.mxu0 0.0
      %920 = vmatpush1.xpose.msra.mxu0 0.0
      %921 = vmatprep.subr.mxu0 0.0
      %922 = vmatpush1.xpose.msra.mxu0 0.0
      %923 = vmatprep.subr.mxu0 0.0
      %924 = vmatpush1.xpose.msra.mxu0 0.0
      %925 = vmatprep.mubr.f32.mxu0 0.0
      %926 = vmatmul.mubr.f32.gmra.mrb[0].mxu0 %v856
      %v927 = vpop.f32.mrb[0].mxu0
      %v928 = vadd.f32 0.0, %v927
      %v929 = vpop.f32.mrb[0].mxu0
      %930 = vdwg.mxu0
      %v931 = vmul.f32 %v684, 0.35355338
      %932 = vxpose.xlu0.b32.start [1/16] %v931, 128
      %933 = vxpose.xlu0.b32.cont [2/16] 0.0, 128
      %934 = vxpose.xlu0.b32.cont [3/16] 0.0, 128
      %935 = vxpose.xlu0.b32.cont [4/16] 0.0, 128
      %936 = vxpose.xlu0.b32.cont [5/16] 0.0, 128
      %937 = vxpose.xlu0.b32.cont [6/16] 0.0, 128
      %938 = vxpose.xlu0.b32.cont [7/16] 0.0, 128
      %939 = vxpose.xlu0.b32.cont [8/16] 0.0, 128
      %940 = vxpose.xlu0.b32.cont [9/16] 0.0, 128
      %941 = vxpose.xlu0.b32.cont [10/16] 0.0, 128
      %942 = vxpose.xlu0.b32.cont [11/16] 0.0, 128
      %943 = vxpose.xlu0.b32.cont [12/16] 0.0, 128
      %944 = vxpose.xlu0.b32.cont [13/16] 0.0, 128
      %945 = vxpose.xlu0.b32.cont [14/16] 0.0, 128
      %946 = vxpose.xlu0.b32.cont [15/16] 0.0, 128
      %947 = vxpose.xlu0.b32.end [16/16] 0.0, 128
      %v948 = vpop.trf.xlu0
      %v949 = vpop.trf.xlu0
      %v950 = vpop.trf.xlu0
      %v951 = vpop.trf.xlu0
      %v952 = vpop.trf.xlu0
      %v953 = vpop.trf.xlu0
      %v954 = vpop.trf.xlu0
      %v955 = vpop.trf.xlu0
      %v956 = vpop.trf.xlu0
      %v957 = vpop.trf.xlu0
      %v958 = vpop.trf.xlu0
      %v959 = vpop.trf.xlu0
      %v960 = vpop.trf.xlu0
      %v961 = vpop.trf.xlu0
      %v962 = vpop.trf.xlu0
      %v963 = vpop.trf.xlu0
      %v965 = vsel %vm770, %v948, 0
      %967 = vmatprep.subr.mxu0 0.0
      %968 = vmatpush1.msra.mxu0 %v704
      %969 = vmatprep.subr.mxu0 0.0
      %970 = vmatpush1.msra.mxu0 0.0
      %971 = vmatprep.subr.mxu0 0.0
      %972 = vmatpush1.msra.mxu0 0.0
      %973 = vmatprep.subr.mxu0 0.0
      %974 = vmatpush1.msra.mxu0 0.0
      %975 = vmatprep.subr.mxu0 0.0
      %976 = vmatpush1.msra.mxu0 0.0
      %977 = vmatprep.subr.mxu0 0.0
      %978 = vmatpush1.msra.mxu0 0.0
      %979 = vmatprep.subr.mxu0 0.0
      %980 = vmatpush1.msra.mxu0 0.0
      %981 = vmatprep.subr.mxu0 0.0
      %982 = vmatpush1.msra.mxu0 0.0
      %983 = vmatprep.subr.mxu0 0.0
      %984 = vmatpush1.msra.mxu0 0.0
      %985 = vmatprep.subr.mxu0 0.0
      %986 = vmatpush1.msra.mxu0 0.0
      %987 = vmatprep.subr.mxu0 0.0
      %988 = vmatpush1.msra.mxu0 0.0
      %989 = vmatprep.subr.mxu0 0.0
      %990 = vmatpush1.msra.mxu0 0.0
      %991 = vmatprep.subr.mxu0 0.0
      %992 = vmatpush1.msra.mxu0 0.0
      %993 = vmatprep.subr.mxu0 0.0
      %994 = vmatpush1.msra.mxu0 0.0
      %995 = vmatprep.subr.mxu0 0.0
      %996 = vmatpush1.msra.mxu0 0.0
      %997 = vmatprep.subr.mxu0 0.0
      %998 = vmatpush1.msra.mxu0 0.0
      %999 = vmatprep.subr.mxu0 0.0
      %1000 = vmatpush1.msra.mxu0 0.0
      %1001 = vmatprep.subr.mxu0 0.0
      %1002 = vmatpush1.msra.mxu0 0.0
      %1003 = vmatprep.subr.mxu0 0.0
      %1004 = vmatpush1.msra.mxu0 0.0
      %1005 = vmatprep.subr.mxu0 0.0
      %1006 = vmatpush1.msra.mxu0 0.0
      %1007 = vmatprep.subr.mxu0 0.0
      %1008 = vmatpush1.msra.mxu0 0.0
      %1009 = vmatprep.subr.mxu0 0.0
      %1010 = vmatpush1.msra.mxu0 0.0
      %1011 = vmatprep.subr.mxu0 0.0
      %1012 = vmatpush1.msra.mxu0 0.0
      %1013 = vmatprep.subr.mxu0 0.0
      %1014 = vmatpush1.msra.mxu0 0.0
      %1015 = vmatprep.subr.mxu0 0.0
      %1016 = vmatpush1.msra.mxu0 0.0
      %1017 = vmatprep.subr.mxu0 0.0
      %1018 = vmatpush1.msra.mxu0 0.0
      %1019 = vmatprep.subr.mxu0 0.0
      %1020 = vmatpush1.msra.mxu0 0.0
      %1021 = vmatprep.subr.mxu0 0.0
      %1022 = vmatpush1.msra.mxu0 0.0
      %1023 = vmatprep.subr.mxu0 0.0
      %1024 = vmatpush1.msra.mxu0 0.0
      %1025 = vmatprep.subr.mxu0 0.0
      %1026 = vmatpush1.msra.mxu0 0.0
      %1027 = vmatprep.subr.mxu0 0.0
      %1028 = vmatpush1.msra.mxu0 0.0
      %1029 = vmatprep.subr.mxu0 0.0
      %1030 = vmatpush1.msra.mxu0 0.0
      %1031 = vmatprep.mubr.f32.mxu0 0.0
      %1032 = vmatmul.mubr.f32.gmra.mrb[0].mxu0 %v965
      %v1033 = vpop.f32.mrb[0].mxu0
      %v1034 = vadd.f32 %v464, %v1033
      %v1035 = vpop.f32.mrb[0].mxu0
      %1036 = vdwg.mxu0
      %v1037 = vsel %vm770, %v1034, -inf
      %1038 = vmax.xlane.f32.xlu0 %v1037
      %v1039 = vpop.xlane.xlu0 %1038
      %v1040 = vsub.f32 %v1034, %v1039
      %v1041 = vmul.f32 %v1040, 1.442695
      %v1042 = vpow.pop %v1041
      %v1043 = vsel %vm770, %v1042, 0.0
      %1044 = vadd.xlane.f32.xlu0 %v1043
      %v1045 = vpop.xlane.xlu0 %1044
      %v1046 = vrcp.pop %v1045
      %v1047 = vmul.f32 %v1042, %v1046
      %v1049 = vsel %vm770, %v724, 0
      %v1052 = vsel %vm770, %v1047, 0
      %1054 = vmatprep.subr.mxu0 0.0
      %1055 = vmatpush1.xpose.msra.mxu0 %v1052
      %1056 = vmatprep.subr.mxu0 0.0
      %1057 = vmatpush1.xpose.msra.mxu0 0.0
      %1058 = vmatprep.subr.mxu0 0.0
      %1059 = vmatpush1.xpose.msra.mxu0 0.0
      %1060 = vmatprep.subr.mxu0 0.0
      %1061 = vmatpush1.xpose.msra.mxu0 0.0
      %1062 = vmatprep.subr.mxu0 0.0
      %1063 = vmatpush1.xpose.msra.mxu0 0.0
      %1064 = vmatprep.subr.mxu0 0.0
      %1065 = vmatpush1.xpose.msra.mxu0 0.0
      %1066 = vmatprep.subr.mxu0 0.0
      %1067 = vmatpush1.xpose.msra.mxu0 0.0
      %1068 = vmatprep.subr.mxu0 0.0
      %1069 = vmatpush1.xpose.msra.mxu0 0.0
      %1070 = vmatprep.subr.mxu0 0.0
      %1071 = vmatpush1.xpose.msra.mxu0 0.0
      %1072 = vmatprep.subr.mxu0 0.0
      %1073 = vmatpush1.xpose.msra.mxu0 0.0
      %1074 = vmatprep.subr.mxu0 0.0
      %1075 = vmatpush1.xpose.msra.mxu0 0.0
      %1076 = vmatprep.subr.mxu0 0.0
      %1077 = vmatpush1.xpose.msra.mxu0 0.0
      %1078 = vmatprep.subr.mxu0 0.0
      %1079 = vmatpush1.xpose.msra.mxu0 0.0
      %1080 = vmatprep.subr.mxu0 0.0
      %1081 = vmatpush1.xpose.msra.mxu0 0.0
      %1082 = vmatprep.subr.mxu0 0.0
      %1083 = vmatpush1.xpose.msra.mxu0 0.0
      %1084 = vmatprep.subr.mxu0 0.0
      %1085 = vmatpush1.xpose.msra.mxu0 0.0
      %1086 = vmatprep.subr.mxu0 0.0
      %1087 = vmatpush1.xpose.msra.mxu0 0.0
      %1088 = vmatprep.subr.mxu0 0.0
      %1089 = vmatpush1.xpose.msra.mxu0 0.0
      %1090 = vmatprep.subr.mxu0 0.0
      %1091 = vmatpush1.xpose.msra.mxu0 0.0
      %1092 = vmatprep.subr.mxu0 0.0
      %1093 = vmatpush1.xpose.msra.mxu0 0.0
      %1094 = vmatprep.subr.mxu0 0.0
      %1095 = vmatpush1.xpose.msra.mxu0 0.0
      %1096 = vmatprep.subr.mxu0 0.0
      %1097 = vmatpush1.xpose.msra.mxu0 0.0
      %1098 = vmatprep.subr.mxu0 0.0
      %1099 = vmatpush1.xpose.msra.mxu0 0.0
      %1100 = vmatprep.subr.mxu0 0.0
      %1101 = vmatpush1.xpose.msra.mxu0 0.0
      %1102 = vmatprep.subr.mxu0 0.0
      %1103 = vmatpush1.xpose.msra.mxu0 0.0
      %1104 = vmatprep.subr.mxu0 0.0
      %1105 = vmatpush1.xpose.msra.mxu0 0.0
      %1106 = vmatprep.subr.mxu0 0.0
      %1107 = vmatpush1.xpose.msra.mxu0 0.0
      %1108 = vmatprep.subr.mxu0 0.0
      %1109 = vmatpush1.xpose.msra.mxu0 0.0
      %1110 = vmatprep.subr.mxu0 0.0
      %1111 = vmatpush1.xpose.msra.mxu0 0.0
      %1112 = vmatprep.subr.mxu0 0.0
      %1113 = vmatpush1.xpose.msra.mxu0 0.0
      %1114 = vmatprep.subr.mxu0 0.0
      %1115 = vmatpush1.xpose.msra.mxu0 0.0
      %1116 = vmatprep.subr.mxu0 0.0
      %1117 = vmatpush1.xpose.msra.mxu0 0.0
      %1118 = vmatprep.mubr.f32.mxu0 0.0
      %1119 = vmatmul.mubr.f32.gmra.mrb[0].mxu0 %v1049
      %v1120 = vpop.f32.mrb[0].mxu0
      %v1121 = vadd.f32 0.0, %v1120
      %v1122 = vpop.f32.mrb[0].mxu0
      %1123 = vdwg.mxu0
      %v1124 = vmul.f32 %v689, 0.35355338
      %1125 = vxpose.xlu0.b32.start [1/16] %v1124, 128
      %1126 = vxpose.xlu0.b32.cont [2/16] 0.0, 128
      %1127 = vxpose.xlu0.b32.cont [3/16] 0.0, 128
      %1128 = vxpose.xlu0.b32.cont [4/16] 0.0, 128
      %1129 = vxpose.xlu0.b32.cont [5/16] 0.0, 128
      %1130 = vxpose.xlu0.b32.cont [6/16] 0.0, 128
      %1131 = vxpose.xlu0.b32.cont [7/16] 0.0, 128
      %1132 = vxpose.xlu0.b32.cont [8/16] 0.0, 128
      %1133 = vxpose.xlu0.b32.cont [9/16] 0.0, 128
      %1134 = vxpose.xlu0.b32.cont [10/16] 0.0, 128
      %1135 = vxpose.xlu0.b32.cont [11/16] 0.0, 128
      %1136 = vxpose.xlu0.b32.cont [12/16] 0.0, 128
      %1137 = vxpose.xlu0.b32.cont [13/16] 0.0, 128
      %1138 = vxpose.xlu0.b32.cont [14/16] 0.0, 128
      %1139 = vxpose.xlu0.b32.cont [15/16] 0.0, 128
      %1140 = vxpose.xlu0.b32.end [16/16] 0.0, 128
      %v1141 = vpop.trf.xlu0
      %v1142 = vpop.trf.xlu0
      %v1143 = vpop.trf.xlu0
      %v1144 = vpop.trf.xlu0
      %v1145 = vpop.trf.xlu0
      %v1146 = vpop.trf.xlu0
      %v1147 = vpop.trf.xlu0
      %v1148 = vpop.trf.xlu0
      %v1149 = vpop.trf.xlu0
      %v1150 = vpop.trf.xlu0
      %v1151 = vpop.trf.xlu0
      %v1152 = vpop.trf.xlu0
      %v1153 = vpop.trf.xlu0
      %v1154 = vpop.trf.xlu0
      %v1155 = vpop.trf.xlu0
      %v1156 = vpop.trf.xlu0
      %v1158 = vsel %vm770, %v1141, 0
      %1160 = vmatprep.subr.mxu0 0.0
      %1161 = vmatpush1.msra.mxu0 %v709
      %1162 = vmatprep.subr.mxu0 0.0
      %1163 = vmatpush1.msra.mxu0 0.0
      %1164 = vmatprep.subr.mxu0 0.0
      %1165 = vmatpush1.msra.mxu0 0.0
      %1166 = vmatprep.subr.mxu0 0.0
      %1167 = vmatpush1.msra.mxu0 0.0
      %1168 = vmatprep.subr.mxu0 0.0
      %1169 = vmatpush1.msra.mxu0 0.0
      %1170 = vmatprep.subr.mxu0 0.0
      %1171 = vmatpush1.msra.mxu0 0.0
      %1172 = vmatprep.subr.mxu0 0.0
      %1173 = vmatpush1.msra.mxu0 0.0
      %1174 = vmatprep.subr.mxu0 0.0
      %1175 = vmatpush1.msra.mxu0 0.0
      %1176 = vmatprep.subr.mxu0 0.0
      %1177 = vmatpush1.msra.mxu0 0.0
      %1178 = vmatprep.subr.mxu0 0.0
      %1179 = vmatpush1.msra.mxu0 0.0
      %1180 = vmatprep.subr.mxu0 0.0
      %1181 = vmatpush1.msra.mxu0 0.0
      %1182 = vmatprep.subr.mxu0 0.0
      %1183 = vmatpush1.msra.mxu0 0.0
      %1184 = vmatprep.subr.mxu0 0.0
      %1185 = vmatpush1.msra.mxu0 0.0
      %1186 = vmatprep.subr.mxu0 0.0
      %1187 = vmatpush1.msra.mxu0 0.0
      %1188 = vmatprep.subr.mxu0 0.0
      %1189 = vmatpush1.msra.mxu0 0.0
      %1190 = vmatprep.subr.mxu0 0.0
      %1191 = vmatpush1.msra.mxu0 0.0
      %1192 = vmatprep.subr.mxu0 0.0
      %1193 = vmatpush1.msra.mxu0 0.0
      %1194 = vmatprep.subr.mxu0 0.0
      %1195 = vmatpush1.msra.mxu0 0.0
      %1196 = vmatprep.subr.mxu0 0.0
      %1197 = vmatpush1.msra.mxu0 0.0
      %1198 = vmatprep.subr.mxu0 0.0
      %1199 = vmatpush1.msra.mxu0 0.0
      %1200 = vmatprep.subr.mxu0 0.0
      %1201 = vmatpush1.msra.mxu0 0.0
      %1202 = vmatprep.subr.mxu0 0.0
      %1203 = vmatpush1.msra.mxu0 0.0
      %1204 = vmatprep.subr.mxu0 0.0
      %1205 = vmatpush1.msra.mxu0 0.0
      %1206 = vmatprep.subr.mxu0 0.0
      %1207 = vmatpush1.msra.mxu0 0.0
      %1208 = vmatprep.subr.mxu0 0.0
      %1209 = vmatpush1.msra.mxu0 0.0
      %1210 = vmatprep.subr.mxu0 0.0
      %1211 = vmatpush1.msra.mxu0 0.0
      %1212 = vmatprep.subr.mxu0 0.0
      %1213 = vmatpush1.msra.mxu0 0.0
      %1214 = vmatprep.subr.mxu0 0.0
      %1215 = vmatpush1.msra.mxu0 0.0
      %1216 = vmatprep.subr.mxu0 0.0
      %1217 = vmatpush1.msra.mxu0 0.0
      %1218 = vmatprep.subr.mxu0 0.0
      %1219 = vmatpush1.msra.mxu0 0.0
      %1220 = vmatprep.subr.mxu0 0.0
      %1221 = vmatpush1.msra.mxu0 0.0
      %1222 = vmatprep.subr.mxu0 0.0
      %1223 = vmatpush1.msra.mxu0 0.0
      %1224 = vmatprep.mubr.f32.mxu0 0.0
      %1225 = vmatmul.mubr.f32.gmra.mrb[0].mxu0 %v1158
      %v1226 = vpop.f32.mrb[0].mxu0
      %v1227 = vadd.f32 %v464, %v1226
      %v1228 = vpop.f32.mrb[0].mxu0
      %1229 = vdwg.mxu0
      %v1230 = vsel %vm770, %v1227, -inf
      %1231 = vmax.xlane.f32.xlu0 %v1230
      %v1232 = vpop.xlane.xlu0 %1231
      %v1233 = vsub.f32 %v1227, %v1232
      %v1234 = vmul.f32 %v1233, 1.442695
      %v1235 = vpow.pop %v1234
      %v1236 = vsel %vm770, %v1235, 0.0
      %1237 = vadd.xlane.f32.xlu0 %v1236
      %v1238 = vpop.xlane.xlu0 %1237
      %v1239 = vrcp.pop %v1238
      %v1240 = vmul.f32 %v1235, %v1239
      %v1242 = vsel %vm770, %v729, 0
      %v1245 = vsel %vm770, %v1240, 0
      %1247 = vmatprep.subr.mxu0 0.0
      %1248 = vmatpush1.xpose.msra.mxu0 %v1245
      %1249 = vmatprep.subr.mxu0 0.0
      %1250 = vmatpush1.xpose.msra.mxu0 0.0
      %1251 = vmatprep.subr.mxu0 0.0
      %1252 = vmatpush1.xpose.msra.mxu0 0.0
      %1253 = vmatprep.subr.mxu0 0.0
      %1254 = vmatpush1.xpose.msra.mxu0 0.0
      %1255 = vmatprep.subr.mxu0 0.0
      %1256 = vmatpush1.xpose.msra.mxu0 0.0
      %1257 = vmatprep.subr.mxu0 0.0
      %1258 = vmatpush1.xpose.msra.mxu0 0.0
      %1259 = vmatprep.subr.mxu0 0.0
      %1260 = vmatpush1.xpose.msra.mxu0 0.0
      %1261 = vmatprep.subr.mxu0 0.0
      %1262 = vmatpush1.xpose.msra.mxu0 0.0
      %1263 = vmatprep.subr.mxu0 0.0
      %1264 = vmatpush1.xpose.msra.mxu0 0.0
      %1265 = vmatprep.subr.mxu0 0.0
      %1266 = vmatpush1.xpose.msra.mxu0 0.0
      %1267 = vmatprep.subr.mxu0 0.0
      %1268 = vmatpush1.xpose.msra.mxu0 0.0
      %1269 = vmatprep.subr.mxu0 0.0
      %1270 = vmatpush1.xpose.msra.mxu0 0.0
      %1271 = vmatprep.subr.mxu0 0.0
      %1272 = vmatpush1.xpose.msra.mxu0 0.0
      %1273 = vmatprep.subr.mxu0 0.0
      %1274 = vmatpush1.xpose.msra.mxu0 0.0
      %1275 = vmatprep.subr.mxu0 0.0
      %1276 = vmatpush1.xpose.msra.mxu0 0.0
      %1277 = vmatprep.subr.mxu0 0.0
      %1278 = vmatpush1.xpose.msra.mxu0 0.0
      %1279 = vmatprep.subr.mxu0 0.0
      %1280 = vmatpush1.xpose.msra.mxu0 0.0
      %1281 = vmatprep.subr.mxu0 0.0
      %1282 = vmatpush1.xpose.msra.mxu0 0.0
      %1283 = vmatprep.subr.mxu0 0.0
      %1284 = vmatpush1.xpose.msra.mxu0 0.0
      %1285 = vmatprep.subr.mxu0 0.0
      %1286 = vmatpush1.xpose.msra.mxu0 0.0
      %1287 = vmatprep.subr.mxu0 0.0
      %1288 = vmatpush1.xpose.msra.mxu0 0.0
      %1289 = vmatprep.subr.mxu0 0.0
      %1290 = vmatpush1.xpose.msra.mxu0 0.0
      %1291 = vmatprep.subr.mxu0 0.0
      %1292 = vmatpush1.xpose.msra.mxu0 0.0
      %1293 = vmatprep.subr.mxu0 0.0
      %1294 = vmatpush1.xpose.msra.mxu0 0.0
      %1295 = vmatprep.subr.mxu0 0.0
      %1296 = vmatpush1.xpose.msra.mxu0 0.0
      %1297 = vmatprep.subr.mxu0 0.0
      %1298 = vmatpush1.xpose.msra.mxu0 0.0
      %1299 = vmatprep.subr.mxu0 0.0
      %1300 = vmatpush1.xpose.msra.mxu0 0.0
      %1301 = vmatprep.subr.mxu0 0.0
      %1302 = vmatpush1.xpose.msra.mxu0 0.0
      %1303 = vmatprep.subr.mxu0 0.0
      %1304 = vmatpush1.xpose.msra.mxu0 0.0
      %1305 = vmatprep.subr.mxu0 0.0
      %1306 = vmatpush1.xpose.msra.mxu0 0.0
      %1307 = vmatprep.subr.mxu0 0.0
      %1308 = vmatpush1.xpose.msra.mxu0 0.0
      %1309 = vmatprep.subr.mxu0 0.0
      %1310 = vmatpush1.xpose.msra.mxu0 0.0
      %1311 = vmatprep.mubr.f32.mxu0 0.0
      %1312 = vmatmul.mubr.f32.gmra.mrb[0].mxu0 %v1242
      %v1313 = vpop.f32.mrb[0].mxu0
      %v1314 = vadd.f32 0.0, %v1313
      %v1315 = vpop.f32.mrb[0].mxu0
      %1316 = vdwg.mxu0
      %v1317 = vmul.f32 %v694, 0.35355338
      %1318 = vxpose.xlu0.b32.start [1/16] %v1317, 128
      %1319 = vxpose.xlu0.b32.cont [2/16] 0.0, 128
      %1320 = vxpose.xlu0.b32.cont [3/16] 0.0, 128
      %1321 = vxpose.xlu0.b32.cont [4/16] 0.0, 128
      %1322 = vxpose.xlu0.b32.cont [5/16] 0.0, 128
      %1323 = vxpose.xlu0.b32.cont [6/16] 0.0, 128
      %1324 = vxpose.xlu0.b32.cont [7/16] 0.0, 128
      %1325 = vxpose.xlu0.b32.cont [8/16] 0.0, 128
      %1326 = vxpose.xlu0.b32.cont [9/16] 0.0, 128
      %1327 = vxpose.xlu0.b32.cont [10/16] 0.0, 128
      %1328 = vxpose.xlu0.b32.cont [11/16] 0.0, 128
      %1329 = vxpose.xlu0.b32.cont [12/16] 0.0, 128
      %1330 = vxpose.xlu0.b32.cont [13/16] 0.0, 128
      %1331 = vxpose.xlu0.b32.cont [14/16] 0.0, 128
      %1332 = vxpose.xlu0.b32.cont [15/16] 0.0, 128
      %1333 = vxpose.xlu0.b32.end [16/16] 0.0, 128
      %v1334 = vpop.trf.xlu0
      %v1335 = vpop.trf.xlu0
      %v1336 = vpop.trf.xlu0
      %v1337 = vpop.trf.xlu0
      %v1338 = vpop.trf.xlu0
      %v1339 = vpop.trf.xlu0
      %v1340 = vpop.trf.xlu0
      %v1341 = vpop.trf.xlu0
      %v1342 = vpop.trf.xlu0
      %v1343 = vpop.trf.xlu0
      %v1344 = vpop.trf.xlu0
      %v1345 = vpop.trf.xlu0
      %v1346 = vpop.trf.xlu0
      %v1347 = vpop.trf.xlu0
      %v1348 = vpop.trf.xlu0
      %v1349 = vpop.trf.xlu0
      %v1351 = vsel %vm770, %v1334, 0
      %1353 = vmatprep.subr.mxu0 0.0
      %1354 = vmatpush1.msra.mxu0 %v714
      %1355 = vmatprep.subr.mxu0 0.0
      %1356 = vmatpush1.msra.mxu0 0.0
      %1357 = vmatprep.subr.mxu0 0.0
      %1358 = vmatpush1.msra.mxu0 0.0
      %1359 = vmatprep.subr.mxu0 0.0
      %1360 = vmatpush1.msra.mxu0 0.0
      %1361 = vmatprep.subr.mxu0 0.0
      %1362 = vmatpush1.msra.mxu0 0.0
      %1363 = vmatprep.subr.mxu0 0.0
      %1364 = vmatpush1.msra.mxu0 0.0
      %1365 = vmatprep.subr.mxu0 0.0
      %1366 = vmatpush1.msra.mxu0 0.0
      %1367 = vmatprep.subr.mxu0 0.0
      %1368 = vmatpush1.msra.mxu0 0.0
      %1369 = vmatprep.subr.mxu0 0.0
      %1370 = vmatpush1.msra.mxu0 0.0
      %1371 = vmatprep.subr.mxu0 0.0
      %1372 = vmatpush1.msra.mxu0 0.0
      %1373 = vmatprep.subr.mxu0 0.0
      %1374 = vmatpush1.msra.mxu0 0.0
      %1375 = vmatprep.subr.mxu0 0.0
      %1376 = vmatpush1.msra.mxu0 0.0
      %1377 = vmatprep.subr.mxu0 0.0
      %1378 = vmatpush1.msra.mxu0 0.0
      %1379 = vmatprep.subr.mxu0 0.0
      %1380 = vmatpush1.msra.mxu0 0.0
      %1381 = vmatprep.subr.mxu0 0.0
      %1382 = vmatpush1.msra.mxu0 0.0
      %1383 = vmatprep.subr.mxu0 0.0
      %1384 = vmatpush1.msra.mxu0 0.0
      %1385 = vmatprep.subr.mxu0 0.0
      %1386 = vmatpush1.msra.mxu0 0.0
      %1387 = vmatprep.subr.mxu0 0.0
      %1388 = vmatpush1.msra.mxu0 0.0
      %1389 = vmatprep.subr.mxu0 0.0
      %1390 = vmatpush1.msra.mxu0 0.0
      %1391 = vmatprep.subr.mxu0 0.0
      %1392 = vmatpush1.msra.mxu0 0.0
      %1393 = vmatprep.subr.mxu0 0.0
      %1394 = vmatpush1.msra.mxu0 0.0
      %1395 = vmatprep.subr.mxu0 0.0
      %1396 = vmatpush1.msra.mxu0 0.0
      %1397 = vmatprep.subr.mxu0 0.0
      %1398 = vmatpush1.msra.mxu0 0.0
      %1399 = vmatprep.subr.mxu0 0.0
      %1400 = vmatpush1.msra.mxu0 0.0
      %1401 = vmatprep.subr.mxu0 0.0
      %1402 = vmatpush1.msra.mxu0 0.0
      %1403 = vmatprep.subr.mxu0 0.0
      %1404 = vmatpush1.msra.mxu0 0.0
      %1405 = vmatprep.subr.mxu0 0.0
      %1406 = vmatpush1.msra.mxu0 0.0
      %1407 = vmatprep.subr.mxu0 0.0
      %1408 = vmatpush1.msra.mxu0 0.0
      %1409 = vmatprep.subr.mxu0 0.0
      %1410 = vmatpush1.msra.mxu0 0.0
      %1411 = vmatprep.subr.mxu0 0.0
      %1412 = vmatpush1.msra.mxu0 0.0
      %1413 = vmatprep.subr.mxu0 0.0
      %1414 = vmatpush1.msra.mxu0 0.0
      %1415 = vmatprep.subr.mxu0 0.0
      %1416 = vmatpush1.msra.mxu0 0.0
      %1417 = vmatprep.mubr.f32.mxu0 0.0
      %1418 = vmatmul.mubr.f32.gmra.mrb[0].mxu0 %v1351
      %v1419 = vpop.f32.mrb[0].mxu0
      %v1420 = vadd.f32 %v464, %v1419
      %v1421 = vpop.f32.mrb[0].mxu0
      %1422 = vdwg.mxu0
      %v1423 = vsel %vm770, %v1420, -inf
      %1424 = vmax.xlane.f32.xlu0 %v1423
      %v1425 = vpop.xlane.xlu0 %1424
      %v1426 = vsub.f32 %v1420, %v1425
      %v1427 = vmul.f32 %v1426, 1.442695
      %v1428 = vpow.pop %v1427
      %v1429 = vsel %vm770, %v1428, 0.0
      %1430 = vadd.xlane.f32.xlu0 %v1429
      %v1431 = vpop.xlane.xlu0 %1430
      %v1432 = vrcp.pop %v1431
      %v1433 = vmul.f32 %v1428, %v1432
      %v1435 = vsel %vm770, %v734, 0
      %v1438 = vsel %vm770, %v1433, 0
      %1440 = vmatprep.subr.mxu0 0.0
      %1441 = vmatpush1.xpose.msra.mxu0 %v1438
      %1442 = vmatprep.subr.mxu0 0.0
      %1443 = vmatpush1.xpose.msra.mxu0 0.0
      %1444 = vmatprep.subr.mxu0 0.0
      %1445 = vmatpush1.xpose.msra.mxu0 0.0
      %1446 = vmatprep.subr.mxu0 0.0
      %1447 = vmatpush1.xpose.msra.mxu0 0.0
      %1448 = vmatprep.subr.mxu0 0.0
      %1449 = vmatpush1.xpose.msra.mxu0 0.0
      %1450 = vmatprep.subr.mxu0 0.0
      %1451 = vmatpush1.xpose.msra.mxu0 0.0
      %1452 = vmatprep.subr.mxu0 0.0
      %1453 = vmatpush1.xpose.msra.mxu0 0.0
      %1454 = vmatprep.subr.mxu0 0.0
      %1455 = vmatpush1.xpose.msra.mxu0 0.0
      %1456 = vmatprep.subr.mxu0 0.0
      %1457 = vmatpush1.xpose.msra.mxu0 0.0
      %1458 = vmatprep.subr.mxu0 0.0
      %1459 = vmatpush1.xpose.msra.mxu0 0.0
      %1460 = vmatprep.subr.mxu0 0.0
      %1461 = vmatpush1.xpose.msra.mxu0 0.0
      %1462 = vmatprep.subr.mxu0 0.0
      %1463 = vmatpush1.xpose.msra.mxu0 0.0
      %1464 = vmatprep.subr.mxu0 0.0
      %1465 = vmatpush1.xpose.msra.mxu0 0.0
      %1466 = vmatprep.subr.mxu0 0.0
      %1467 = vmatpush1.xpose.msra.mxu0 0.0
      %1468 = vmatprep.subr.mxu0 0.0
      %1469 = vmatpush1.xpose.msra.mxu0 0.0
      %1470 = vmatprep.subr.mxu0 0.0
      %1471 = vmatpush1.xpose.msra.mxu0 0.0
      %1472 = vmatprep.subr.mxu0 0.0
      %1473 = vmatpush1.xpose.msra.mxu0 0.0
      %1474 = vmatprep.subr.mxu0 0.0
      %1475 = vmatpush1.xpose.msra.mxu0 0.0
      %1476 = vmatprep.subr.mxu0 0.0
      %1477 = vmatpush1.xpose.msra.mxu0 0.0
      %1478 = vmatprep.subr.mxu0 0.0
      %1479 = vmatpush1.xpose.msra.mxu0 0.0
      %1480 = vmatprep.subr.mxu0 0.0
      %1481 = vmatpush1.xpose.msra.mxu0 0.0
      %1482 = vmatprep.subr.mxu0 0.0
      %1483 = vmatpush1.xpose.msra.mxu0 0.0
      %1484 = vmatprep.subr.mxu0 0.0
      %1485 = vmatpush1.xpose.msra.mxu0 0.0
      %1486 = vmatprep.subr.mxu0 0.0
      %1487 = vmatpush1.xpose.msra.mxu0 0.0
      %1488 = vmatprep.subr.mxu0 0.0
      %1489 = vmatpush1.xpose.msra.mxu0 0.0
      %1490 = vmatprep.subr.mxu0 0.0
      %1491 = vmatpush1.xpose.msra.mxu0 0.0
      %1492 = vmatprep.subr.mxu0 0.0
      %1493 = vmatpush1.xpose.msra.mxu0 0.0
      %1494 = vmatprep.subr.mxu0 0.0
      %1495 = vmatpush1.xpose.msra.mxu0 0.0
      %1496 = vmatprep.subr.mxu0 0.0
      %1497 = vmatpush1.xpose.msra.mxu0 0.0
      %1498 = vmatprep.subr.mxu0 0.0
      %1499 = vmatpush1.xpose.msra.mxu0 0.0
      %1500 = vmatprep.subr.mxu0 0.0
      %1501 = vmatpush1.xpose.msra.mxu0 0.0
      %1502 = vmatprep.subr.mxu0 0.0
      %1503 = vmatpush1.xpose.msra.mxu0 0.0
      %1504 = vmatprep.mubr.f32.mxu0 0.0
      %1505 = vmatmul.mubr.f32.gmra.mrb[0].mxu0 %v1435
      %v1506 = vpop.f32.mrb[0].mxu0
      %v1507 = vadd.f32 0.0, %v1506
      %v1508 = vpop.f32.mrb[0].mxu0
      %1509 = vdwg.mxu0
      %1510 = vxpose.xlu0.b32.start [1/16] %v928, 128
      %1511 = vxpose.xlu0.b32.cont [2/16] %v1121, 128
      %1512 = vxpose.xlu0.b32.cont [3/16] %v1314, 128
      %1513 = vxpose.xlu0.b32.cont [4/16] %v1507, 128
      %1514 = vxpose.xlu0.b32.cont [5/16] 0.0, 128
      %1515 = vxpose.xlu0.b32.cont [6/16] 0.0, 128
      %1516 = vxpose.xlu0.b32.cont [7/16] 0.0, 128
      %1517 = vxpose.xlu0.b32.cont [8/16] 0.0, 128
      %1518 = vxpose.xlu0.b32.cont [9/16] 0.0, 128
      %1519 = vxpose.xlu0.b32.cont [10/16] 0.0, 128
      %1520 = vxpose.xlu0.b32.cont [11/16] 0.0, 128
      %1521 = vxpose.xlu0.b32.cont [12/16] 0.0, 128
      %1522 = vxpose.xlu0.b32.cont [13/16] 0.0, 128
      %1523 = vxpose.xlu0.b32.cont [14/16] 0.0, 128
      %1524 = vxpose.xlu0.b32.cont [15/16] 0.0, 128
      %1525 = vxpose.xlu0.b32.end [16/16] 0.0, 128
      %v1526 = vpop.trf.xlu0
      %v1527 = vpop.trf.xlu0
      %v1528 = vpop.trf.xlu0
      %v1529 = vpop.trf.xlu0
      %v1530 = vpop.trf.xlu0
      %v1531 = vpop.trf.xlu0
      %v1532 = vpop.trf.xlu0
      %v1533 = vpop.trf.xlu0
      %v1534 = vpop.trf.xlu0
      %v1535 = vpop.trf.xlu0
      %v1536 = vpop.trf.xlu0
      %v1537 = vpop.trf.xlu0
      %v1538 = vpop.trf.xlu0
      %v1539 = vpop.trf.xlu0
      %v1540 = vpop.trf.xlu0
      %v1541 = vpop.trf.xlu0
      %v1543 = vlaneseq
      %v1544 = vshrl.u32 %v1543, 7
      %v1545 = vsub.s32 0, %v1544
      %v1546 = vrot.slane %v493, %v1545
      %v1549 = vsel %vm572, %v1526, 0
      %1551 = vmatprep.subr.mxu0 0.0
      %1552 = vmatpush1.msra.mxu0 %v489
      %1553 = vmatprep.subr.mxu0 0.0
      %1554 = vmatpush1.msra.mxu0 %v490
      %1555 = vmatprep.subr.mxu0 0.0
      %1556 = vmatpush1.msra.mxu0 %v491
      %1557 = vmatprep.subr.mxu0 0.0
      %1558 = vmatpush1.msra.mxu0 %v492
      %1559 = vmatprep.subr.mxu0 0.0
      %1560 = vmatpush1.msra.mxu0 0.0
      %1561 = vmatprep.subr.mxu0 0.0
      %1562 = vmatpush1.msra.mxu0 0.0
      %1563 = vmatprep.subr.mxu0 0.0
      %1564 = vmatpush1.msra.mxu0 0.0
      %1565 = vmatprep.subr.mxu0 0.0
      %1566 = vmatpush1.msra.mxu0 0.0
      %1567 = vmatprep.subr.mxu0 0.0
      %1568 = vmatpush1.msra.mxu0 0.0
      %1569 = vmatprep.subr.mxu0 0.0
      %1570 = vmatpush1.msra.mxu0 0.0
      %1571 = vmatprep.subr.mxu0 0.0
      %1572 = vmatpush1.msra.mxu0 0.0
      %1573 = vmatprep.subr.mxu0 0.0
      %1574 = vmatpush1.msra.mxu0 0.0
      %1575 = vmatprep.subr.mxu0 0.0
      %1576 = vmatpush1.msra.mxu0 0.0
      %1577 = vmatprep.subr.mxu0 0.0
      %1578 = vmatpush1.msra.mxu0 0.0
      %1579 = vmatprep.subr.mxu0 0.0
      %1580 = vmatpush1.msra.mxu0 0.0
      %1581 = vmatprep.subr.mxu0 0.0
      %1582 = vmatpush1.msra.mxu0 0.0
      %1583 = vmatprep.subr.mxu0 0.0
      %1584 = vmatpush1.msra.mxu0 0.0
      %1585 = vmatprep.subr.mxu0 0.0
      %1586 = vmatpush1.msra.mxu0 0.0
      %1587 = vmatprep.subr.mxu0 0.0
      %1588 = vmatpush1.msra.mxu0 0.0
      %1589 = vmatprep.subr.mxu0 0.0
      %1590 = vmatpush1.msra.mxu0 0.0
      %1591 = vmatprep.subr.mxu0 0.0
      %1592 = vmatpush1.msra.mxu0 0.0
      %1593 = vmatprep.subr.mxu0 0.0
      %1594 = vmatpush1.msra.mxu0 0.0
      %1595 = vmatprep.subr.mxu0 0.0
      %1596 = vmatpush1.msra.mxu0 0.0
      %1597 = vmatprep.subr.mxu0 0.0
      %1598 = vmatpush1.msra.mxu0 0.0
      %1599 = vmatprep.subr.mxu0 0.0
      %1600 = vmatpush1.msra.mxu0 0.0
      %1601 = vmatprep.subr.mxu0 0.0
      %1602 = vmatpush1.msra.mxu0 0.0
      %1603 = vmatprep.subr.mxu0 0.0
      %1604 = vmatpush1.msra.mxu0 0.0
      %1605 = vmatprep.subr.mxu0 0.0
      %1606 = vmatpush1.msra.mxu0 0.0
      %1607 = vmatprep.subr.mxu0 0.0
      %1608 = vmatpush1.msra.mxu0 0.0
      %1609 = vmatprep.subr.mxu0 0.0
      %1610 = vmatpush1.msra.mxu0 0.0
      %1611 = vmatprep.subr.mxu0 0.0
      %1612 = vmatpush1.msra.mxu0 0.0
      %1613 = vmatprep.subr.mxu0 0.0
      %1614 = vmatpush1.msra.mxu0 0.0
      %1615 = vmatprep.mubr.f32.mxu0 0.0
      %1616 = vmatmul.mubr.f32.gmra.mrb[0].mxu0 %v1549
      %v1617 = vpop.f32.mrb[0].mxu0
      %v1618 = vadd.f32 %v1546, %v1617
      %v1619 = vpop.f32.mrb[0].mxu0
      %1620 = vdwg.mxu0
      %v1621 = vadd.f32 %v463, %v1618
      %v1622 = vsel %vm572, %v1621, 0.0
      %1623 = vadd.xlane.f32.xlu0 %v1622
      %v1624 = vpop.xlane.xlu0 %1623
      %v1625 = vrcp.pop 32.0
      %v1626 = vmul.f32 %v1624, %v1625
      %v1627 = vsub.f32 %v1621, %v1626
      %v1628 = vmul.f32 %v1627, %v1627
      %v1629 = vsel %vm572, %v1628, 0.0
      %1630 = vadd.xlane.f32.xlu0 %v1629
      %v1631 = vpop.xlane.xlu0 %1630
      %v1632 = vmul.f32 %v1631, %v1625
      %v1633 = vadd.f32 %v1632, 1e-05
      %v1634 = vrsqrt.pop %v1633
      %v1635 = vmul.f32 %v1627, %v1634
      %v1637 = vlaneseq
      %v1638 = vshrl.u32 %v1637, 7
      %v1639 = vsub.s32 0, %v1638
      %v1640 = vrot.slane %v508, %v1639
      %v1642 = vmul.f32 %v1635, %v1640
      %v1644 = vlaneseq
      %v1645 = vshrl.u32 %v1644, 7
      %v1646 = vsub.s32 0, %v1645
      %v1647 = vrot.slane %v509, %v1646
      %v1649 = vadd.f32 %v1642, %v1647
      %v1651 = vlaneseq
      %v1652 = vshrl.u32 %v1651, 7
      %v1653 = vsub.s32 0, %v1652
      %v1654 = vrot.slane %v498, %v1653
      %v1657 = vsel %vm572, %v1649, 0
      %1659 = vmatprep.subr.mxu0 0.0
      %1660 = vmatpush1.msra.mxu0 %v494
      %1661 = vmatprep.subr.mxu0 0.0
      %1662 = vmatpush1.msra.mxu0 %v495
      %1663 = vmatprep.subr.mxu0 0.0
      %1664 = vmatpush1.msra.mxu0 %v496
      %1665 = vmatprep.subr.mxu0 0.0
      %1666 = vmatpush1.msra.mxu0 %v497
      %1667 = vmatprep.subr.mxu0 0.0
      %1668 = vmatpush1.msra.mxu0 0.0
      %1669 = vmatprep.subr.mxu0 0.0
      %1670 = vmatpush1.msra.mxu0 0.0
      %1671 = vmatprep.subr.mxu0 0.0
      %1672 = vmatpush1.msra.mxu0 0.0
      %1673 = vmatprep.subr.mxu0 0.0
      %1674 = vmatpush1.msra.mxu0 0.0
      %1675 = vmatprep.subr.mxu0 0.0
      %1676 = vmatpush1.msra.mxu0 0.0
      %1677 = vmatprep.subr.mxu0 0.0
      %1678 = vmatpush1.msra.mxu0 0.0
      %1679 = vmatprep.subr.mxu0 0.0
      %1680 = vmatpush1.msra.mxu0 0.0
      %1681 = vmatprep.subr.mxu0 0.0
      %1682 = vmatpush1.msra.mxu0 0.0
      %1683 = vmatprep.subr.mxu0 0.0
      %1684 = vmatpush1.msra.mxu0 0.0
      %1685 = vmatprep.subr.mxu0 0.0
      %1686 = vmatpush1.msra.mxu0 0.0
      %1687 = vmatprep.subr.mxu0 0.0
      %1688 = vmatpush1.msra.mxu0 0.0
      %1689 = vmatprep.subr.mxu0 0.0
      %1690 = vmatpush1.msra.mxu0 0.0
      %1691 = vmatprep.subr.mxu0 0.0
      %1692 = vmatpush1.msra.mxu0 0.0
      %1693 = vmatprep.subr.mxu0 0.0
      %1694 = vmatpush1.msra.mxu0 0.0
      %1695 = vmatprep.subr.mxu0 0.0
      %1696 = vmatpush1.msra.mxu0 0.0
      %1697 = vmatprep.subr.mxu0 0.0
      %1698 = vmatpush1.msra.mxu0 0.0
      %1699 = vmatprep.subr.mxu0 0.0
      %1700 = vmatpush1.msra.mxu0 0.0
      %1701 = vmatprep.subr.mxu0 0.0
      %1702 = vmatpush1.msra.mxu0 0.0
      %1703 = vmatprep.subr.mxu0 0.0
      %1704 = vmatpush1.msra.mxu0 0.0
      %1705 = vmatprep.subr.mxu0 0.0
      %1706 = vmatpush1.msra.mxu0 0.0
      %1707 = vmatprep.subr.mxu0 0.0
      %1708 = vmatpush1.msra.mxu0 0.0
      %1709 = vmatprep.subr.mxu0 0.0
      %1710 = vmatpush1.msra.mxu0 0.0
      %1711 = vmatprep.subr.mxu0 0.0
      %1712 = vmatpush1.msra.mxu0 0.0
      %1713 = vmatprep.subr.mxu0 0.0
      %1714 = vmatpush1.msra.mxu0 0.0
      %1715 = vmatprep.subr.mxu0 0.0
      %1716 = vmatpush1.msra.mxu0 0.0
      %1717 = vmatprep.subr.mxu0 0.0
      %1718 = vmatpush1.msra.mxu0 0.0
      %1719 = vmatprep.subr.mxu0 0.0
      %1720 = vmatpush1.msra.mxu0 0.0
      %1721 = vmatprep.subr.mxu0 0.0
      %1722 = vmatpush1.msra.mxu0 0.0
      %1723 = vmatprep.mubr.f32.mxu0 0.0
      %1724 = vmatmul.mubr.f32.gmra.mrb[0].mxu0 %v1657
      %v1725 = vpop.f32.mrb[0].mxu0
      %v1726 = vadd.f32 %v1654, %v1725
      %v1727 = vpop.f32.mrb[0].mxu0
      %1728 = vdwg.mxu0
      %v1729 = vmax.f32 %v1726, 0.0
      %v1731 = vlaneseq
      %v1732 = vshrl.u32 %v1731, 7
      %v1733 = vsub.s32 0, %v1732
      %v1734 = vrot.slane %v507, %v1733
      %vm1736 = vcmask 523264
      %v1738 = vsel %vm1736, %v1729, 0
      %1740 = vmatprep.subr.mxu0 0.0
      %1741 = vmatpush1.msra.mxu0 %v499
      %1742 = vmatprep.subr.mxu0 0.0
      %1743 = vmatpush1.msra.mxu0 %v500
      %1744 = vmatprep.subr.mxu0 0.0
      %1745 = vmatpush1.msra.mxu0 %v501
      %1746 = vmatprep.subr.mxu0 0.0
      %1747 = vmatpush1.msra.mxu0 %v502
      %1748 = vmatprep.subr.mxu0 0.0
      %1749 = vmatpush1.msra.mxu0 %v503
      %1750 = vmatprep.subr.mxu0 0.0
      %1751 = vmatpush1.msra.mxu0 %v504
      %1752 = vmatprep.subr.mxu0 0.0
      %1753 = vmatpush1.msra.mxu0 %v505
      %1754 = vmatprep.subr.mxu0 0.0
      %1755 = vmatpush1.msra.mxu0 %v506
      %1756 = vmatprep.subr.mxu0 0.0
      %1757 = vmatpush1.msra.mxu0 0.0
      %1758 = vmatprep.subr.mxu0 0.0
      %1759 = vmatpush1.msra.mxu0 0.0
      %1760 = vmatprep.subr.mxu0 0.0
      %1761 = vmatpush1.msra.mxu0 0.0
      %1762 = vmatprep.subr.mxu0 0.0
      %1763 = vmatpush1.msra.mxu0 0.0
      %1764 = vmatprep.subr.mxu0 0.0
      %1765 = vmatpush1.msra.mxu0 0.0
      %1766 = vmatprep.subr.mxu0 0.0
      %1767 = vmatpush1.msra.mxu0 0.0
      %1768 = vmatprep.subr.mxu0 0.0
      %1769 = vmatpush1.msra.mxu0 0.0
      %1770 = vmatprep.subr.mxu0 0.0
      %1771 = vmatpush1.msra.mxu0 0.0
      %1772 = vmatprep.subr.mxu0 0.0
      %1773 = vmatpush1.msra.mxu0 0.0
      %1774 = vmatprep.subr.mxu0 0.0
      %1775 = vmatpush1.msra.mxu0 0.0
      %1776 = vmatprep.subr.mxu0 0.0
      %1777 = vmatpush1.msra.mxu0 0.0
      %1778 = vmatprep.subr.mxu0 0.0
      %1779 = vmatpush1.msra.mxu0 0.0
      %1780 = vmatprep.subr.mxu0 0.0
      %1781 = vmatpush1.msra.mxu0 0.0
      %1782 = vmatprep.subr.mxu0 0.0
      %1783 = vmatpush1.msra.mxu0 0.0
      %1784 = vmatprep.subr.mxu0 0.0
      %1785 = vmatpush1.msra.mxu0 0.0
      %1786 = vmatprep.subr.mxu0 0.0
      %1787 = vmatpush1.msra.mxu0 0.0
      %1788 = vmatprep.subr.mxu0 0.0
      %1789 = vmatpush1.msra.mxu0 0.0
      %1790 = vmatprep.subr.mxu0 0.0
      %1791 = vmatpush1.msra.mxu0 0.0
      %1792 = vmatprep.subr.mxu0 0.0
      %1793 = vmatpush1.msra.mxu0 0.0
      %1794 = vmatprep.subr.mxu0 0.0
      %1795 = vmatpush1.msra.mxu0 0.0
      %1796 = vmatprep.subr.mxu0 0.0
      %1797 = vmatpush1.msra.mxu0 0.0
      %1798 = vmatprep.subr.mxu0 0.0
      %1799 = vmatpush1.msra.mxu0 0.0
      %1800 = vmatprep.subr.mxu0 0.0
      %1801 = vmatpush1.msra.mxu0 0.0
      %1802 = vmatprep.subr.mxu0 0.0
      %1803 = vmatpush1.msra.mxu0 0.0
      %1804 = vmatprep.mubr.f32.mxu0 0.0
      %1805 = vmatmul.mubr.f32.gmra.mrb[0].mxu0 %v1738
      %v1806 = vpop.f32.mrb[0].mxu0
      %v1807 = vadd.f32 %v1734, %v1806
      %v1808 = vpop.f32.mrb[0].mxu0
      %1809 = vdwg.mxu0
      %v1810 = vadd.f32 %v1649, %v1807
      %v1811 = vsel %vm572, %v1810, 0.0
      %1812 = vadd.xlane.f32.xlu0 %v1811
      %v1813 = vpop.xlane.xlu0 %1812
      %v1814 = vmul.f32 %v1813, %v1625
      %v1815 = vsub.f32 %v1810, %v1814
      %v1816 = vmul.f32 %v1815, %v1815
      %v1817 = vsel %vm572, %v1816, 0.0
      %1818 = vadd.xlane.f32.xlu0 %v1817
      %v1819 = vpop.xlane.xlu0 %1818
      %v1820 = vmul.f32 %v1819, %v1625
      %v1821 = vadd.f32 %v1820, 1e-05
      %v1822 = vrsqrt.pop %v1821
      %v1823 = vmul.f32 %v1815, %v1822
      %v1825 = vlaneseq
      %v1826 = vshrl.u32 %v1825, 7
      %v1827 = vsub.s32 0, %v1826
      %v1828 = vrot.slane %v510, %v1827
      %v1830 = vmul.f32 %v1823, %v1828
      %v1832 = vlaneseq
      %v1833 = vshrl.u32 %v1832, 7
      %v1834 = vsub.s32 0, %v1833
      %v1835 = vrot.slane %v511, %v1834
      %v1837 = vadd.f32 %v1830, %v1835
      %v1839 = vsel %vm572, %v1837, 0
      %1841 = vmatprep.subr.mxu0 0.0
      %1842 = vmatpush1.xpose.msra.mxu0 %v1839
      %1843 = vmatprep.subr.mxu0 0.0
      %1844 = vmatpush1.xpose.msra.mxu0 0.0
      %1845 = vmatprep.subr.mxu0 0.0
      %1846 = vmatpush1.xpose.msra.mxu0 0.0
      %1847 = vmatprep.subr.mxu0 0.0
      %1848 = vmatpush1.xpose.msra.mxu0 0.0
      %1849 = vmatprep.subr.mxu0 0.0
      %1850 = vmatpush1.xpose.msra.mxu0 0.0
      %1851 = vmatprep.subr.mxu0 0.0
      %1852 = vmatpush1.xpose.msra.mxu0 0.0
      %1853 = vmatprep.subr.mxu0 0.0
      %1854 = vmatpush1.xpose.msra.mxu0 0.0
      %1855 = vmatprep.subr.mxu0 0.0
      %1856 = vmatpush1.xpose.msra.mxu0 0.0
      %1857 = vmatprep.subr.mxu0 0.0
      %1858 = vmatpush1.xpose.msra.mxu0 0.0
      %1859 = vmatprep.subr.mxu0 0.0
      %1860 = vmatpush1.xpose.msra.mxu0 0.0
      %1861 = vmatprep.subr.mxu0 0.0
      %1862 = vmatpush1.xpose.msra.mxu0 0.0
      %1863 = vmatprep.subr.mxu0 0.0
      %1864 = vmatpush1.xpose.msra.mxu0 0.0
      %1865 = vmatprep.subr.mxu0 0.0
      %1866 = vmatpush1.xpose.msra.mxu0 0.0
      %1867 = vmatprep.subr.mxu0 0.0
      %1868 = vmatpush1.xpose.msra.mxu0 0.0
      %1869 = vmatprep.subr.mxu0 0.0
      %1870 = vmatpush1.xpose.msra.mxu0 0.0
      %1871 = vmatprep.subr.mxu0 0.0
      %1872 = vmatpush1.xpose.msra.mxu0 0.0
      %1873 = vmatprep.subr.mxu0 0.0
      %1874 = vmatpush1.xpose.msra.mxu0 0.0
      %1875 = vmatprep.subr.mxu0 0.0
      %1876 = vmatpush1.xpose.msra.mxu0 0.0
      %1877 = vmatprep.subr.mxu0 0.0
      %1878 = vmatpush1.xpose.msra.mxu0 0.0
      %1879 = vmatprep.subr.mxu0 0.0
      %1880 = vmatpush1.xpose.msra.mxu0 0.0
      %1881 = vmatprep.subr.mxu0 0.0
      %1882 = vmatpush1.xpose.msra.mxu0 0.0
      %1883 = vmatprep.subr.mxu0 0.0
      %1884 = vmatpush1.xpose.msra.mxu0 0.0
      %1885 = vmatprep.subr.mxu0 0.0
      %1886 = vmatpush1.xpose.msra.mxu0 0.0
      %1887 = vmatprep.subr.mxu0 0.0
      %1888 = vmatpush1.xpose.msra.mxu0 0.0
      %1889 = vmatprep.subr.mxu0 0.0
      %1890 = vmatpush1.xpose.msra.mxu0 0.0
      %1891 = vmatprep.subr.mxu0 0.0
      %1892 = vmatpush1.xpose.msra.mxu0 0.0
      %1893 = vmatprep.subr.mxu0 0.0
      %1894 = vmatpush1.xpose.msra.mxu0 0.0
      %1895 = vmatprep.subr.mxu0 0.0
      %1896 = vmatpush1.xpose.msra.mxu0 0.0
      %1897 = vmatprep.subr.mxu0 0.0
      %1898 = vmatpush1.xpose.msra.mxu0 0.0
      %1899 = vmatprep.subr.mxu0 0.0
      %1900 = vmatpush1.xpose.msra.mxu0 0.0
      %1901 = vmatprep.subr.mxu0 0.0
      %1902 = vmatpush1.xpose.msra.mxu0 0.0
      %1903 = vmatprep.subr.mxu0 0.0
      %1904 = vmatpush1.xpose.msra.mxu0 0.0
      %1905 = vmatprep.mubr.f32.mxu0 0.0
      %1906 = vmatmul.mubr.f32.gmra.mrb[0].mxu0 %v574
      %v1907 = vpop.f32.mrb[0].mxu0
      %v1908 = vadd.f32 %v515, %v1907
      %v1909 = vpop.f32.mrb[0].mxu0
      %1910 = vmatprep.mubr.f32.mxu0 0.0
      %1911 = vmatmul.mubr.f32.gmra.mrb[0].mxu0 %v577
      %v1912 = vpop.f32.mrb[0].mxu0
      %v1913 = vadd.f32 %v520, %v1912
      %v1914 = vpop.f32.mrb[0].mxu0
      %1915 = vmatprep.mubr.f32.mxu0 0.0
      %1916 = vmatmul.mubr.f32.gmra.mrb[0].mxu0 %v580
      %v1917 = vpop.f32.mrb[0].mxu0
      %v1918 = vadd.f32 %v525, %v1917
      %v1919 = vpop.f32.mrb[0].mxu0
      %1920 = vmatprep.mubr.f32.mxu0 0.0
      %1921 = vmatmul.mubr.f32.gmra.mrb[0].mxu0 %v583
      %v1922 = vpop.f32.mrb[0].mxu0
      %v1923 = vadd.f32 %v530, %v1922
      %v1924 = vpop.f32.mrb[0].mxu0
      %1925 = vmatprep.mubr.f32.mxu0 0.0
      %1926 = vmatmul.mubr.f32.gmra.mrb[0].mxu0 %v586
      %v1927 = vpop.f32.mrb[0].mxu0
      %v1928 = vadd.f32 %v535, %v1927
      %v1929 = vpop.f32.mrb[0].mxu0
      %1930 = vmatprep.mubr.f32.mxu0 0.0
      %1931 = vmatmul.mubr.f32.gmra.mrb[0].mxu0 %v589
      %v1932 = vpop.f32.mrb[0].mxu0
      %v1933 = vadd.f32 %v540, %v1932
      %v1934 = vpop.f32.mrb[0].mxu0
      %1935 = vmatprep.mubr.f32.mxu0 0.0
      %1936 = vmatmul.mubr.f32.gmra.mrb[0].mxu0 %v592
      %v1937 = vpop.f32.mrb[0].mxu0
      %v1938 = vadd.f32 %v545, %v1937
      %v1939 = vpop.f32.mrb[0].mxu0
      %1940 = vmatprep.mubr.f32.mxu0 0.0
      %1941 = vmatmul.mubr.f32.gmra.mrb[0].mxu0 %v595
      %v1942 = vpop.f32.mrb[0].mxu0
      %v1943 = vadd.f32 %v550, %v1942
      %v1944 = vpop.f32.mrb[0].mxu0
      %1945 = vmatprep.mubr.f32.mxu0 0.0
      %1946 = vmatmul.mubr.f32.gmra.mrb[0].mxu0 %v598
      %v1947 = vpop.f32.mrb[0].mxu0
      %v1948 = vadd.f32 %v555, %v1947
      %v1949 = vpop.f32.mrb[0].mxu0
      %1950 = vmatprep.mubr.f32.mxu0 0.0
      %1951 = vmatmul.mubr.f32.gmra.mrb[0].mxu0 %v601
      %v1952 = vpop.f32.mrb[0].mxu0
      %v1953 = vadd.f32 %v560, %v1952
      %v1954 = vpop.f32.mrb[0].mxu0
      %1955 = vmatprep.mubr.f32.mxu0 0.0
      %1956 = vmatmul.mubr.f32.gmra.mrb[0].mxu0 %v604
      %v1957 = vpop.f32.mrb[0].mxu0
      %v1958 = vadd.f32 %v565, %v1957
      %v1959 = vpop.f32.mrb[0].mxu0
      %1960 = vmatprep.mubr.f32.mxu0 0.0
      %1961 = vmatmul.mubr.f32.gmra.mrb[0].mxu0 %v607
      %v1962 = vpop.f32.mrb[0].mxu0
      %v1963 = vadd.f32 %v570, %v1962
      %v1964 = vpop.f32.mrb[0].mxu0
      %1965 = vdwg.mxu0
      %v1966 = vmul.f32 %v1908, 0.35355338
      %1967 = vxpose.xlu0.b32.start [1/16] %v1966, 128
      %1968 = vxpose.xlu0.b32.cont [2/16] 0.0, 128
      %1969 = vxpose.xlu0.b32.cont [3/16] 0.0, 128
      %1970 = vxpose.xlu0.b32.cont [4/16] 0.0, 128
      %1971 = vxpose.xlu0.b32.cont [5/16] 0.0, 128
      %1972 = vxpose.xlu0.b32.cont [6/16] 0.0, 128
      %1973 = vxpose.xlu0.b32.cont [7/16] 0.0, 128
      %1974 = vxpose.xlu0.b32.cont [8/16] 0.0, 128
      %1975 = vxpose.xlu0.b32.cont [9/16] 0.0, 128
      %1976 = vxpose.xlu0.b32.cont [10/16] 0.0, 128
      %1977 = vxpose.xlu0.b32.cont [11/16] 0.0, 128
      %1978 = vxpose.xlu0.b32.cont [12/16] 0.0, 128
      %1979 = vxpose.xlu0.b32.cont [13/16] 0.0, 128
      %1980 = vxpose.xlu0.b32.cont [14/16] 0.0, 128
      %1981 = vxpose.xlu0.b32.cont [15/16] 0.0, 128
      %1982 = vxpose.xlu0.b32.end [16/16] 0.0, 128
      %v1983 = vpop.trf.xlu0
      %v1984 = vpop.trf.xlu0
      %v1985 = vpop.trf.xlu0
      %v1986 = vpop.trf.xlu0
      %v1987 = vpop.trf.xlu0
      %v1988 = vpop.trf.xlu0
      %v1989 = vpop.trf.xlu0
      %v1990 = vpop.trf.xlu0
      %v1991 = vpop.trf.xlu0
      %v1992 = vpop.trf.xlu0
      %v1993 = vpop.trf.xlu0
      %v1994 = vpop.trf.xlu0
      %v1995 = vpop.trf.xlu0
      %v1996 = vpop.trf.xlu0
      %v1997 = vpop.trf.xlu0
      %v1998 = vpop.trf.xlu0
      %v2000 = vsel %vm770, %v1983, 0
      %2002 = vmatprep.subr.mxu0 0.0
      %2003 = vmatpush1.msra.mxu0 %v1928
      %2004 = vmatprep.subr.mxu0 0.0
      %2005 = vmatpush1.msra.mxu0 0.0
      %2006 = vmatprep.subr.mxu0 0.0
      %2007 = vmatpush1.msra.mxu0 0.0
      %2008 = vmatprep.subr.mxu0 0.0
      %2009 = vmatpush1.msra.mxu0 0.0
      %2010 = vmatprep.subr.mxu0 0.0
      %2011 = vmatpush1.msra.mxu0 0.0
      %2012 = vmatprep.subr.mxu0 0.0
      %2013 = vmatpush1.msra.mxu0 0.0
      %2014 = vmatprep.subr.mxu0 0.0
      %2015 = vmatpush1.msra.mxu0 0.0
      %2016 = vmatprep.subr.mxu0 0.0
      %2017 = vmatpush1.msra.mxu0 0.0
      %2018 = vmatprep.subr.mxu0 0.0
      %2019 = vmatpush1.msra.mxu0 0.0
      %2020 = vmatprep.subr.mxu0 0.0
      %2021 = vmatpush1.msra.mxu0 0.0
      %2022 = vmatprep.subr.mxu0 0.0
      %2023 = vmatpush1.msra.mxu0 0.0
      %2024 = vmatprep.subr.mxu0 0.0
      %2025 = vmatpush1.msra.mxu0 0.0
      %2026 = vmatprep.subr.mxu0 0.0
      %2027 = vmatpush1.msra.mxu0 0.0
      %2028 = vmatprep.subr.mxu0 0.0
      %2029 = vmatpush1.msra.mxu0 0.0
      %2030 = vmatprep.subr.mxu0 0.0
      %2031 = vmatpush1.msra.mxu0 0.0
      %2032 = vmatprep.subr.mxu0 0.0
      %2033 = vmatpush1.msra.mxu0 0.0
      %2034 = vmatprep.subr.mxu0 0.0
      %2035 = vmatpush1.msra.mxu0 0.0
      %2036 = vmatprep.subr.mxu0 0.0
      %2037 = vmatpush1.msra.mxu0 0.0
      %2038 = vmatprep.subr.mxu0 0.0
      %2039 = vmatpush1.msra.mxu0 0.0
      %2040 = vmatprep.subr.mxu0 0.0
      %2041 = vmatpush1.msra.mxu0 0.0
      %2042 = vmatprep.subr.mxu0 0.0
      %2043 = vmatpush1.msra.mxu0 0.0
      %2044 = vmatprep.subr.mxu0 0.0
      %2045 = vmatpush1.msra.mxu0 0.0
      %2046 = vmatprep.subr.mxu0 0.0
      %2047 = vmatpush1.msra.mxu0 0.0
      %2048 = vmatprep.subr.mxu0 0.0
      %2049 = vmatpush1.msra.mxu0 0.0
      %2050 = vmatprep.subr.mxu0 0.0
      %2051 = vmatpush1.msra.mxu0 0.0
      %2052 = vmatprep.subr.mxu0 0.0
      %2053 = vmatpush1.msra.mxu0 0.0
      %2054 = vmatprep.subr.mxu0 0.0
      %2055 = vmatpush1.msra.mxu0 0.0
      %2056 = vmatprep.subr.mxu0 0.0
      %2057 = vmatpush1.msra.mxu0 0.0
      %2058 = vmatprep.subr.mxu0 0.0
      %2059 = vmatpush1.msra.mxu0 0.0
      %2060 = vmatprep.subr.mxu0 0.0
      %2061 = vmatpush1.msra.mxu0 0.0
      %2062 = vmatprep.subr.mxu0 0.0
      %2063 = vmatpush1.msra.mxu0 0.0
      %2064 = vmatprep.subr.mxu0 0.0
      %2065 = vmatpush1.msra.mxu0 0.0
      %2066 = vmatprep.mubr.f32.mxu0 0.0
      %2067 = vmatmul.mubr.f32.gmra.mrb[0].mxu0 %v2000
      %v2068 = vpop.f32.mrb[0].mxu0
      %v2069 = vadd.f32 %v464, %v2068
      %v2070 = vpop.f32.mrb[0].mxu0
      %2071 = vdwg.mxu0
      %v2072 = vsel %vm770, %v2069, -inf
      %2073 = vmax.xlane.f32.xlu0 %v2072
      %v2074 = vpop.xlane.xlu0 %2073
      %v2075 = vsub.f32 %v2069, %v2074
      %v2076 = vmul.f32 %v2075, 1.442695
      %v2077 = vpow.pop %v2076
      %v2078 = vsel %vm770, %v2077, 0.0
      %2079 = vadd.xlane.f32.xlu0 %v2078
      %v2080 = vpop.xlane.xlu0 %2079
      %v2081 = vrcp.pop %v2080
      %v2082 = vmul.f32 %v2077, %v2081
      %v2084 = vsel %vm770, %v1948, 0
      %v2087 = vsel %vm770, %v2082, 0
      %2089 = vmatprep.subr.mxu0 0.0
      %2090 = vmatpush1.xpose.msra.mxu0 %v2087
      %2091 = vmatprep.subr.mxu0 0.0
      %2092 = vmatpush1.xpose.msra.mxu0 0.0
      %2093 = vmatprep.subr.mxu0 0.0
      %2094 = vmatpush1.xpose.msra.mxu0 0.0
      %2095 = vmatprep.subr.mxu0 0.0
      %2096 = vmatpush1.xpose.msra.mxu0 0.0
      %2097 = vmatprep.subr.mxu0 0.0
      %2098 = vmatpush1.xpose.msra.mxu0 0.0
      %2099 = vmatprep.subr.mxu0 0.0
      %2100 = vmatpush1.xpose.msra.mxu0 0.0
      %2101 = vmatprep.subr.mxu0 0.0
      %2102 = vmatpush1.xpose.msra.mxu0 0.0
      %2103 = vmatprep.subr.mxu0 0.0
      %2104 = vmatpush1.xpose.msra.mxu0 0.0
      %2105 = vmatprep.subr.mxu0 0.0
      %2106 = vmatpush1.xpose.msra.mxu0 0.0
      %2107 = vmatprep.subr.mxu0 0.0
      %2108 = vmatpush1.xpose.msra.mxu0 0.0
      %2109 = vmatprep.subr.mxu0 0.0
      %2110 = vmatpush1.xpose.msra.mxu0 0.0
      %2111 = vmatprep.subr.mxu0 0.0
      %2112 = vmatpush1.xpose.msra.mxu0 0.0
      %2113 = vmatprep.subr.mxu0 0.0
      %2114 = vmatpush1.xpose.msra.mxu0 0.0
      %2115 = vmatprep.subr.mxu0 0.0
      %2116 = vmatpush1.xpose.msra.mxu0 0.0
      %2117 = vmatprep.subr.mxu0 0.0
      %2118 = vmatpush1.xpose.msra.mxu0 0.0
      %2119 = vmatprep.subr.mxu0 0.0
      %2120 = vmatpush1.xpose.msra.mxu0 0.0
      %2121 = vmatprep.subr.mxu0 0.0
      %2122 = vmatpush1.xpose.msra.mxu0 0.0
      %2123 = vmatprep.subr.mxu0 0.0
      %2124 = vmatpush1.xpose.msra.mxu0 0.0
      %2125 = vmatprep.subr.mxu0 0.0
      %2126 = vmatpush1.xpose.msra.mxu0 0.0
      %2127 = vmatprep.subr.mxu0 0.0
      %2128 = vmatpush1.xpose.msra.mxu0 0.0
      %2129 = vmatprep.subr.mxu0 0.0
      %2130 = vmatpush1.xpose.msra.mxu0 0.0
      %2131 = vmatprep.subr.mxu0 0.0
      %2132 = vmatpush1.xpose.msra.mxu0 0.0
      %2133 = vmatprep.subr.mxu0 0.0
      %2134 = vmatpush1.xpose.msra.mxu0 0.0
      %2135 = vmatprep.subr.mxu0 0.0
      %2136 = vmatpush1.xpose.msra.mxu0 0.0
      %2137 = vmatprep.subr.mxu0 0.0
      %2138 = vmatpush1.xpose.msra.mxu0 0.0
      %2139 = vmatprep.subr.mxu0 0.0
      %2140 = vmatpush1.xpose.msra.mxu0 0.0
      %2141 = vmatprep.subr.mxu0 0.0
      %2142 = vmatpush1.xpose.msra.mxu0 0.0
      %2143 = vmatprep.subr.mxu0 0.0
      %2144 = vmatpush1.xpose.msra.mxu0 0.0
      %2145 = vmatprep.subr.mxu0 0.0
      %2146 = vmatpush1.xpose.msra.mxu0 0.0
      %2147 = vmatprep.subr.mxu0 0.0
      %2148 = vmatpush1.xpose.msra.mxu0 0.0
      %2149 = vmatprep.subr.mxu0 0.0
      %2150 = vmatpush1.xpose.msra.mxu0 0.0
      %2151 = vmatprep.subr.mxu0 0.0
      %2152 = vmatpush1.xpose.msra.mxu0 0.0
      %2153 = vmatprep.mubr.f32.mxu0 0.0
      %2154 = vmatmul.mubr.f32.gmra.mrb[0].mxu0 %v2084
      %v2155 = vpop.f32.mrb[0].mxu0
      %v2156 = vadd.f32 0.0, %v2155
      %v2157 = vpop.f32.mrb[0].mxu0
      %2158 = vdwg.mxu0
      %v2159 = vmul.f32 %v1913, 0.35355338
      %2160 = vxpose.xlu0.b32.start [1/16] %v2159, 128
      %2161 = vxpose.xlu0.b32.cont [2/16] 0.0, 128
      %2162 = vxpose.xlu0.b32.cont [3/16] 0.0, 128
      %2163 = vxpose.xlu0.b32.cont [4/16] 0.0, 128
      %2164 = vxpose.xlu0.b32.cont [5/16] 0.0, 128
      %2165 = vxpose.xlu0.b32.cont [6/16] 0.0, 128
      %2166 = vxpose.xlu0.b32.cont [7/16] 0.0, 128
      %2167 = vxpose.xlu0.b32.cont [8/16] 0.0, 128
      %2168 = vxpose.xlu0.b32.cont [9/16] 0.0, 128
      %2169 = vxpose.xlu0.b32.cont [10/16] 0.0, 128
      %2170 = vxpose.xlu0.b32.cont [11/16] 0.0, 128
      %2171 = vxpose.xlu0.b32.cont [12/16] 0.0, 128
      %2172 = vxpose.xlu0.b32.cont [13/16] 0.0, 128
      %2173 = vxpose.xlu0.b32.cont [14/16] 0.0, 128
      %2174 = vxpose.xlu0.b32.cont [15/16] 0.0, 128
      %2175 = vxpose.xlu0.b32.end [16/16] 0.0, 128
      %v2176 = vpop.trf.xlu0
      %v2177 = vpop.trf.xlu0
      %v2178 = vpop.trf.xlu0
      %v2179 = vpop.trf.xlu0
      %v2180 = vpop.trf.xlu0
      %v2181 = vpop.trf.xlu0
      %v2182 = vpop.trf.xlu0
      %v2183 = vpop.trf.xlu0
      %v2184 = vpop.trf.xlu0
      %v2185 = vpop.trf.xlu0
      %v2186 = vpop.trf.xlu0
      %v2187 = vpop.trf.xlu0
      %v2188 = vpop.trf.xlu0
      %v2189 = vpop.trf.xlu0
      %v2190 = vpop.trf.xlu0
      %v2191 = vpop.trf.xlu0
      %v2193 = vsel %vm770, %v2176, 0
      %2195 = vmatprep.subr.mxu0 0.0
      %2196 = vmatpush1.msra.mxu0 %v1933
      %2197 = vmatprep.subr.mxu0 0.0
      %2198 = vmatpush1.msra.mxu0 0.0
      %2199 = vmatprep.subr.mxu0 0.0
      %2200 = vmatpush1.msra.mxu0 0.0
      %2201 = vmatprep.subr.mxu0 0.0
      %2202 = vmatpush1.msra.mxu0 0.0
      %2203 = vmatprep.subr.mxu0 0.0
      %2204 = vmatpush1.msra.mxu0 0.0
      %2205 = vmatprep.subr.mxu0 0.0
      %2206 = vmatpush1.msra.mxu0 0.0
      %2207 = vmatprep.subr.mxu0 0.0
      %2208 = vmatpush1.msra.mxu0 0.0
      %2209 = vmatprep.subr.mxu0 0.0
      %2210 = vmatpush1.msra.mxu0 0.0
      %2211 = vmatprep.subr.mxu0 0.0
      %2212 = vmatpush1.msra.mxu0 0.0
      %2213 = vmatprep.subr.mxu0 0.0
      %2214 = vmatpush1.msra.mxu0 0.0
      %2215 = vmatprep.subr.mxu0 0.0
      %2216 = vmatpush1.msra.mxu0 0.0
      %2217 = vmatprep.subr.mxu0 0.0
      %2218 = vmatpush1.msra.mxu0 0.0
      %2219 = vmatprep.subr.mxu0 0.0
      %2220 = vmatpush1.msra.mxu0 0.0
      %2221 = vmatprep.subr.mxu0 0.0
      %2222 = vmatpush1.msra.mxu0 0.0
      %2223 = vmatprep.subr.mxu0 0.0
      %2224 = vmatpush1.msra.mxu0 0.0
      %2225 = vmatprep.subr.mxu0 0.0
      %2226 = vmatpush1.msra.mxu0 0.0
      %2227 = vmatprep.subr.mxu0 0.0
      %2228 = vmatpush1.msra.mxu0 0.0
      %2229 = vmatprep.subr.mxu0 0.0
      %2230 = vmatpush1.msra.mxu0 0.0
      %2231 = vmatprep.subr.mxu0 0.0
      %2232 = vmatpush1.msra.mxu0 0.0
      %2233 = vmatprep.subr.mxu0 0.0
      %2234 = vmatpush1.msra.mxu0 0.0
      %2235 = vmatprep.subr.mxu0 0.0
      %2236 = vmatpush1.msra.mxu0 0.0
      %2237 = vmatprep.subr.mxu0 0.0
      %2238 = vmatpush1.msra.mxu0 0.0
      %2239 = vmatprep.subr.mxu0 0.0
      %2240 = vmatpush1.msra.mxu0 0.0
      %2241 = vmatprep.subr.mxu0 0.0
      %2242 = vmatpush1.msra.mxu0 0.0
      %2243 = vmatprep.subr.mxu0 0.0
      %2244 = vmatpush1.msra.mxu0 0.0
      %2245 = vmatprep.subr.mxu0 0.0
      %2246 = vmatpush1.msra.mxu0 0.0
      %2247 = vmatprep.subr.mxu0 0.0
      %2248 = vmatpush1.msra.mxu0 0.0
      %2249 = vmatprep.subr.mxu0 0.0
      %2250 = vmatpush1.msra.mxu0 0.0
      %2251 = vmatprep.subr.mxu0 0.0
      %2252 = vmatpush1.msra.mxu0 0.0
      %2253 = vmatprep.subr.mxu0 0.0
      %2254 = vmatpush1.msra.mxu0 0.0
      %2255 = vmatprep.subr.mxu0 0.0
      %2256 = vmatpush1.msra.mxu0 0.0
      %2257 = vmatprep.subr.mxu0 0.0
      %2258 = vmatpush1.msra.mxu0 0.0
      %2259 = vmatprep.mubr.f32.mxu0 0.0
      %2260 = vmatmul.mubr.f32.gmra.mrb[0].mxu0 %v2193
      %v2261 = vpop.f32.mrb[0].mxu0
      %v2262 = vadd.f32 %v464, %v2261
      %v2263 = vpop.f32.mrb[0].mxu0
      %2264 = vdwg.mxu0
      %v2265 = vsel %vm770, %v2262, -inf
      %2266 = vmax.xlane.f32.xlu0 %v2265
      %v2267 = vpop.xlane.xlu0 %2266
      %v2268 = vsub.f32 %v2262, %v2267
      %v2269 = vmul.f32 %v2268, 1.442695
      %v2270 = vpow.pop %v2269
      %v2271 = vsel %vm770, %v2270, 0.0
      %2272 = vadd.xlane.f32.xlu0 %v2271
      %v2273 = vpop.xlane.xlu0 %2272
      %v2274 = vrcp.pop %v2273
      %v2275 = vmul.f32 %v2270, %v2274
      %v2277 = vsel %vm770, %v1953, 0
      %v2280 = vsel %vm770, %v2275, 0
      %2282 = vmatprep.subr.mxu0 0.0
      %2283 = vmatpush1.xpose.msra.mxu0 %v2280
      %2284 = vmatprep.subr.mxu0 0.0
      %2285 = vmatpush1.xpose.msra.mxu0 0.0
      %2286 = vmatprep.subr.mxu0 0.0
      %2287 = vmatpush1.xpose.msra.mxu0 0.0
      %2288 = vmatprep.subr.mxu0 0.0
      %2289 = vmatpush1.xpose.msra.mxu0 0.0
      %2290 = vmatprep.subr.mxu0 0.0
      %2291 = vmatpush1.xpose.msra.mxu0 0.0
      %2292 = vmatprep.subr.mxu0 0.0
      %2293 = vmatpush1.xpose.msra.mxu0 0.0
      %2294 = vmatprep.subr.mxu0 0.0
      %2295 = vmatpush1.xpose.msra.mxu0 0.0
      %2296 = vmatprep.subr.mxu0 0.0
      %2297 = vmatpush1.xpose.msra.mxu0 0.0
      %2298 = vmatprep.subr.mxu0 0.0
      %2299 = vmatpush1.xpose.msra.mxu0 0.0
      %2300 = vmatprep.subr.mxu0 0.0
      %2301 = vmatpush1.xpose.msra.mxu0 0.0
      %2302 = vmatprep.subr.mxu0 0.0
      %2303 = vmatpush1.xpose.msra.mxu0 0.0
      %2304 = vmatprep.subr.mxu0 0.0
      %2305 = vmatpush1.xpose.msra.mxu0 0.0
      %2306 = vmatprep.subr.mxu0 0.0
      %2307 = vmatpush1.xpose.msra.mxu0 0.0
      %2308 = vmatprep.subr.mxu0 0.0
      %2309 = vmatpush1.xpose.msra.mxu0 0.0
      %2310 = vmatprep.subr.mxu0 0.0
      %2311 = vmatpush1.xpose.msra.mxu0 0.0
      %2312 = vmatprep.subr.mxu0 0.0
      %2313 = vmatpush1.xpose.msra.mxu0 0.0
      %2314 = vmatprep.subr.mxu0 0.0
      %2315 = vmatpush1.xpose.msra.mxu0 0.0
      %2316 = vmatprep.subr.mxu0 0.0
      %2317 = vmatpush1.xpose.msra.mxu0 0.0
      %2318 = vmatprep.subr.mxu0 0.0
      %2319 = vmatpush1.xpose.msra.mxu0 0.0
      %2320 = vmatprep.subr.mxu0 0.0
      %2321 = vmatpush1.xpose.msra.mxu0 0.0
      %2322 = vmatprep.subr.mxu0 0.0
      %2323 = vmatpush1.xpose.msra.mxu0 0.0
      %2324 = vmatprep.subr.mxu0 0.0
      %2325 = vmatpush1.xpose.msra.mxu0 0.0
      %2326 = vmatprep.subr.mxu0 0.0
      %2327 = vmatpush1.xpose.msra.mxu0 0.0
      %2328 = vmatprep.subr.mxu0 0.0
      %2329 = vmatpush1.xpose.msra.mxu0 0.0
      %2330 = vmatprep.subr.mxu0 0.0
      %2331 = vmatpush1.xpose.msra.mxu0 0.0
      %2332 = vmatprep.subr.mxu0 0.0
      %2333 = vmatpush1.xpose.msra.mxu0 0.0
      %2334 = vmatprep.subr.mxu0 0.0
      %2335 = vmatpush1.xpose.msra.mxu0 0.0
      %2336 = vmatprep.subr.mxu0 0.0
      %2337 = vmatpush1.xpose.msra.mxu0 0.0
      %2338 = vmatprep.subr.mxu0 0.0
      %2339 = vmatpush1.xpose.msra.mxu0 0.0
      %2340 = vmatprep.subr.mxu0 0.0
      %2341 = vmatpush1.xpose.msra.mxu0 0.0
      %2342 = vmatprep.subr.mxu0 0.0
      %2343 = vmatpush1.xpose.msra.mxu0 0.0
      %2344 = vmatprep.subr.mxu0 0.0
      %2345 = vmatpush1.xpose.msra.mxu0 0.0
      %2346 = vmatprep.mubr.f32.mxu0 0.0
      %2347 = vmatmul.mubr.f32.gmra.mrb[0].mxu0 %v2277
      %v2348 = vpop.f32.mrb[0].mxu0
      %v2349 = vadd.f32 0.0, %v2348
      %v2350 = vpop.f32.mrb[0].mxu0
      %2351 = vdwg.mxu0
      %v2352 = vmul.f32 %v1918, 0.35355338
      %2353 = vxpose.xlu0.b32.start [1/16] %v2352, 128
      %2354 = vxpose.xlu0.b32.cont [2/16] 0.0, 128
      %2355 = vxpose.xlu0.b32.cont [3/16] 0.0, 128
      %2356 = vxpose.xlu0.b32.cont [4/16] 0.0, 128
      %2357 = vxpose.xlu0.b32.cont [5/16] 0.0, 128
      %2358 = vxpose.xlu0.b32.cont [6/16] 0.0, 128
      %2359 = vxpose.xlu0.b32.cont [7/16] 0.0, 128
      %2360 = vxpose.xlu0.b32.cont [8/16] 0.0, 128
      %2361 = vxpose.xlu0.b32.cont [9/16] 0.0, 128
      %2362 = vxpose.xlu0.b32.cont [10/16] 0.0, 128
      %2363 = vxpose.xlu0.b32.cont [11/16] 0.0, 128
      %2364 = vxpose.xlu0.b32.cont [12/16] 0.0, 128
      %2365 = vxpose.xlu0.b32.cont [13/16] 0.0, 128
      %2366 = vxpose.xlu0.b32.cont [14/16] 0.0, 128
      %2367 = vxpose.xlu0.b32.cont [15/16] 0.0, 128
      %2368 = vxpose.xlu0.b32.end [16/16] 0.0, 128
      %v2369 = vpop.trf.xlu0
      %v2370 = vpop.trf.xlu0
      %v2371 = vpop.trf.xlu0
      %v2372 = vpop.trf.xlu0
      %v2373 = vpop.trf.xlu0
      %v2374 = vpop.trf.xlu0
      %v2375 = vpop.trf.xlu0
      %v2376 = vpop.trf.xlu0
      %v2377 = vpop.trf.xlu0
      %v2378 = vpop.trf.xlu0
      %v2379 = vpop.trf.xlu0
      %v2380 = vpop.trf.xlu0
      %v2381 = vpop.trf.xlu0
      %v2382 = vpop.trf.xlu0
      %v2383 = vpop.trf.xlu0
      %v2384 = vpop.trf.xlu0
      %v2386 = vsel %vm770, %v2369, 0
      %2388 = vmatprep.subr.mxu0 0.0
      %2389 = vmatpush1.msra.mxu0 %v1938
      %2390 = vmatprep.subr.mxu0 0.0
      %2391 = vmatpush1.msra.mxu0 0.0
      %2392 = vmatprep.subr.mxu0 0.0
      %2393 = vmatpush1.msra.mxu0 0.0
      %2394 = vmatprep.subr.mxu0 0.0
      %2395 = vmatpush1.msra.mxu0 0.0
      %2396 = vmatprep.subr.mxu0 0.0
      %2397 = vmatpush1.msra.mxu0 0.0
      %2398 = vmatprep.subr.mxu0 0.0
      %2399 = vmatpush1.msra.mxu0 0.0
      %2400 = vmatprep.subr.mxu0 0.0
      %2401 = vmatpush1.msra.mxu0 0.0
      %2402 = vmatprep.subr.mxu0 0.0
      %2403 = vmatpush1.msra.mxu0 0.0
      %2404 = vmatprep.subr.mxu0 0.0
      %2405 = vmatpush1.msra.mxu0 0.0
      %2406 = vmatprep.subr.mxu0 0.0
      %2407 = vmatpush1.msra.mxu0 0.0
      %2408 = vmatprep.subr.mxu0 0.0
      %2409 = vmatpush1.msra.mxu0 0.0
      %2410 = vmatprep.subr.mxu0 0.0
      %2411 = vmatpush1.msra.mxu0 0.0
      %2412 = vmatprep.subr.mxu0 0.0
      %2413 = vmatpush1.msra.mxu0 0.0
      %2414 = vmatprep.subr.mxu0 0.0
      %2415 = vmatpush1.msra.mxu0 0.0
      %2416 = vmatprep.subr.mxu0 0.0
      %2417 = vmatpush1.msra.mxu0 0.0
      %2418 = vmatprep.subr.mxu0 0.0
      %2419 = vmatpush1.msra.mxu0 0.0
      %2420 = vmatprep.subr.mxu0 0.0
      %2421 = vmatpush1.msra.mxu0 0.0
      %2422 = vmatprep.subr.mxu0 0.0
      %2423 = vmatpush1.msra.mxu0 0.0
      %2424 = vmatprep.subr.mxu0 0.0
      %2425 = vmatpush1.msra.mxu0 0.0
      %2426 = vmatprep.subr.mxu0 0.0
      %2427 = vmatpush1.msra.mxu0 0.0
      %2428 = vmatprep.subr.mxu0 0.0
      %2429 = vmatpush1.msra.mxu0 0.0
      %2430 = vmatprep.subr.mxu0 0.0
      %2431 = vmatpush1.msra.mxu0 0.0
      %2432 = vmatprep.subr.mxu0 0.0
      %2433 = vmatpush1.msra.mxu0 0.0
      %2434 = vmatprep.subr.mxu0 0.0
      %2435 = vmatpush1.msra.mxu0 0.0
      %2436 = vmatprep.subr.mxu0 0.0
      %2437 = vmatpush1.msra.mxu0 0.0
      %2438 = vmatprep.subr.mxu0 0.0
      %2439 = vmatpush1.msra.mxu0 0.0
      %2440 = vmatprep.subr.mxu0 0.0
      %2441 = vmatpush1.msra.mxu0 0.0
      %2442 = vmatprep.subr.mxu0 0.0
      %2443 = vmatpush1.msra.mxu0 0.0
      %2444 = vmatprep.subr.mxu0 0.0
      %2445 = vmatpush1.msra.mxu0 0.0
      %2446 = vmatprep.subr.mxu0 0.0
      %2447 = vmatpush1.msra.mxu0 0.0
      %2448 = vmatprep.subr.mxu0 0.0
      %2449 = vmatpush1.msra.mxu0 0.0
      %2450 = vmatprep.subr.mxu0 0.0
      %2451 = vmatpush1.msra.mxu0 0.0
      %2452 = vmatprep.mubr.f32.mxu0 0.0
      %2453 = vmatmul.mubr.f32.gmra.mrb[0].mxu0 %v2386
      %v2454 = vpop.f32.mrb[0].mxu0
      %v2455 = vadd.f32 %v464, %v2454
      %v2456 = vpop.f32.mrb[0].mxu0
      %2457 = vdwg.mxu0
      %v2458 = vsel %vm770, %v2455, -inf
      %2459 = vmax.xlane.f32.xlu0 %v2458
      %v2460 = vpop.xlane.xlu0 %2459
      %v2461 = vsub.f32 %v2455, %v2460
      %v2462 = vmul.f32 %v2461, 1.442695
      %v2463 = vpow.pop %v2462
      %v2464 = vsel %vm770, %v2463, 0.0
      %2465 = vadd.xlane.f32.xlu0 %v2464
      %v2466 = vpop.xlane.xlu0 %2465
      %v2467 = vrcp.pop %v2466
      %v2468 = vmul.f32 %v2463, %v2467
      %v2470 = vsel %vm770, %v1958, 0
      %v2473 = vsel %vm770, %v2468, 0
      %2475 = vmatprep.subr.mxu0 0.0
      %2476 = vmatpush1.xpose.msra.mxu0 %v2473
      %2477 = vmatprep.subr.mxu0 0.0
      %2478 = vmatpush1.xpose.msra.mxu0 0.0
      %2479 = vmatprep.subr.mxu0 0.0
      %2480 = vmatpush1.xpose.msra.mxu0 0.0
      %2481 = vmatprep.subr.mxu0 0.0
      %2482 = vmatpush1.xpose.msra.mxu0 0.0
      %2483 = vmatprep.subr.mxu0 0.0
      %2484 = vmatpush1.xpose.msra.mxu0 0.0
      %2485 = vmatprep.subr.mxu0 0.0
      %2486 = vmatpush1.xpose.msra.mxu0 0.0
      %2487 = vmatprep.subr.mxu0 0.0
      %2488 = vmatpush1.xpose.msra.mxu0 0.0
      %2489 = vmatprep.subr.mxu0 0.0
      %2490 = vmatpush1.xpose.msra.mxu0 0.0
      %2491 = vmatprep.subr.mxu0 0.0
      %2492 = vmatpush1.xpose.msra.mxu0 0.0
      %2493 = vmatprep.subr.mxu0 0.0
      %2494 = vmatpush1.xpose.msra.mxu0 0.0
      %2495 = vmatprep.subr.mxu0 0.0
      %2496 = vmatpush1.xpose.msra.mxu0 0.0
      %2497 = vmatprep.subr.mxu0 0.0
      %2498 = vmatpush1.xpose.msra.mxu0 0.0
      %2499 = vmatprep.subr.mxu0 0.0
      %2500 = vmatpush1.xpose.msra.mxu0 0.0
      %2501 = vmatprep.subr.mxu0 0.0
      %2502 = vmatpush1.xpose.msra.mxu0 0.0
      %2503 = vmatprep.subr.mxu0 0.0
      %2504 = vmatpush1.xpose.msra.mxu0 0.0
      %2505 = vmatprep.subr.mxu0 0.0
      %2506 = vmatpush1.xpose.msra.mxu0 0.0
      %2507 = vmatprep.subr.mxu0 0.0
      %2508 = vmatpush1.xpose.msra.mxu0 0.0
      %2509 = vmatprep.subr.mxu0 0.0
      %2510 = vmatpush1.xpose.msra.mxu0 0.0
      %2511 = vmatprep.subr.mxu0 0.0
      %2512 = vmatpush1.xpose.msra.mxu0 0.0
      %2513 = vmatprep.subr.mxu0 0.0
      %2514 = vmatpush1.xpose.msra.mxu0 0.0
      %2515 = vmatprep.subr.mxu0 0.0
      %2516 = vmatpush1.xpose.msra.mxu0 0.0
      %2517 = vmatprep.subr.mxu0 0.0
      %2518 = vmatpush1.xpose.msra.mxu0 0.0
      %2519 = vmatprep.subr.mxu0 0.0
      %2520 = vmatpush1.xpose.msra.mxu0 0.0
      %2521 = vmatprep.subr.mxu0 0.0
      %2522 = vmatpush1.xpose.msra.mxu0 0.0
      %2523 = vmatprep.subr.mxu0 0.0
      %2524 = vmatpush1.xpose.msra.mxu0 0.0
      %2525 = vmatprep.subr.mxu0 0.0
      %2526 = vmatpush1.xpose.msra.mxu0 0.0
      %2527 = vmatprep.subr.mxu0 0.0
      %2528 = vmatpush1.xpose.msra.mxu0 0.0
      %2529 = vmatprep.subr.mxu0 0.0
      %2530 = vmatpush1.xpose.msra.mxu0 0.0
      %2531 = vmatprep.subr.mxu0 0.0
      %2532 = vmatpush1.xpose.msra.mxu0 0.0
      %2533 = vmatprep.subr.mxu0 0.0
      %2534 = vmatpush1.xpose.msra.mxu0 0.0
      %2535 = vmatprep.subr.mxu0 0.0
      %2536 = vmatpush1.xpose.msra.mxu0 0.0
      %2537 = vmatprep.subr.mxu0 0.0
      %2538 = vmatpush1.xpose.msra.mxu0 0.0
      %2539 = vmatprep.mubr.f32.mxu0 0.0
      %2540 = vmatmul.mubr.f32.gmra.mrb[0].mxu0 %v2470
      %v2541 = vpop.f32.mrb[0].mxu0
      %v2542 = vadd.f32 0.0, %v2541
      %v2543 = vpop.f32.mrb[0].mxu0
      %2544 = vdwg.mxu0
      %v2545 = vmul.f32 %v1923, 0.35355338
      %2546 = vxpose.xlu0.b32.start [1/16] %v2545, 128
      %2547 = vxpose.xlu0.b32.cont [2/16] 0.0, 128
      %2548 = vxpose.xlu0.b32.cont [3/16] 0.0, 128
      %2549 = vxpose.xlu0.b32.cont [4/16] 0.0, 128
      %2550 = vxpose.xlu0.b32.cont [5/16] 0.0, 128
      %2551 = vxpose.xlu0.b32.cont [6/16] 0.0, 128
      %2552 = vxpose.xlu0.b32.cont [7/16] 0.0, 128
      %2553 = vxpose.xlu0.b32.cont [8/16] 0.0, 128
      %2554 = vxpose.xlu0.b32.cont [9/16] 0.0, 128
      %2555 = vxpose.xlu0.b32.cont [10/16] 0.0, 128
      %2556 = vxpose.xlu0.b32.cont [11/16] 0.0, 128
      %2557 = vxpose.xlu0.b32.cont [12/16] 0.0, 128
      %2558 = vxpose.xlu0.b32.cont [13/16] 0.0, 128
      %2559 = vxpose.xlu0.b32.cont [14/16] 0.0, 128
      %2560 = vxpose.xlu0.b32.cont [15/16] 0.0, 128
      %2561 = vxpose.xlu0.b32.end [16/16] 0.0, 128
      %v2562 = vpop.trf.xlu0
      %v2563 = vpop.trf.xlu0
      %v2564 = vpop.trf.xlu0
      %v2565 = vpop.trf.xlu0
      %v2566 = vpop.trf.xlu0
      %v2567 = vpop.trf.xlu0
      %v2568 = vpop.trf.xlu0
      %v2569 = vpop.trf.xlu0
      %v2570 = vpop.trf.xlu0
      %v2571 = vpop.trf.xlu0
      %v2572 = vpop.trf.xlu0
      %v2573 = vpop.trf.xlu0
      %v2574 = vpop.trf.xlu0
      %v2575 = vpop.trf.xlu0
      %v2576 = vpop.trf.xlu0
      %v2577 = vpop.trf.xlu0
      %v2579 = vsel %vm770, %v2562, 0
      %2581 = vmatprep.subr.mxu0 0.0
      %2582 = vmatpush1.msra.mxu0 %v1943
      %2583 = vmatprep.subr.mxu0 0.0
      %2584 = vmatpush1.msra.mxu0 0.0
      %2585 = vmatprep.subr.mxu0 0.0
      %2586 = vmatpush1.msra.mxu0 0.0
      %2587 = vmatprep.subr.mxu0 0.0
      %2588 = vmatpush1.msra.mxu0 0.0
      %2589 = vmatprep.subr.mxu0 0.0
      %2590 = vmatpush1.msra.mxu0 0.0
      %2591 = vmatprep.subr.mxu0 0.0
      %2592 = vmatpush1.msra.mxu0 0.0
      %2593 = vmatprep.subr.mxu0 0.0
      %2594 = vmatpush1.msra.mxu0 0.0
      %2595 = vmatprep.subr.mxu0 0.0
      %2596 = vmatpush1.msra.mxu0 0.0
      %2597 = vmatprep.subr.mxu0 0.0
      %2598 = vmatpush1.msra.mxu0 0.0
      %2599 = vmatprep.subr.mxu0 0.0
      %2600 = vmatpush1.msra.mxu0 0.0
      %2601 = vmatprep.subr.mxu0 0.0
      %2602 = vmatpush1.msra.mxu0 0.0
      %2603 = vmatprep.subr.mxu0 0.0
      %2604 = vmatpush1.msra.mxu0 0.0
      %2605 = vmatprep.subr.mxu0 0.0
      %2606 = vmatpush1.msra.mxu0 0.0
      %2607 = vmatprep.subr.mxu0 0.0
      %2608 = vmatpush1.msra.mxu0 0.0
      %2609 = vmatprep.subr.mxu0 0.0
      %2610 = vmatpush1.msra.mxu0 0.0
      %2611 = vmatprep.subr.mxu0 0.0
      %2612 = vmatpush1.msra.mxu0 0.0
      %2613 = vmatprep.subr.mxu0 0.0
      %2614 = vmatpush1.msra.mxu0 0.0
      %2615 = vmatprep.subr.mxu0 0.0
      %2616 = vmatpush1.msra.mxu0 0.0
      %2617 = vmatprep.subr.mxu0 0.0
      %2618 = vmatpush1.msra.mxu0 0.0
      %2619 = vmatprep.subr.mxu0 0.0
      %2620 = vmatpush1.msra.mxu0 0.0
      %2621 = vmatprep.subr.mxu0 0.0
      %2622 = vmatpush1.msra.mxu0 0.0
      %2623 = vmatprep.subr.mxu0 0.0
      %2624 = vmatpush1.msra.mxu0 0.0
      %2625 = vmatprep.subr.mxu0 0.0
      %2626 = vmatpush1.msra.mxu0 0.0
      %2627 = vmatprep.subr.mxu0 0.0
      %2628 = vmatpush1.msra.mxu0 0.0
      %2629 = vmatprep.subr.mxu0 0.0
      %2630 = vmatpush1.msra.mxu0 0.0
      %2631 = vmatprep.subr.mxu0 0.0
      %2632 = vmatpush1.msra.mxu0 0.0
      %2633 = vmatprep.subr.mxu0 0.0
      %2634 = vmatpush1.msra.mxu0 0.0
      %2635 = vmatprep.subr.mxu0 0.0
      %2636 = vmatpush1.msra.mxu0 0.0
      %2637 = vmatprep.subr.mxu0 0.0
      %2638 = vmatpush1.msra.mxu0 0.0
      %2639 = vmatprep.subr.mxu0 0.0
      %2640 = vmatpush1.msra.mxu0 0.0
      %2641 = vmatprep.subr.mxu0 0.0
      %2642 = vmatpush1.msra.mxu0 0.0
      %2643 = vmatprep.subr.mxu0 0.0
      %2644 = vmatpush1.msra.mxu0 0.0
      %2645 = vmatprep.mubr.f32.mxu0 0.0
      %2646 = vmatmul.mubr.f32.gmra.mrb[0].mxu0 %v2579
      %v2647 = vpop.f32.mrb[0].mxu0
      %v2648 = vadd.f32 %v464, %v2647
      %v2649 = vpop.f32.mrb[0].mxu0
      %2650 = vdwg.mxu0
      %v2651 = vsel %vm770, %v2648, -inf
      %2652 = vmax.xlane.f32.xlu0 %v2651
      %v2653 = vpop.xlane.xlu0 %2652
      %v2654 = vsub.f32 %v2648, %v2653
      %v2655 = vmul.f32 %v2654, 1.442695
      %v2656 = vpow.pop %v2655
      %v2657 = vsel %vm770, %v2656, 0.0
      %2658 = vadd.xlane.f32.xlu0 %v2657
      %v2659 = vpop.xlane.xlu0 %2658
      %v2660 = vrcp.pop %v2659
      %v2661 = vmul.f32 %v2656, %v2660
      %v2663 = vsel %vm770, %v1963, 0
      %v2666 = vsel %vm770, %v2661, 0
      %2668 = vmatprep.subr.mxu0 0.0
      %2669 = vmatpush1.xpose.msra.mxu0 %v2666
      %2670 = vmatprep.subr.mxu0 0.0
      %2671 = vmatpush1.xpose.msra.mxu0 0.0
      %2672 = vmatprep.subr.mxu0 0.0
      %2673 = vmatpush1.xpose.msra.mxu0 0.0
      %2674 = vmatprep.subr.mxu0 0.0
      %2675 = vmatpush1.xpose.msra.mxu0 0.0
      %2676 = vmatprep.subr.mxu0 0.0
      %2677 = vmatpush1.xpose.msra.mxu0 0.0
      %2678 = vmatprep.subr.mxu0 0.0
      %2679 = vmatpush1.xpose.msra.mxu0 0.0
      %2680 = vmatprep.subr.mxu0 0.0
      %2681 = vmatpush1.xpose.msra.mxu0 0.0
      %2682 = vmatprep.subr.mxu0 0.0
      %2683 = vmatpush1.xpose.msra.mxu0 0.0
      %2684 = vmatprep.subr.mxu0 0.0
      %2685 = vmatpush1.xpose.msra.mxu0 0.0
      %2686 = vmatprep.subr.mxu0 0.0
      %2687 = vmatpush1.xpose.msra.mxu0 0.0
      %2688 = vmatprep.subr.mxu0 0.0
      %2689 = vmatpush1.xpose.msra.mxu0 0.0
      %2690 = vmatprep.subr.mxu0 0.0
      %2691 = vmatpush1.xpose.msra.mxu0 0.0
      %2692 = vmatprep.subr.mxu0 0.0
      %2693 = vmatpush1.xpose.msra.mxu0 0.0
      %2694 = vmatprep.subr.mxu0 0.0
      %2695 = vmatpush1.xpose.msra.mxu0 0.0
      %2696 = vmatprep.subr.mxu0 0.0
      %2697 = vmatpush1.xpose.msra.mxu0 0.0
      %2698 = vmatprep.subr.mxu0 0.0
      %2699 = vmatpush1.xpose.msra.mxu0 0.0
      %2700 = vmatprep.subr.mxu0 0.0
      %2701 = vmatpush1.xpose.msra.mxu0 0.0
      %2702 = vmatprep.subr.mxu0 0.0
      %2703 = vmatpush1.xpose.msra.mxu0 0.0
      %2704 = vmatprep.subr.mxu0 0.0
      %2705 = vmatpush1.xpose.msra.mxu0 0.0
      %2706 = vmatprep.subr.mxu0 0.0
      %2707 = vmatpush1.xpose.msra.mxu0 0.0
      %2708 = vmatprep.subr.mxu0 0.0
      %2709 = vmatpush1.xpose.msra.mxu0 0.0
      %2710 = vmatprep.subr.mxu0 0.0
      %2711 = vmatpush1.xpose.msra.mxu0 0.0
      %2712 = vmatprep.subr.mxu0 0.0
      %2713 = vmatpush1.xpose.msra.mxu0 0.0
      %2714 = vmatprep.subr.mxu0 0.0
      %2715 = vmatpush1.xpose.msra.mxu0 0.0
      %2716 = vmatprep.subr.mxu0 0.0
      %2717 = vmatpush1.xpose.msra.mxu0 0.0
      %2718 = vmatprep.subr.mxu0 0.0
      %2719 = vmatpush1.xpose.msra.mxu0 0.0
      %2720 = vmatprep.subr.mxu0 0.0
      %2721 = vmatpush1.xpose.msra.mxu0 0.0
      %2722 = vmatprep.subr.mxu0 0.0
      %2723 = vmatpush1.xpose.msra.mxu0 0.0
      %2724 = vmatprep.subr.mxu0 0.0
      %2725 = vmatpush1.xpose.msra.mxu0 0.0
      %2726 = vmatprep.subr.mxu0 0.0
      %2727 = vmatpush1.xpose.msra.mxu0 0.0
      %2728 = vmatprep.subr.mxu0 0.0
      %2729 = vmatpush1.xpose.msra.mxu0 0.0
      %2730 = vmatprep.subr.mxu0 0.0
      %2731 = vmatpush1.xpose.msra.mxu0 0.0
      %2732 = vmatprep.mubr.f32.mxu0 0.0
      %2733 = vmatmul.mubr.f32.gmra.mrb[0].mxu0 %v2663
      %v2734 = vpop.f32.mrb[0].mxu0
      %v2735 = vadd.f32 0.0, %v2734
      %v2736 = vpop.f32.mrb[0].mxu0
      %2737 = vdwg.mxu0
      %2738 = vxpose.xlu0.b32.start [1/16] %v2156, 128
      %2739 = vxpose.xlu0.b32.cont [2/16] %v2349, 128
      %2740 = vxpose.xlu0.b32.cont [3/16] %v2542, 128
      %2741 = vxpose.xlu0.b32.cont [4/16] %v2735, 128
      %2742 = vxpose.xlu0.b32.cont [5/16] 0.0, 128
      %2743 = vxpose.xlu0.b32.cont [6/16] 0.0, 128
      %2744 = vxpose.xlu0.b32.cont [7/16] 0.0, 128
      %2745 = vxpose.xlu0.b32.cont [8/16] 0.0, 128
      %2746 = vxpose.xlu0.b32.cont [9/16] 0.0, 128
      %2747 = vxpose.xlu0.b32.cont [10/16] 0.0, 128
      %2748 = vxpose.xlu0.b32.cont [11/16] 0.0, 128
      %2749 = vxpose.xlu0.b32.cont [12/16] 0.0, 128
      %2750 = vxpose.xlu0.b32.cont [13/16] 0.0, 128
      %2751 = vxpose.xlu0.b32.cont [14/16] 0.0, 128
      %2752 = vxpose.xlu0.b32.cont [15/16] 0.0, 128
      %2753 = vxpose.xlu0.b32.end [16/16] 0.0, 128
      %v2754 = vpop.trf.xlu0
      %v2755 = vpop.trf.xlu0
      %v2756 = vpop.trf.xlu0
      %v2757 = vpop.trf.xlu0
      %v2758 = vpop.trf.xlu0
      %v2759 = vpop.trf.xlu0
      %v2760 = vpop.trf.xlu0
      %v2761 = vpop.trf.xlu0
      %v2762 = vpop.trf.xlu0
      %v2763 = vpop.trf.xlu0
      %v2764 = vpop.trf.xlu0
      %v2765 = vpop.trf.xlu0
      %v2766 = vpop.trf.xlu0
      %v2767 = vpop.trf.xlu0
      %v2768 = vpop.trf.xlu0
      %v2769 = vpop.trf.xlu0
      %v2771 = vsel %vm572, %v2754, 0
      %2773 = vmatprep.subr.mxu0 0.0
      %2774 = vmatpush1.msra.mxu0 %v489
      %2775 = vmatprep.subr.mxu0 0.0
      %2776 = vmatpush1.msra.mxu0 %v490
      %2777 = vmatprep.subr.mxu0 0.0
      %2778 = vmatpush1.msra.mxu0 %v491
      %2779 = vmatprep.subr.mxu0 0.0
      %2780 = vmatpush1.msra.mxu0 %v492
      %2781 = vmatprep.subr.mxu0 0.0
      %2782 = vmatpush1.msra.mxu0 0.0
      %2783 = vmatprep.subr.mxu0 0.0
      %2784 = vmatpush1.msra.mxu0 0.0
      %2785 = vmatprep.subr.mxu0 0.0
      %2786 = vmatpush1.msra.mxu0 0.0
      %2787 = vmatprep.subr.mxu0 0.0
      %2788 = vmatpush1.msra.mxu0 0.0
      %2789 = vmatprep.subr.mxu0 0.0
      %2790 = vmatpush1.msra.mxu0 0.0
      %2791 = vmatprep.subr.mxu0 0.0
      %2792 = vmatpush1.msra.mxu0 0.0
      %2793 = vmatprep.subr.mxu0 0.0
      %2794 = vmatpush1.msra.mxu0 0.0
      %2795 = vmatprep.subr.mxu0 0.0
      %2796 = vmatpush1.msra.mxu0 0.0
      %2797 = vmatprep.subr.mxu0 0.0
      %2798 = vmatpush1.msra.mxu0 0.0
      %2799 = vmatprep.subr.mxu0 0.0
      %2800 = vmatpush1.msra.mxu0 0.0
      %2801 = vmatprep.subr.mxu0 0.0
      %2802 = vmatpush1.msra.mxu0 0.0
      %2803 = vmatprep.subr.mxu0 0.0
      %2804 = vmatpush1.msra.mxu0 0.0
      %2805 = vmatprep.subr.mxu0 0.0
      %2806 = vmatpush1.msra.mxu0 0.0
      %2807 = vmatprep.subr.mxu0 0.0
      %2808 = vmatpush1.msra.mxu0 0.0
      %2809 = vmatprep.subr.mxu0 0.0
      %2810 = vmatpush1.msra.mxu0 0.0
      %2811 = vmatprep.subr.mxu0 0.0
      %2812 = vmatpush1.msra.mxu0 0.0
      %2813 = vmatprep.subr.mxu0 0.0
      %2814 = vmatpush1.msra.mxu0 0.0
      %2815 = vmatprep.subr.mxu0 0.0
      %2816 = vmatpush1.msra.mxu0 0.0
      %2817 = vmatprep.subr.mxu0 0.0
      %2818 = vmatpush1.msra.mxu0 0.0
      %2819 = vmatprep.subr.mxu0 0.0
      %2820 = vmatpush1.msra.mxu0 0.0
      %2821 = vmatprep.subr.mxu0 0.0
      %2822 = vmatpush1.msra.mxu0 0.0
      %2823 = vmatprep.subr.mxu0 0.0
      %2824 = vmatpush1.msra.mxu0 0.0
      %2825 = vmatprep.subr.mxu0 0.0
      %2826 = vmatpush1.msra.mxu0 0.0
      %2827 = vmatprep.subr.mxu0 0.0
      %2828 = vmatpush1.msra.mxu0 0.0
      %2829 = vmatprep.subr.mxu0 0.0
      %2830 = vmatpush1.msra.mxu0 0.0
      %2831 = vmatprep.subr.mxu0 0.0
      %2832 = vmatpush1.msra.mxu0 0.0
      %2833 = vmatprep.subr.mxu0 0.0
      %2834 = vmatpush1.msra.mxu0 0.0
      %2835 = vmatprep.subr.mxu0 0.0
      %2836 = vmatpush1.msra.mxu0 0.0
      %2837 = vmatprep.mubr.f32.mxu0 0.0
      %2838 = vmatmul.mubr.f32.gmra.mrb[0].mxu0 %v2771
      %v2839 = vpop.f32.mrb[0].mxu0
      %v2840 = vadd.f32 %v1546, %v2839
      %v2841 = vpop.f32.mrb[0].mxu0
      %2842 = vdwg.mxu0
      %v2843 = vadd.f32 %v1837, %v2840
      %v2844 = vsel %vm572, %v2843, 0.0
      %2845 = vadd.xlane.f32.xlu0 %v2844
      %v2846 = vpop.xlane.xlu0 %2845
      %v2847 = vmul.f32 %v2846, %v1625
      %v2848 = vsub.f32 %v2843, %v2847
      %v2849 = vmul.f32 %v2848, %v2848
      %v2850 = vsel %vm572, %v2849, 0.0
      %2851 = vadd.xlane.f32.xlu0 %v2850
      %v2852 = vpop.xlane.xlu0 %2851
      %v2853 = vmul.f32 %v2852, %v1625
      %v2854 = vadd.f32 %v2853, 1e-05
      %v2855 = vrsqrt.pop %v2854
      %v2856 = vmul.f32 %v2848, %v2855
      %v2857 = vmul.f32 %v2856, %v1640
      %v2858 = vadd.f32 %v2857, %v1647
      %v2860 = vsel %vm572, %v2858, 0
      %2862 = vmatprep.subr.mxu0 0.0
      %2863 = vmatpush1.msra.mxu0 %v494
      %2864 = vmatprep.subr.mxu0 0.0
      %2865 = vmatpush1.msra.mxu0 %v495
      %2866 = vmatprep.subr.mxu0 0.0
      %2867 = vmatpush1.msra.mxu0 %v496
      %2868 = vmatprep.subr.mxu0 0.0
      %2869 = vmatpush1.msra.mxu0 %v497
      %2870 = vmatprep.subr.mxu0 0.0
      %2871 = vmatpush1.msra.mxu0 0.0
      %2872 = vmatprep.subr.mxu0 0.0
      %2873 = vmatpush1.msra.mxu0 0.0
      %2874 = vmatprep.subr.mxu0 0.0
      %2875 = vmatpush1.msra.mxu0 0.0
      %2876 = vmatprep.subr.mxu0 0.0
      %2877 = vmatpush1.msra.mxu0 0.0
      %2878 = vmatprep.subr.mxu0 0.0
      %2879 = vmatpush1.msra.mxu0 0.0
      %2880 = vmatprep.subr.mxu0 0.0
      %2881 = vmatpush1.msra.mxu0 0.0
      %2882 = vmatprep.subr.mxu0 0.0
      %2883 = vmatpush1.msra.mxu0 0.0
      %2884 = vmatprep.subr.mxu0 0.0
      %2885 = vmatpush1.msra.mxu0 0.0
      %2886 = vmatprep.subr.mxu0 0.0
      %2887 = vmatpush1.msra.mxu0 0.0
      %2888 = vmatprep.subr.mxu0 0.0
      %2889 = vmatpush1.msra.mxu0 0.0
      %2890 = vmatprep.subr.mxu0 0.0
      %2891 = vmatpush1.msra.mxu0 0.0
      %2892 = vmatprep.subr.mxu0 0.0
      %2893 = vmatpush1.msra.mxu0 0.0
      %2894 = vmatprep.subr.mxu0 0.0
      %2895 = vmatpush1.msra.mxu0 0.0
      %2896 = vmatprep.subr.mxu0 0.0
      %2897 = vmatpush1.msra.mxu0 0.0
      %2898 = vmatprep.subr.mxu0 0.0
      %2899 = vmatpush1.msra.mxu0 0.0
      %2900 = vmatprep.subr.mxu0 0.0
      %2901 = vmatpush1.msra.mxu0 0.0
      %2902 = vmatprep.subr.mxu0 0.0
      %2903 = vmatpush1.msra.mxu0 0.0
      %2904 = vmatprep.subr.mxu0 0.0
      %2905 = vmatpush1.msra.mxu0 0.0
      %2906 = vmatprep.subr.mxu0 0.0
      %2907 = vmatpush1.msra.mxu0 0.0
      %2908 = vmatprep.subr.mxu0 0.0
      %2909 = vmatpush1.msra.mxu0 0.0
      %2910 = vmatprep.subr.mxu0 0.0
      %2911 = vmatpush1.msra.mxu0 0.0
      %2912 = vmatprep.subr.mxu0 0.0
      %2913 = vmatpush1.msra.mxu0 0.0
      %2914 = vmatprep.subr.mxu0 0.0
      %2915 = vmatpush1.msra.mxu0 0.0
      %2916 = vmatprep.subr.mxu0 0.0
      %2917 = vmatpush1.msra.mxu0 0.0
      %2918 = vmatprep.subr.mxu0 0.0
      %2919 = vmatpush1.msra.mxu0 0.0
      %2920 = vmatprep.subr.mxu0 0.0
      %2921 = vmatpush1.msra.mxu0 0.0
      %2922 = vmatprep.subr.mxu0 0.0
      %2923 = vmatpush1.msra.mxu0 0.0
      %2924 = vmatprep.subr.mxu0 0.0
      %2925 = vmatpush1.msra.mxu0 0.0
      %2926 = vmatprep.mubr.f32.mxu0 0.0
      %2927 = vmatmul.mubr.f32.gmra.mrb[0].mxu0 %v2860
      %v2928 = vpop.f32.mrb[0].mxu0
      %v2929 = vadd.f32 %v1654, %v2928
      %v2930 = vpop.f32.mrb[0].mxu0
      %2931 = vdwg.mxu0
      %v2932 = vmax.f32 %v2929, 0.0
      %v2934 = vsel %vm1736, %v2932, 0
      %2936 = vmatprep.subr.mxu0 0.0
      %2937 = vmatpush1.msra.mxu0 %v499
      %2938 = vmatprep.subr.mxu0 0.0
      %2939 = vmatpush1.msra.mxu0 %v500
      %2940 = vmatprep.subr.mxu0 0.0
      %2941 = vmatpush1.msra.mxu0 %v501
      %2942 = vmatprep.subr.mxu0 0.0
      %2943 = vmatpush1.msra.mxu0 %v502
      %2944 = vmatprep.subr.mxu0 0.0
      %2945 = vmatpush1.msra.mxu0 %v503
      %2946 = vmatprep.subr.mxu0 0.0
      %2947 = vmatpush1.msra.mxu0 %v504
      %2948 = vmatprep.subr.mxu0 0.0
      %2949 = vmatpush1.msra.mxu0 %v505
      %2950 = vmatprep.subr.mxu0 0.0
      %2951 = vmatpush1.msra.mxu0 %v506
      %2952 = vmatprep.subr.mxu0 0.0
      %2953 = vmatpush1.msra.mxu0 0.0
      %2954 = vmatprep.subr.mxu0 0.0
      %2955 = vmatpush1.msra.mxu0 0.0
      %2956 = vmatprep.subr.mxu0 0.0
      %2957 = vmatpush1.msra.mxu0 0.0
      %2958 = vmatprep.subr.mxu0 0.0
      %2959 = vmatpush1.msra.mxu0 0.0
      %2960 = vmatprep.subr.mxu0 0.0
      %2961 = vmatpush1.msra.mxu0 0.0
      %2962 = vmatprep.subr.mxu0 0.0
      %2963 = vmatpush1.msra.mxu0 0.0
      %2964 = vmatprep.subr.mxu0 0.0
      %2965 = vmatpush1.msra.mxu0 0.0
      %2966 = vmatprep.subr.mxu0 0.0
      %2967 = vmatpush1.msra.mxu0 0.0
      %2968 = vmatprep.subr.mxu0 0.0
      %2969 = vmatpush1.msra.mxu0 0.0
      %2970 = vmatprep.subr.mxu0 0.0
      %2971 = vmatpush1.msra.mxu0 0.0
      %2972 = vmatprep.subr.mxu0 0.0
      %2973 = vmatpush1.msra.mxu0 0.0
      %2974 = vmatprep.subr.mxu0 0.0
      %2975 = vmatpush1.msra.mxu0 0.0
      %2976 = vmatprep.subr.mxu0 0.0
      %2977 = vmatpush1.msra.mxu0 0.0
      %2978 = vmatprep.subr.mxu0 0.0
      %2979 = vmatpush1.msra.mxu0 0.0
      %2980 = vmatprep.subr.mxu0 0.0
      %2981 = vmatpush1.msra.mxu0 0.0
      %2982 = vmatprep.subr.mxu0 0.0
      %2983 = vmatpush1.msra.mxu0 0.0
      %2984 = vmatprep.subr.mxu0 0.0
      %2985 = vmatpush1.msra.mxu0 0.0
      %2986 = vmatprep.subr.mxu0 0.0
      %2987 = vmatpush1.msra.mxu0 0.0
      %2988 = vmatprep.subr.mxu0 0.0
      %2989 = vmatpush1.msra.mxu0 0.0
      %2990 = vmatprep.subr.mxu0 0.0
      %2991 = vmatpush1.msra.mxu0 0.0
      %2992 = vmatprep.subr.mxu0 0.0
      %2993 = vmatpush1.msra.mxu0 0.0
      %2994 = vmatprep.subr.mxu0 0.0
      %2995 = vmatpush1.msra.mxu0 0.0
      %2996 = vmatprep.subr.mxu0 0.0
      %2997 = vmatpush1.msra.mxu0 0.0
      %2998 = vmatprep.subr.mxu0 0.0
      %2999 = vmatpush1.msra.mxu0 0.0
      %3000 = vmatprep.mubr.f32.mxu0 0.0
      %3001 = vmatmul.mubr.f32.gmra.mrb[0].mxu0 %v2934
      %v3002 = vpop.f32.mrb[0].mxu0
      %v3003 = vadd.f32 %v1734, %v3002
      %v3004 = vpop.f32.mrb[0].mxu0
      %3005 = vdwg.mxu0
      %v3006 = vadd.f32 %v2858, %v3003
      %v3007 = vsel %vm572, %v3006, 0.0
      %3008 = vadd.xlane.f32.xlu0 %v3007
      %v3009 = vpop.xlane.xlu0 %3008
      %v3010 = vmul.f32 %v3009, %v1625
      %v3011 = vsub.f32 %v3006, %v3010
      %v3012 = vmul.f32 %v3011, %v3011
      %v3013 = vsel %vm572, %v3012, 0.0
      %3014 = vadd.xlane.f32.xlu0 %v3013
      %v3015 = vpop.xlane.xlu0 %3014
      %v3016 = vmul.f32 %v3015, %v1625
      %v3017 = vadd.f32 %v3016, 1e-05
      %v3018 = vrsqrt.pop %v3017
      %v3019 = vmul.f32 %v3011, %v3018
      %v3020 = vmul.f32 %v3019, %v1828
      %v3021 = vadd.f32 %v3020, %v1835
      %3022 = vst.msk [vmem:[%s462] sm:$0xff] %vm572, %v3021
      %p3023 = scmp.lt.s32.totalorder %s25, 1
      %s3024 = scalar_select %p3023, %s25, 1
      %s3025 = smul.addr %s3024, 8
      %s3026 = scalar_lea.vmem %s14, %s3025
      // Predicated region
      $region77: #{transformer_model_forward.1} parent=75 // pred_check
        %p3027 = pneg %p342
      $region78: #{transformer_model_forward.1} parent=75 // pred_check_branch
        %3029 = sbr.rel (%p3027) target = $region80
      $region79: #{transformer_model_forward.1} parent=75 // pred_region
        _
      $region80: #{transformer_model_forward.1} parent=75 // pred_fallthru
        _
    $region76: #{transformer_model_forward.1} parent=5 // pred_fallthru
      _
    %p3030 = scmp.le.s32.totalorder 2, %s20
    // Predicated region
    $region81: #{transformer_model_forward.1} parent=5 // pred_check
      %p3031 = pneg %p3030
    $region82: #{transformer_model_forward.1} parent=5 // pred_check_branch
      %3033 = sbr.rel (%p3031) target = $region84
    $region83: #{transformer_model_forward.1} parent=5 // pred_region
      %s3034 = ssub.s32 %s20, 2
      // Predicated region
      $region85: #{transformer_model_forward.1} parent=83 // pred_check
        %p3035 = pneg %p348
      $region86: #{transformer_model_forward.1} parent=83 // pred_check_branch
        %3037 = sbr.rel (%p3035) target = $region88
      $region87: #{transformer_model_forward.1} parent=83 // pred_region
        %p3038 = scmp.lt.s32.totalorder %s26, 1
        %s3039 = scalar_select %p3038, %s26, 1
        %s3040 = smul.addr %s3039, 8
        %s3041 = scalar_lea.vmem %s14, %s3040
      $region88: #{transformer_model_forward.1} parent=83 // pred_fallthru
        _
    $region84: #{transformer_model_forward.1} parent=5 // pred_fallthru
      _
  $region6: #{transformer_model_forward.1} parent=0 // loop_footer
    %s24 = sadd.s32 1, %s20
  $region7: #{transformer_model_forward.1} parent=0 // loop_footer_branch
    %19 = sbr.rel target = $region3
  $region8: #{transformer_model_forward.1} parent=0 // loop_exit
    _

</llo_original>
